<compile_context>
chip_gen: v5e
topology: v5e:2x2
jax: 0.10.0
libtpu: 0.0.40
codegen_flags: <defaults>
</compile_context>

<pallas_src>
import jax
import jax.numpy as jnp
from jax.experimental import pallas as pl
from jax.experimental.pallas import tpu as pltpu

EPS = 1e-5
COUT_TILES = 2  # >= 2 so v7x's two TensorCores each get a "parallel" output tile.


def _fused_bn_relu_conv_kernel(x_ref, gamma_ref, beta_ref, w_hi_ref, w_lo_ref, o_ref):
    """BatchNorm(batch stats) + ReLU + 1x1 conv, transposed (C, P) formulation.

    x_ref:     (C, P)       f32   full activation slab, resident in VMEM
    gamma_ref: (C, 1)       f32
    beta_ref:  (C, 1)       f32
    w_hi_ref:  (Cout_t, C)  bf16  hi half of this step's 1x1-conv weight tile
    w_lo_ref:  (Cout_t, C)  bf16  lo half (w - hi), for split-precision matmul
    o_ref:     (Cout_t, P)  f32
    """
    x = x_ref[...]
    inv_p = 1.0 / x.shape[1]  # true P is the static logical width (no padding)

    # Per-channel batch statistics (train-mode BatchNorm, biased variance).
    s = jnp.sum(x, axis=1, keepdims=True)        # (C, 1)  lane-axis reduce (XLU)
    ss = jnp.sum(x * x, axis=1, keepdims=True)   # (C, 1)
    mean = s * inv_p
    var = ss * inv_p - mean * mean
    inv_std = jax.lax.rsqrt(var + EPS)           # EUP
    scale = gamma_ref[...] * inv_std             # (C, 1)
    bias = beta_ref[...] - mean * scale          # (C, 1)

    # Normalize + ReLU: one FMA + max on the VPU, broadcast along lanes.
    y = jnp.maximum(x * scale + bias, 0.0)       # (C, P)

    # Split-precision 1x1 conv: out^T = W @ y with three bf16 MXU passes,
    # f32 accumulation (drops only the lo*lo term, ~1e-5 relative error).
    y_hi = y.astype(jnp.bfloat16)
    y_lo = (y - y_hi.astype(jnp.float32)).astype(jnp.bfloat16)
    acc = jnp.dot(w_hi_ref[...], y_hi, preferred_element_type=jnp.float32)
    acc = acc + jnp.dot(w_lo_ref[...], y_hi, preferred_element_type=jnp.float32)
    acc = acc + jnp.dot(w_hi_ref[...], y_lo, preferred_element_type=jnp.float32)
    o_ref[...] = acc


@jax.jit
def bn_relu_conv1x1(x_nchw, gamma, beta, conv_w):
    """x_nchw: (N, C, H, W); gamma/beta: (C,); conv_w: (Cout, C, 1, 1)."""
    N, C, H, W = x_nchw.shape
    Cout = conv_w.shape[0]
    P = N * H * W

    # (N, C, H, W) -> (C, N*H*W). For N == 1 (the module's shape) this is a free
    # reshape (channels are already outermost) -- no transpose copies, no padding.
    x_cp = jnp.transpose(x_nchw.reshape(N, C, H * W), (1, 0, 2)).reshape(C, P)
    x_cp = x_cp.astype(jnp.float32)

    g = gamma.astype(jnp.float32).reshape(C, 1)
    b = beta.astype(jnp.float32).reshape(C, 1)

    # Weight consumed in its native (Cout, C) layout; split once into bf16 hi/lo.
    w = conv_w.reshape(Cout, C).astype(jnp.float32)
    w_hi = w.astype(jnp.bfloat16)
    w_lo = (w - w_hi.astype(jnp.float32)).astype(jnp.bfloat16)

    assert Cout % COUT_TILES == 0
    cout_t = Cout // COUT_TILES
    assert cout_t % 8 == 0

    cost = pl.CostEstimate(
        flops=2 * 3 * P * C * Cout + 5 * P * C,   # 3 bf16 passes + BN/ReLU work
        transcendentals=C,                        # rsqrt per channel
        bytes_accessed=4 * P * C + 2 * 2 * C * Cout + 4 * P * Cout,
    )

    out_ct = pl.pallas_call(
        _fused_bn_relu_conv_kernel,
        out_shape=jax.ShapeDtypeStruct((Cout, P), jnp.float32),
        grid=(COUT_TILES,),
        in_specs=[
            pl.BlockSpec((C, P), lambda i: (0, 0)),        # x: resident slab
            pl.BlockSpec((C, 1), lambda i: (0, 0)),        # gamma
            pl.BlockSpec((C, 1), lambda i: (0, 0)),        # beta
            pl.BlockSpec((cout_t, C), lambda i: (i, 0)),   # w_hi tile
            pl.BlockSpec((cout_t, C), lambda i: (i, 0)),   # w_lo tile
        ],
        out_specs=pl.BlockSpec((cout_t, P), lambda i: (i, 0)),
        compiler_params=pltpu.CompilerParams(
            dimension_semantics=("parallel",)),            # megacore-shardable on v7x
        cost_estimate=cost,
    )(x_cp, g, b, w_hi, w_lo)

    # (Cout, N*H*W) -> (N, Cout, H, W); free for N == 1.
    return jnp.transpose(out_ct.reshape(Cout, N, H, W), (1, 0, 2, 3))


def _reference(x_nchw, gamma, beta, conv_w):
    x = x_nchw.astype(jnp.float32)
    mean = jnp.mean(x, axis=(0, 2, 3), keepdims=True)
    var = jnp.mean((x - mean) ** 2, axis=(0, 2, 3), keepdims=True)
    y = (x - mean) * jax.lax.rsqrt(var + EPS)
    y = y * gamma.reshape(1, -1, 1, 1) + beta.reshape(1, -1, 1, 1)
    y = jnp.maximum(y, 0.0)
    return jnp.einsum(
        "nchw,oc->nohw", y, conv_w.reshape(conv_w.shape[0], -1),
        precision=jax.lax.Precision.HIGHEST)


if __name__ == "__main__":
    key = jax.random.PRNGKey(0)
    k_x, k_g, k_b, k_w = jax.random.split(key, 4)

    # Shapes implied by the module: BatchNorm2d(256) -> Conv2d(256 -> 1024, 1x1)
    N, C, H, W, Cout = 1, 256, 14, 14, 1024

    x = jax.random.normal(k_x, (N, C, H, W), dtype=jnp.float32)
    gamma = 1.0 + 0.1 * jax.random.normal(k_g, (C,), dtype=jnp.float32)
    beta = 0.1 * jax.random.normal(k_b, (C,), dtype=jnp.float32)
    conv_w = jax.random.normal(k_w, (Cout, C, 1, 1), dtype=jnp.float32) * (1.0 / C**0.5)

    out = bn_relu_conv1x1(x, gamma, beta, conv_w)
    out = jax.block_until_ready(out)

    ref = _reference(x, gamma, beta, conv_w)
    assert out.shape == (N, Cout, H, W), out.shape
    max_err = float(jnp.max(jnp.abs(out - ref)))
    assert jnp.allclose(out, ref, atol=1e-3, rtol=1e-3), max_err

    print("KERNEL_OK")
</pallas_src>

<mosaic_0001>
module attributes {stable_mosaic.version = 11 : i64} {
  func.func @_fused_bn_relu_conv_kernel(%arg0: i32, %arg1: memref<256x196xf32, #tpu.memory_space<vmem>>, %arg2: memref<256x1xf32, #tpu.memory_space<vmem>>, %arg3: memref<256x1xf32, #tpu.memory_space<vmem>>, %arg4: memref<512x256xbf16, #tpu.memory_space<vmem>>, %arg5: memref<512x256xbf16, #tpu.memory_space<vmem>>, %arg6: memref<512x196xf32, #tpu.memory_space<vmem>>) attributes {dimension_semantics = [#tpu.dimension_semantics<parallel>], iteration_bounds = array<i64: 2>, scalar_prefetch = 0 : i64, scratch_operands = 0 : i64, tpu.core_type = #tpu.core_type<tc>, window_params = [{pipeline_mode = #tpu.pipeline_mode<synchronous>, transform_indices = @transform_0, window_bounds = array<i64: 256, 196>}, {pipeline_mode = #tpu.pipeline_mode<synchronous>, transform_indices = @transform_1, window_bounds = array<i64: 256, 1>}, {pipeline_mode = #tpu.pipeline_mode<synchronous>, transform_indices = @transform_2, window_bounds = array<i64: 256, 1>}, {transform_indices = @transform_3, window_bounds = array<i64: 512, 256>}, {transform_indices = @transform_4, window_bounds = array<i64: 512, 256>}, {transform_indices = @transform_5, window_bounds = array<i64: 512, 196>}]} {
    %c0 = arith.constant 0 : index
    %c0_0 = arith.constant 0 : index
    %0 = vector.load %arg1[%c0, %c0_0] : memref<256x196xf32, #tpu.memory_space<vmem>>, vector<256x196xf32>
    %cst = arith.constant dense<0.000000e+00> : vector<256xf32>
    %1 = vector.multi_reduction <add>, %0, %cst [1] : vector<256x196xf32> to vector<256xf32>
    %2 = vector.shape_cast %1 : vector<256xf32> to vector<256x1xf32>
    %3 = arith.mulf %0, %0 : vector<256x196xf32>
    %cst_1 = arith.constant dense<0.000000e+00> : vector<256xf32>
    %4 = vector.multi_reduction <add>, %3, %cst_1 [1] : vector<256x196xf32> to vector<256xf32>
    %5 = vector.shape_cast %4 : vector<256xf32> to vector<256x1xf32>
    %cst_2 = arith.constant 0.00510204071 : f32
    %6 = vector.broadcast %cst_2 : f32 to vector<256x1xf32>
    %7 = arith.mulf %2, %6 : vector<256x1xf32>
    %cst_3 = arith.constant 0.00510204071 : f32
    %8 = vector.broadcast %cst_3 : f32 to vector<256x1xf32>
    %9 = arith.mulf %5, %8 : vector<256x1xf32>
    %10 = arith.mulf %7, %7 : vector<256x1xf32>
    %11 = arith.subf %9, %10 : vector<256x1xf32>
    %cst_4 = arith.constant 9.99999974E-6 : f32
    %12 = vector.broadcast %cst_4 : f32 to vector<256x1xf32>
    %13 = arith.addf %11, %12 : vector<256x1xf32>
    %14 = math.rsqrt %13 : vector<256x1xf32>
    %c0_5 = arith.constant 0 : index
    %c0_6 = arith.constant 0 : index
    %15 = vector.load %arg2[%c0_5, %c0_6] : memref<256x1xf32, #tpu.memory_space<vmem>>, vector<256x1xf32>
    %16 = arith.mulf %15, %14 : vector<256x1xf32>
    %c0_7 = arith.constant 0 : index
    %c0_8 = arith.constant 0 : index
    %17 = vector.load %arg3[%c0_7, %c0_8] : memref<256x1xf32, #tpu.memory_space<vmem>>, vector<256x1xf32>
    %18 = arith.mulf %7, %16 : vector<256x1xf32>
    %19 = arith.subf %17, %18 : vector<256x1xf32>
    %20 = vector.broadcast %16 : vector<256x1xf32> to vector<256x196xf32>
    %21 = arith.mulf %0, %20 : vector<256x196xf32>
    %22 = vector.broadcast %19 : vector<256x1xf32> to vector<256x196xf32>
    %23 = arith.addf %21, %22 : vector<256x196xf32>
    %cst_9 = arith.constant 0.000000e+00 : f32
    %24 = vector.broadcast %cst_9 : f32 to vector<256x196xf32>
    %25 = arith.maximumf %23, %24 : vector<256x196xf32>
    %26 = arith.truncf %25 : vector<256x196xf32> to vector<256x196xbf16>
    %27 = arith.extf %26 : vector<256x196xbf16> to vector<256x196xf32>
    %28 = arith.subf %25, %27 : vector<256x196xf32>
    %29 = arith.truncf %28 : vector<256x196xf32> to vector<256x196xbf16>
    %c0_10 = arith.constant 0 : index
    %c0_11 = arith.constant 0 : index
    %30 = vector.load %arg4[%c0_10, %c0_11] : memref<512x256xbf16, #tpu.memory_space<vmem>>, vector<512x256xbf16>
    %cst_12 = arith.constant dense<0.000000e+00> : vector<512x196xf32>
    %31 = tpu.matmul %30, %26, %cst_12 {dimension_numbers = #tpu.dot_dimension_numbers<[1], [0], [0], [1], [0, 0, 1, 1], [], []>} : vector<512x256xbf16>, vector<256x196xbf16>, vector<512x196xf32> -> vector<512x196xf32>
    %c0_13 = arith.constant 0 : index
    %c0_14 = arith.constant 0 : index
    %32 = vector.load %arg5[%c0_13, %c0_14] : memref<512x256xbf16, #tpu.memory_space<vmem>>, vector<512x256xbf16>
    %cst_15 = arith.constant dense<0.000000e+00> : vector<512x196xf32>
    %33 = tpu.matmul %32, %26, %cst_15 {dimension_numbers = #tpu.dot_dimension_numbers<[1], [0], [0], [1], [0, 0, 1, 1], [], []>} : vector<512x256xbf16>, vector<256x196xbf16>, vector<512x196xf32> -> vector<512x196xf32>
    %34 = arith.addf %31, %33 : vector<512x196xf32>
    %c0_16 = arith.constant 0 : index
    %c0_17 = arith.constant 0 : index
    %35 = vector.load %arg4[%c0_16, %c0_17] : memref<512x256xbf16, #tpu.memory_space<vmem>>, vector<512x256xbf16>
    %cst_18 = arith.constant dense<0.000000e+00> : vector<512x196xf32>
    %36 = tpu.matmul %35, %29, %cst_18 {dimension_numbers = #tpu.dot_dimension_numbers<[1], [0], [0], [1], [0, 0, 1, 1], [], []>} : vector<512x256xbf16>, vector<256x196xbf16>, vector<512x196xf32> -> vector<512x196xf32>
    %37 = arith.addf %34, %36 : vector<512x196xf32>
    %c0_19 = arith.constant 0 : index
    %c0_20 = arith.constant 0 : index
    %38 = vector.load %arg6[%c0_19, %c0_20] : memref<512x196xf32, #tpu.memory_space<vmem>>, vector<512x196xf32>
    tpu.vector_store %arg6[%c0_19, %c0_20], %37 {strides = array<i32>} : memref<512x196xf32, #tpu.memory_space<vmem>>, vector<512x196xf32>,
    return
  }
  func.func @transform_0(%arg0: i32) -> (i32, i32) {
    %c0_i32 = arith.constant 0 : i32
    %c0_i32_0 = arith.constant 0 : i32
    %c0_i32_1 = arith.constant 0 : i32
    return %c0_i32, %c0_i32_0 : i32, i32
  }
  func.func @transform_1(%arg0: i32) -> (i32, i32) {
    %c0_i32 = arith.constant 0 : i32
    %c0_i32_0 = arith.constant 0 : i32
    %c0_i32_1 = arith.constant 0 : i32
    return %c0_i32, %c0_i32_0 : i32, i32
  }
  func.func @transform_2(%arg0: i32) -> (i32, i32) {
    %c0_i32 = arith.constant 0 : i32
    %c0_i32_0 = arith.constant 0 : i32
    %c0_i32_1 = arith.constant 0 : i32
    return %c0_i32, %c0_i32_0 : i32, i32
  }
  func.func @transform_3(%arg0: i32) -> (i32, i32) {
    %c0_i32 = arith.constant 0 : i32
    %c0_i32_0 = arith.constant 0 : i32
    return %arg0, %c0_i32 : i32, i32
  }
  func.func @transform_4(%arg0: i32) -> (i32, i32) {
    %c0_i32 = arith.constant 0 : i32
    %c0_i32_0 = arith.constant 0 : i32
    return %arg0, %c0_i32 : i32, i32
  }
  func.func @transform_5(%arg0: i32) -> (i32, i32) {
    %c0_i32 = arith.constant 0 : i32
    %c0_i32_0 = arith.constant 0 : i32
    return %arg0, %c0_i32 : i32, i32
  }
}

</mosaic_0001>

<llo_original>
// kernel: bn_relu_conv1x1.1
$region0: #{bn_relu_conv1x1.1}
  #allocation0 [shape = 'u32[]', space=smem, size = 0x4, offset = 0x4, fixed_abs, tag = 'smem constant byte address 0x4 - core index']
  #allocation1 [shape = 'u32[72,128]{1,0:T(1,128)}', space=vmem, size = 0x9000, scoped, tag = 'internal scratch']
  %s0 = inlined_call_operand.vmem [shape: f32[256,196], index: 0, kind: input, shape index: {}]
  %s1 = inlined_call_operand.vmem [shape: f32[256,1], index: 1, kind: input, shape index: {}]
  %s2 = inlined_call_operand.vmem [shape: f32[256,1], index: 2, kind: input, shape index: {}]
  %s3 = inlined_call_operand.vmem [shape: bf16[1024,256], index: 3, kind: input, shape index: {}]
  %s4 = inlined_call_operand.vmem [shape: bf16[1024,256], index: 4, kind: input, shape index: {}]
  %s5 = inlined_call_operand.vmem [shape: f32[1024,196], index: 5, kind: output, shape index: {}]
  %s6 = sld [smem:[#allocation0]]
  $region53: #{bn_relu_conv1x1.1} parent=0
    _
  %s8 = ssub.s32 1, %s6
  %s9 = scalar_select 0, %s8, %s6
  loop: start=0, step=1, limit=4
  $region2: #{bn_relu_conv1x1.1} parent=0 // loop_pre_header
    _
  $region3: #{bn_relu_conv1x1.1} parent=0 // loop_header
    %s11 = sphi 0, %s15
    %p12 = scmp.ge.s32.totalorder %s11, 4
    %s19 = sphi 0, %s19
    %s21 = sphi 0, %s19
    %s22 = sphi 0, %s21
    %s36 = sphi 0, %s22
    %s40 = sphi 0, %s40
    %s42 = sphi 0, %s40
    %s43 = sphi 0, %s42
    %s57 = sphi 0, %s43
    %s61 = sphi 0, %s61
    %s63 = sphi 0, %s61
    %s64 = sphi 0, %s63
    %s78 = sphi 0, %s64
    %s84 = sphi 0, %s86
    %s87 = sphi 0, %s84
    %s88 = sphi 0, %s87
    %s104 = sphi 0, %s88
    %s110 = sphi 0, %s112
    %s113 = sphi 0, %s110
    %s114 = sphi 0, %s113
    %s130 = sphi 0, %s114
    %s136 = sphi 0, %s138
    %s139 = sphi 0, %s136
    %s140 = sphi 0, %s139
    %s156 = sphi 0, %s140
  $region4: #{bn_relu_conv1x1.1} parent=0 // loop_header_branch
    %14 = sbr.rel (%p12) target = $region8
  $region5: #{bn_relu_conv1x1.1} parent=0 // loop_body
    %s16 = ssub.s32 %s11, 1
    %s17 = ssub.s32 %s11, 2
    %s18 = sadd.s32 %s11, 1
    %s20 = sadd.s32 %s19, 1
    %p23 = scmp.eq.s32.totalorder %s11, 1
    %p24 = scmp.ne.s32.totalorder %s19, %s21
    %p25 = scmp.eq.s32.totalorder %s11, 0
    %p26 = por %p24, %p25
    %p27 = scmp.ne.s32.totalorder %s19, %s21
    %p28 = scmp.eq.s32.totalorder %s16, 1
    %p29 = por %p27, %p28
    %p30 = scmp.ne.s32.totalorder %s21, %s22
    %p31 = scmp.eq.s32.totalorder %s16, 0
    %p32 = por %p30, %p31
    %p33 = scmp.ne.s32.totalorder %s21, %s22
    %p34 = scmp.eq.s32.totalorder %s17, 1
    %p35 = por %p33, %p34
    %p37 = scmp.ne.s32.totalorder %s22, %s36
    %p38 = scmp.eq.s32.totalorder %s17, 0
    %p39 = por %p37, %p38
    %s41 = sadd.s32 %s40, 1
    %p44 = scmp.eq.s32.totalorder %s11, 1
    %p45 = scmp.ne.s32.totalorder %s40, %s42
    %p46 = scmp.eq.s32.totalorder %s11, 0
    %p47 = por %p45, %p46
    %p48 = scmp.ne.s32.totalorder %s40, %s42
    %p49 = scmp.eq.s32.totalorder %s16, 1
    %p50 = por %p48, %p49
    %p51 = scmp.ne.s32.totalorder %s42, %s43
    %p52 = scmp.eq.s32.totalorder %s16, 0
    %p53 = por %p51, %p52
    %p54 = scmp.ne.s32.totalorder %s42, %s43
    %p55 = scmp.eq.s32.totalorder %s17, 1
    %p56 = por %p54, %p55
    %p58 = scmp.ne.s32.totalorder %s43, %s57
    %p59 = scmp.eq.s32.totalorder %s17, 0
    %p60 = por %p58, %p59
    %s62 = sadd.s32 %s61, 1
    %p65 = scmp.eq.s32.totalorder %s11, 1
    %p66 = scmp.ne.s32.totalorder %s61, %s63
    %p67 = scmp.eq.s32.totalorder %s11, 0
    %p68 = por %p66, %p67
    %p69 = scmp.ne.s32.totalorder %s61, %s63
    %p70 = scmp.eq.s32.totalorder %s16, 1
    %p71 = por %p69, %p70
    %p72 = scmp.ne.s32.totalorder %s63, %s64
    %p73 = scmp.eq.s32.totalorder %s16, 0
    %p74 = por %p72, %p73
    %p75 = scmp.ne.s32.totalorder %s63, %s64
    %p76 = scmp.eq.s32.totalorder %s17, 1
    %p77 = por %p75, %p76
    %p79 = scmp.ne.s32.totalorder %s64, %s78
    %p80 = scmp.eq.s32.totalorder %s17, 0
    %p81 = por %p79, %p80
    %s82 = ssub.s32 %s11, %s18
    %p83 = scmp.eq.s32.totalorder %s82, 0
    %s85 = sadd.s32 %s84, 1
    %s86 = scalar_select %p83, %s84, %s85
    %p89 = pneg %p83
    %p90 = scmp.eq.s32.totalorder %s11, 1
    %p91 = por %p89, %p90
    %p92 = scmp.ne.s32.totalorder %s84, %s87
    %p93 = scmp.eq.s32.totalorder %s11, 0
    %p94 = por %p92, %p93
    %p95 = scmp.ne.s32.totalorder %s84, %s87
    %p96 = scmp.eq.s32.totalorder %s16, 1
    %p97 = por %p95, %p96
    %p98 = scmp.ne.s32.totalorder %s87, %s88
    %p99 = scmp.eq.s32.totalorder %s16, 0
    %p100 = por %p98, %p99
    %p101 = scmp.ne.s32.totalorder %s87, %s88
    %p102 = scmp.eq.s32.totalorder %s17, 1
    %p103 = por %p101, %p102
    %p105 = scmp.ne.s32.totalorder %s88, %s104
    %p106 = scmp.eq.s32.totalorder %s17, 0
    %p107 = por %p105, %p106
    %s108 = ssub.s32 %s11, %s18
    %p109 = scmp.eq.s32.totalorder %s108, 0
    %s111 = sadd.s32 %s110, 1
    %s112 = scalar_select %p109, %s110, %s111
    %p115 = pneg %p109
    %p116 = scmp.eq.s32.totalorder %s11, 1
    %p117 = por %p115, %p116
    %p118 = scmp.ne.s32.totalorder %s110, %s113
    %p119 = scmp.eq.s32.totalorder %s11, 0
    %p120 = por %p118, %p119
    %p121 = scmp.ne.s32.totalorder %s110, %s113
    %p122 = scmp.eq.s32.totalorder %s16, 1
    %p123 = por %p121, %p122
    %p124 = scmp.ne.s32.totalorder %s113, %s114
    %p125 = scmp.eq.s32.totalorder %s16, 0
    %p126 = por %p124, %p125
    %p127 = scmp.ne.s32.totalorder %s113, %s114
    %p128 = scmp.eq.s32.totalorder %s17, 1
    %p129 = por %p127, %p128
    %p131 = scmp.ne.s32.totalorder %s114, %s130
    %p132 = scmp.eq.s32.totalorder %s17, 0
    %p133 = por %p131, %p132
    %s134 = ssub.s32 %s11, %s18
    %p135 = scmp.eq.s32.totalorder %s134, 0
    %s137 = sadd.s32 %s136, 1
    %s138 = scalar_select %p135, %s136, %s137
    %p141 = pneg %p135
    %p142 = scmp.eq.s32.totalorder %s11, 1
    %p143 = por %p141, %p142
    %p144 = scmp.ne.s32.totalorder %s136, %s139
    %p145 = scmp.eq.s32.totalorder %s11, 0
    %p146 = por %p144, %p145
    %p147 = scmp.ne.s32.totalorder %s136, %s139
    %p148 = scmp.eq.s32.totalorder %s16, 1
    %p149 = por %p147, %p148
    %p150 = scmp.ne.s32.totalorder %s139, %s140
    %p151 = scmp.eq.s32.totalorder %s16, 0
    %p152 = por %p150, %p151
    %p153 = scmp.ne.s32.totalorder %s139, %s140
    %p154 = scmp.eq.s32.totalorder %s17, 1
    %p155 = por %p153, %p154
    %p157 = scmp.ne.s32.totalorder %s140, %s156
    %p158 = scmp.eq.s32.totalorder %s17, 0
    %p159 = por %p157, %p158
    %p160 = scmp.le.s32.totalorder 1, %s11
    %p161 = scmp.lt.s32.totalorder %s11, 3
    %p162 = pnand %p160, %p161
    %p163 = pneg %p162
    // Predicated region
    $region9: #{bn_relu_conv1x1.1} parent=5 // pred_check
      _
    $region10: #{bn_relu_conv1x1.1} parent=5 // pred_check_branch
      %165 = sbr.rel (%p162) target = $region12
    $region11: #{bn_relu_conv1x1.1} parent=5 // pred_region
      %s166 = ssub.s32 %s11, 1
      // Predicated region
      $region13: #{bn_relu_conv1x1.1} parent=11 // pred_check
        %p167 = pneg %p32
      $region14: #{bn_relu_conv1x1.1} parent=11 // pred_check_branch
        %169 = sbr.rel (%p167) target = $region16
      $region15: #{bn_relu_conv1x1.1} parent=11 // pred_region
        _
      $region16: #{bn_relu_conv1x1.1} parent=11 // pred_fallthru
        _
      // Predicated region
      $region17: #{bn_relu_conv1x1.1} parent=11 // pred_check
        %p170 = pneg %p53
      $region18: #{bn_relu_conv1x1.1} parent=11 // pred_check_branch
        %172 = sbr.rel (%p170) target = $region20
      $region19: #{bn_relu_conv1x1.1} parent=11 // pred_region
        _
      $region20: #{bn_relu_conv1x1.1} parent=11 // pred_fallthru
        _
      // Predicated region
      $region21: #{bn_relu_conv1x1.1} parent=11 // pred_check
        %p173 = pneg %p74
      $region22: #{bn_relu_conv1x1.1} parent=11 // pred_check_branch
        %175 = sbr.rel (%p173) target = $region24
      $region23: #{bn_relu_conv1x1.1} parent=11 // pred_region
        _
      $region24: #{bn_relu_conv1x1.1} parent=11 // pred_fallthru
        _
    $region12: #{bn_relu_conv1x1.1} parent=5 // pred_fallthru
      _
    %p176 = scmp.lt.s32.totalorder %s11, 2
    // Predicated region
    $region25: #{bn_relu_conv1x1.1} parent=5 // pred_check
      %p177 = pneg %p176
    $region26: #{bn_relu_conv1x1.1} parent=5 // pred_check_branch
      %179 = sbr.rel (%p177) target = $region28
    $region27: #{bn_relu_conv1x1.1} parent=5 // pred_region
      // Predicated region
      $region29: #{bn_relu_conv1x1.1} parent=27 // pred_check
        %p180 = pneg %p94
      $region30: #{bn_relu_conv1x1.1} parent=27 // pred_check_branch
        %182 = sbr.rel (%p180) target = $region32
      $region31: #{bn_relu_conv1x1.1} parent=27 // pred_region
        %s183 = smul.u32 64, %s11
        %p184 = scmp.lt.s32.totalorder %s183, 127
        %s185 = scalar_select %p184, %s183, 127
        %s186 = smul.addr %s185, 2
        %s187 = smul.addr %s186, 4
        %s188 = scalar_lea.vmem %s3, %s187
        %s189 = smul.u32 64, %s11
      $region32: #{bn_relu_conv1x1.1} parent=27 // pred_fallthru
        _
      // Predicated region
      $region33: #{bn_relu_conv1x1.1} parent=27 // pred_check
        %p190 = pneg %p120
      $region34: #{bn_relu_conv1x1.1} parent=27 // pred_check_branch
        %192 = sbr.rel (%p190) target = $region36
      $region35: #{bn_relu_conv1x1.1} parent=27 // pred_region
        %s193 = smul.u32 64, %s11
        %p194 = scmp.lt.s32.totalorder %s193, 127
        %s195 = scalar_select %p194, %s193, 127
        %s196 = smul.addr %s195, 2
        %s197 = smul.addr %s196, 4
        %s198 = scalar_lea.vmem %s4, %s197
        %s199 = smul.u32 64, %s11
      $region36: #{bn_relu_conv1x1.1} parent=27 // pred_fallthru
        _
    $region28: #{bn_relu_conv1x1.1} parent=5 // pred_fallthru
      _
    %p200 = scmp.le.s32.totalorder 1, %s11
    %p201 = scmp.lt.s32.totalorder %s11, 3
    %p202 = pnand %p200, %p201
    %p203 = pneg %p202
    // Predicated region
    $region37: #{bn_relu_conv1x1.1} parent=5 // pred_check
      _
    $region38: #{bn_relu_conv1x1.1} parent=5 // pred_check_branch
      %205 = sbr.rel (%p202) target = $region40
    $region39: #{bn_relu_conv1x1.1} parent=5 // pred_region
      %s206 = ssub.s32 %s11, 1
      %p207 = pneg %p32
      %p208 = pneg %p29
      %p209 = pneg %p53
      %p210 = pneg %p50
      %p211 = pneg %p74
      %p212 = pneg %p71
      %s213 = smul.u32 64, %s16
      %p214 = scmp.lt.s32.totalorder %s213, 127
      %s215 = scalar_select %p214, %s213, 127
      %s216 = smul.addr %s215, 2
      %s217 = smul.addr %s216, 4
      %s218 = scalar_lea.vmem %s3, %s217
      %p219 = pneg %p100
      %p220 = pneg %p97
      %s221 = smul.u32 64, %s16
      %p222 = scmp.lt.s32.totalorder %s221, 127
      %s223 = scalar_select %p222, %s221, 127
      %s224 = smul.addr %s223, 2
      %s225 = smul.addr %s224, 4
      %s226 = scalar_lea.vmem %s4, %s225
      %p227 = pneg %p126
      %p228 = pneg %p123
      %p229 = pneg %p152
      %p230 = pneg %p149
      %s231 = smul.u32 64, %s16
      %p232 = scmp.lt.s32.totalorder %s231, 127
      %s233 = scalar_select %p232, %s231, 127
      %s234 = smul.addr %s233, 2
      %s235 = smul.addr %s234, 8
      %s236 = scalar_lea.vmem %s5, %s235
      %s237 = smul.u32 64, %s16
      %p238 = scmp.lt.s32.totalorder %s237, 127
      %s239 = scalar_select %p238, %s237, 127
      %s240 = smul.addr %s239, 2
      %s241 = smul.addr %s240, 4
      %s242 = scalar_lea.vmem %s3, %s241
      %s243 = smul.u32 64, %s16
      %s244 = smul.u32 64, %s16
      %p245 = scmp.lt.s32.totalorder %s244, 127
      %s246 = scalar_select %p245, %s244, 127
      %s247 = smul.addr %s246, 2
      %s248 = smul.addr %s247, 4
      %s249 = scalar_lea.vmem %s4, %s248
      %s250 = smul.u32 64, %s16
      %s251 = smul.u32 64, %s16
      %p252 = scmp.lt.s32.totalorder %s251, 127
      %s253 = scalar_select %p252, %s251, 127
      %s254 = smul.addr %s253, 2
      %s255 = smul.addr %s254, 8
      %s256 = scalar_lea.vmem %s5, %s255
      %s257 = smul.u32 64, %s16
      %v258 = vld [vmem:[%s0] sm:$0xff]
      %v259 = vld [vmem:[%s0 + $0x8] sm:$0xff]
      %v260 = vld [vmem:[%s0 + $0x10] sm:$0xff]
      %v261 = vld [vmem:[%s0 + $0x18] sm:$0xff]
      %v262 = vld [vmem:[%s0 + $0x20] sm:$0xff]
      %v263 = vld [vmem:[%s0 + $0x28] sm:$0xff]
      %v264 = vld [vmem:[%s0 + $0x30] sm:$0xff]
      %v265 = vld [vmem:[%s0 + $0x38] sm:$0xff]
      %v266 = vld [vmem:[%s0 + $0x40] sm:$0xff]
      %v267 = vld [vmem:[%s0 + $0x48] sm:$0xff]
      %v268 = vld [vmem:[%s0 + $0x50] sm:$0xff]
      %v269 = vld [vmem:[%s0 + $0x58] sm:$0xff]
      %v270 = vld [vmem:[%s0 + $0x60] sm:$0xff]
      %v271 = vld [vmem:[%s0 + $0x68] sm:$0xff]
      %v272 = vld [vmem:[%s0 + $0x70] sm:$0xff]
      %v273 = vld [vmem:[%s0 + $0x78] sm:$0xff]
      %v274 = vld [vmem:[%s0 + $0x80] sm:$0xff]
      %v275 = vld [vmem:[%s0 + $0x88] sm:$0xff]
      %v276 = vld [vmem:[%s0 + $0x90] sm:$0xff]
      %v277 = vld [vmem:[%s0 + $0x98] sm:$0xff]
      %v278 = vld [vmem:[%s0 + $0xa0] sm:$0xff]
      %v279 = vld [vmem:[%s0 + $0xa8] sm:$0xff]
      %v280 = vld [vmem:[%s0 + $0xb0] sm:$0xff]
      %v281 = vld [vmem:[%s0 + $0xb8] sm:$0xff]
      %v282 = vld [vmem:[%s0 + $0xc0] sm:$0xff]
      %v283 = vld [vmem:[%s0 + $0xc8] sm:$0xff]
      %v284 = vld [vmem:[%s0 + $0xd0] sm:$0xff]
      %v285 = vld [vmem:[%s0 + $0xd8] sm:$0xff]
      %v286 = vld [vmem:[%s0 + $0xe0] sm:$0xff]
      %v287 = vld [vmem:[%s0 + $0xe8] sm:$0xff]
      %v288 = vld [vmem:[%s0 + $0xf0] sm:$0xff]
      %v289 = vld [vmem:[%s0 + $0xf8] sm:$0xff]
      %v290 = vld [vmem:[%s0 + $0x100] sm:$0xff]
      %v291 = vld [vmem:[%s0 + $0x108] sm:$0xff]
      %v292 = vld [vmem:[%s0 + $0x110] sm:$0xff]
      %v293 = vld [vmem:[%s0 + $0x118] sm:$0xff]
      %v294 = vld [vmem:[%s0 + $0x120] sm:$0xff]
      %v295 = vld [vmem:[%s0 + $0x128] sm:$0xff]
      %v296 = vld [vmem:[%s0 + $0x130] sm:$0xff]
      %v297 = vld [vmem:[%s0 + $0x138] sm:$0xff]
      %v298 = vld [vmem:[%s0 + $0x140] sm:$0xff]
      %v299 = vld [vmem:[%s0 + $0x148] sm:$0xff]
      %v300 = vld [vmem:[%s0 + $0x150] sm:$0xff]
      %v301 = vld [vmem:[%s0 + $0x158] sm:$0xff]
      %v302 = vld [vmem:[%s0 + $0x160] sm:$0xff]
      %v303 = vld [vmem:[%s0 + $0x168] sm:$0xff]
      %v304 = vld [vmem:[%s0 + $0x170] sm:$0xff]
      %v305 = vld [vmem:[%s0 + $0x178] sm:$0xff]
      %v306 = vld [vmem:[%s0 + $0x180] sm:$0xff]
      %v307 = vld [vmem:[%s0 + $0x188] sm:$0xff]
      %v308 = vld [vmem:[%s0 + $0x190] sm:$0xff]
      %v309 = vld [vmem:[%s0 + $0x198] sm:$0xff]
      %v310 = vld [vmem:[%s0 + $0x1a0] sm:$0xff]
      %v311 = vld [vmem:[%s0 + $0x1a8] sm:$0xff]
      %v312 = vld [vmem:[%s0 + $0x1b0] sm:$0xff]
      %v313 = vld [vmem:[%s0 + $0x1b8] sm:$0xff]
      %v314 = vld [vmem:[%s0 + $0x1c0] sm:$0xff]
      %v315 = vld [vmem:[%s0 + $0x1c8] sm:$0xff]
      %v316 = vld [vmem:[%s0 + $0x1d0] sm:$0xff]
      %v317 = vld [vmem:[%s0 + $0x1d8] sm:$0xff]
      %v318 = vld [vmem:[%s0 + $0x1e0] sm:$0xff]
      %v319 = vld [vmem:[%s0 + $0x1e8] sm:$0xff]
      %v320 = vld [vmem:[%s0 + $0x1f0] sm:$0xff]
      %v321 = vld [vmem:[%s0 + $0x1f8] sm:$0xff]
      %vm322 = vcmask 556032
      %v323 = vsel %vm322, %v259, 0.0
      %v324 = vadd.f32 %v258, %v323
      %325 = vadd.xlane.f32.xlu0 %v324
      %v326 = vpop.xlane.xlu0 %325
      %v327 = vsel %vm322, %v261, 0.0
      %v328 = vadd.f32 %v260, %v327
      %329 = vadd.xlane.f32.xlu0 %v328
      %v330 = vpop.xlane.xlu0 %329
      %v331 = vsel %vm322, %v263, 0.0
      %v332 = vadd.f32 %v262, %v331
      %333 = vadd.xlane.f32.xlu0 %v332
      %v334 = vpop.xlane.xlu0 %333
      %v335 = vsel %vm322, %v265, 0.0
      %v336 = vadd.f32 %v264, %v335
      %337 = vadd.xlane.f32.xlu0 %v336
      %v338 = vpop.xlane.xlu0 %337
      %v339 = vsel %vm322, %v267, 0.0
      %v340 = vadd.f32 %v266, %v339
      %341 = vadd.xlane.f32.xlu0 %v340
      %v342 = vpop.xlane.xlu0 %341
      %v343 = vsel %vm322, %v269, 0.0
      %v344 = vadd.f32 %v268, %v343
      %345 = vadd.xlane.f32.xlu0 %v344
      %v346 = vpop.xlane.xlu0 %345
      %v347 = vsel %vm322, %v271, 0.0
      %v348 = vadd.f32 %v270, %v347
      %349 = vadd.xlane.f32.xlu0 %v348
      %v350 = vpop.xlane.xlu0 %349
      %v351 = vsel %vm322, %v273, 0.0
      %v352 = vadd.f32 %v272, %v351
      %353 = vadd.xlane.f32.xlu0 %v352
      %v354 = vpop.xlane.xlu0 %353
      %v355 = vsel %vm322, %v275, 0.0
      %v356 = vadd.f32 %v274, %v355
      %357 = vadd.xlane.f32.xlu0 %v356
      %v358 = vpop.xlane.xlu0 %357
      %v359 = vsel %vm322, %v277, 0.0
      %v360 = vadd.f32 %v276, %v359
      %361 = vadd.xlane.f32.xlu0 %v360
      %v362 = vpop.xlane.xlu0 %361
      %v363 = vsel %vm322, %v279, 0.0
      %v364 = vadd.f32 %v278, %v363
      %365 = vadd.xlane.f32.xlu0 %v364
      %v366 = vpop.xlane.xlu0 %365
      %v367 = vsel %vm322, %v281, 0.0
      %v368 = vadd.f32 %v280, %v367
      %369 = vadd.xlane.f32.xlu0 %v368
      %v370 = vpop.xlane.xlu0 %369
      %v371 = vsel %vm322, %v283, 0.0
      %v372 = vadd.f32 %v282, %v371
      %373 = vadd.xlane.f32.xlu0 %v372
      %v374 = vpop.xlane.xlu0 %373
      %v375 = vsel %vm322, %v285, 0.0
      %v376 = vadd.f32 %v284, %v375
      %377 = vadd.xlane.f32.xlu0 %v376
      %v378 = vpop.xlane.xlu0 %377
      %v379 = vsel %vm322, %v287, 0.0
      %v380 = vadd.f32 %v286, %v379
      %381 = vadd.xlane.f32.xlu0 %v380
      %v382 = vpop.xlane.xlu0 %381
      %v383 = vsel %vm322, %v289, 0.0
      %v384 = vadd.f32 %v288, %v383
      %385 = vadd.xlane.f32.xlu0 %v384
      %v386 = vpop.xlane.xlu0 %385
      %v387 = vsel %vm322, %v291, 0.0
      %v388 = vadd.f32 %v290, %v387
      %389 = vadd.xlane.f32.xlu0 %v388
      %v390 = vpop.xlane.xlu0 %389
      %v391 = vsel %vm322, %v293, 0.0
      %v392 = vadd.f32 %v292, %v391
      %393 = vadd.xlane.f32.xlu0 %v392
      %v394 = vpop.xlane.xlu0 %393
      %v395 = vsel %vm322, %v295, 0.0
      %v396 = vadd.f32 %v294, %v395
      %397 = vadd.xlane.f32.xlu0 %v396
      %v398 = vpop.xlane.xlu0 %397
      %v399 = vsel %vm322, %v297, 0.0
      %v400 = vadd.f32 %v296, %v399
      %401 = vadd.xlane.f32.xlu0 %v400
      %v402 = vpop.xlane.xlu0 %401
      %v403 = vsel %vm322, %v299, 0.0
      %v404 = vadd.f32 %v298, %v403
      %405 = vadd.xlane.f32.xlu0 %v404
      %v406 = vpop.xlane.xlu0 %405
      %v407 = vsel %vm322, %v301, 0.0
      %v408 = vadd.f32 %v300, %v407
      %409 = vadd.xlane.f32.xlu0 %v408
      %v410 = vpop.xlane.xlu0 %409
      %v411 = vsel %vm322, %v303, 0.0
      %v412 = vadd.f32 %v302, %v411
      %413 = vadd.xlane.f32.xlu0 %v412
      %v414 = vpop.xlane.xlu0 %413
      %v415 = vsel %vm322, %v305, 0.0
      %v416 = vadd.f32 %v304, %v415
      %417 = vadd.xlane.f32.xlu0 %v416
      %v418 = vpop.xlane.xlu0 %417
      %v419 = vsel %vm322, %v307, 0.0
      %v420 = vadd.f32 %v306, %v419
      %421 = vadd.xlane.f32.xlu0 %v420
      %v422 = vpop.xlane.xlu0 %421
      %v423 = vsel %vm322, %v309, 0.0
      %v424 = vadd.f32 %v308, %v423
      %425 = vadd.xlane.f32.xlu0 %v424
      %v426 = vpop.xlane.xlu0 %425
      %v427 = vsel %vm322, %v311, 0.0
      %v428 = vadd.f32 %v310, %v427
      %429 = vadd.xlane.f32.xlu0 %v428
      %v430 = vpop.xlane.xlu0 %429
      %v431 = vsel %vm322, %v313, 0.0
      %v432 = vadd.f32 %v312, %v431
      %433 = vadd.xlane.f32.xlu0 %v432
      %v434 = vpop.xlane.xlu0 %433
      %v435 = vsel %vm322, %v315, 0.0
      %v436 = vadd.f32 %v314, %v435
      %437 = vadd.xlane.f32.xlu0 %v436
      %v438 = vpop.xlane.xlu0 %437
      %v439 = vsel %vm322, %v317, 0.0
      %v440 = vadd.f32 %v316, %v439
      %441 = vadd.xlane.f32.xlu0 %v440
      %v442 = vpop.xlane.xlu0 %441
      %v443 = vsel %vm322, %v319, 0.0
      %v444 = vadd.f32 %v318, %v443
      %445 = vadd.xlane.f32.xlu0 %v444
      %v446 = vpop.xlane.xlu0 %445
      %v447 = vsel %vm322, %v321, 0.0
      %v448 = vadd.f32 %v320, %v447
      %449 = vadd.xlane.f32.xlu0 %v448
      %v450 = vpop.xlane.xlu0 %449
      %v451 = vmul.f32 %v258, %v258
      %v452 = vmul.f32 %v259, %v259
      %v453 = vmul.f32 %v260, %v260
      %v454 = vmul.f32 %v261, %v261
      %v455 = vmul.f32 %v262, %v262
      %v456 = vmul.f32 %v263, %v263
      %v457 = vmul.f32 %v264, %v264
      %v458 = vmul.f32 %v265, %v265
      %v459 = vmul.f32 %v266, %v266
      %v460 = vmul.f32 %v267, %v267
      %v461 = vmul.f32 %v268, %v268
      %v462 = vmul.f32 %v269, %v269
      %v463 = vmul.f32 %v270, %v270
      %v464 = vmul.f32 %v271, %v271
      %v465 = vmul.f32 %v272, %v272
      %v466 = vmul.f32 %v273, %v273
      %v467 = vmul.f32 %v274, %v274
      %v468 = vmul.f32 %v275, %v275
      %v469 = vmul.f32 %v276, %v276
      %v470 = vmul.f32 %v277, %v277
      %v471 = vmul.f32 %v278, %v278
      %v472 = vmul.f32 %v279, %v279
      %v473 = vmul.f32 %v280, %v280
      %v474 = vmul.f32 %v281, %v281
      %v475 = vmul.f32 %v282, %v282
      %v476 = vmul.f32 %v283, %v283
      %v477 = vmul.f32 %v284, %v284
      %v478 = vmul.f32 %v285, %v285
      %v479 = vmul.f32 %v286, %v286
      %v480 = vmul.f32 %v287, %v287
      %v481 = vmul.f32 %v288, %v288
      %v482 = vmul.f32 %v289, %v289
      %v483 = vmul.f32 %v290, %v290
      %v484 = vmul.f32 %v291, %v291
      %v485 = vmul.f32 %v292, %v292
      %v486 = vmul.f32 %v293, %v293
      %v487 = vmul.f32 %v294, %v294
      %v488 = vmul.f32 %v295, %v295
      %v489 = vmul.f32 %v296, %v296
      %v490 = vmul.f32 %v297, %v297
      %v491 = vmul.f32 %v298, %v298
      %v492 = vmul.f32 %v299, %v299
      %v493 = vmul.f32 %v300, %v300
      %v494 = vmul.f32 %v301, %v301
      %v495 = vmul.f32 %v302, %v302
      %v496 = vmul.f32 %v303, %v303
      %v497 = vmul.f32 %v304, %v304
      %v498 = vmul.f32 %v305, %v305
      %v499 = vmul.f32 %v306, %v306
      %v500 = vmul.f32 %v307, %v307
      %v501 = vmul.f32 %v308, %v308
      %v502 = vmul.f32 %v309, %v309
      %v503 = vmul.f32 %v310, %v310
      %v504 = vmul.f32 %v311, %v311
      %v505 = vmul.f32 %v312, %v312
      %v506 = vmul.f32 %v313, %v313
      %v507 = vmul.f32 %v314, %v314
      %v508 = vmul.f32 %v315, %v315
      %v509 = vmul.f32 %v316, %v316
      %v510 = vmul.f32 %v317, %v317
      %v511 = vmul.f32 %v318, %v318
      %v512 = vmul.f32 %v319, %v319
      %v513 = vmul.f32 %v320, %v320
      %v514 = vmul.f32 %v321, %v321
      %v515 = vsel %vm322, %v452, 0.0
      %v516 = vadd.f32 %v451, %v515
      %517 = vadd.xlane.f32.xlu0 %v516
      %v518 = vpop.xlane.xlu0 %517
      %v519 = vsel %vm322, %v454, 0.0
      %v520 = vadd.f32 %v453, %v519
      %521 = vadd.xlane.f32.xlu0 %v520
      %v522 = vpop.xlane.xlu0 %521
      %v523 = vsel %vm322, %v456, 0.0
      %v524 = vadd.f32 %v455, %v523
      %525 = vadd.xlane.f32.xlu0 %v524
      %v526 = vpop.xlane.xlu0 %525
      %v527 = vsel %vm322, %v458, 0.0
      %v528 = vadd.f32 %v457, %v527
      %529 = vadd.xlane.f32.xlu0 %v528
      %v530 = vpop.xlane.xlu0 %529
      %v531 = vsel %vm322, %v460, 0.0
      %v532 = vadd.f32 %v459, %v531
      %533 = vadd.xlane.f32.xlu0 %v532
      %v534 = vpop.xlane.xlu0 %533
      %v535 = vsel %vm322, %v462, 0.0
      %v536 = vadd.f32 %v461, %v535
      %537 = vadd.xlane.f32.xlu0 %v536
      %v538 = vpop.xlane.xlu0 %537
      %v539 = vsel %vm322, %v464, 0.0
      %v540 = vadd.f32 %v463, %v539
      %541 = vadd.xlane.f32.xlu0 %v540
      %v542 = vpop.xlane.xlu0 %541
      %v543 = vsel %vm322, %v466, 0.0
      %v544 = vadd.f32 %v465, %v543
      %545 = vadd.xlane.f32.xlu0 %v544
      %v546 = vpop.xlane.xlu0 %545
      %v547 = vsel %vm322, %v468, 0.0
      %v548 = vadd.f32 %v467, %v547
      %549 = vadd.xlane.f32.xlu0 %v548
      %v550 = vpop.xlane.xlu0 %549
      %v551 = vsel %vm322, %v470, 0.0
      %v552 = vadd.f32 %v469, %v551
      %553 = vadd.xlane.f32.xlu0 %v552
      %v554 = vpop.xlane.xlu0 %553
      %v555 = vsel %vm322, %v472, 0.0
      %v556 = vadd.f32 %v471, %v555
      %557 = vadd.xlane.f32.xlu0 %v556
      %v558 = vpop.xlane.xlu0 %557
      %v559 = vsel %vm322, %v474, 0.0
      %v560 = vadd.f32 %v473, %v559
      %561 = vadd.xlane.f32.xlu0 %v560
      %v562 = vpop.xlane.xlu0 %561
      %v563 = vsel %vm322, %v476, 0.0
      %v564 = vadd.f32 %v475, %v563
      %565 = vadd.xlane.f32.xlu0 %v564
      %v566 = vpop.xlane.xlu0 %565
      %v567 = vsel %vm322, %v478, 0.0
      %v568 = vadd.f32 %v477, %v567
      %569 = vadd.xlane.f32.xlu0 %v568
      %v570 = vpop.xlane.xlu0 %569
      %v571 = vsel %vm322, %v480, 0.0
      %v572 = vadd.f32 %v479, %v571
      %573 = vadd.xlane.f32.xlu0 %v572
      %v574 = vpop.xlane.xlu0 %573
      %v575 = vsel %vm322, %v482, 0.0
      %v576 = vadd.f32 %v481, %v575
      %577 = vadd.xlane.f32.xlu0 %v576
      %v578 = vpop.xlane.xlu0 %577
      %v579 = vsel %vm322, %v484, 0.0
      %v580 = vadd.f32 %v483, %v579
      %581 = vadd.xlane.f32.xlu0 %v580
      %v582 = vpop.xlane.xlu0 %581
      %v583 = vsel %vm322, %v486, 0.0
      %v584 = vadd.f32 %v485, %v583
      %585 = vadd.xlane.f32.xlu0 %v584
      %v586 = vpop.xlane.xlu0 %585
      %v587 = vsel %vm322, %v488, 0.0
      %v588 = vadd.f32 %v487, %v587
      %589 = vadd.xlane.f32.xlu0 %v588
      %v590 = vpop.xlane.xlu0 %589
      %v591 = vsel %vm322, %v490, 0.0
      %v592 = vadd.f32 %v489, %v591
      %593 = vadd.xlane.f32.xlu0 %v592
      %v594 = vpop.xlane.xlu0 %593
      %v595 = vsel %vm322, %v492, 0.0
      %v596 = vadd.f32 %v491, %v595
      %597 = vadd.xlane.f32.xlu0 %v596
      %v598 = vpop.xlane.xlu0 %597
      %v599 = vsel %vm322, %v494, 0.0
      %v600 = vadd.f32 %v493, %v599
      %601 = vadd.xlane.f32.xlu0 %v600
      %v602 = vpop.xlane.xlu0 %601
      %v603 = vsel %vm322, %v496, 0.0
      %v604 = vadd.f32 %v495, %v603
      %605 = vadd.xlane.f32.xlu0 %v604
      %v606 = vpop.xlane.xlu0 %605
      %v607 = vsel %vm322, %v498, 0.0
      %v608 = vadd.f32 %v497, %v607
      %609 = vadd.xlane.f32.xlu0 %v608
      %v610 = vpop.xlane.xlu0 %609
      %v611 = vsel %vm322, %v500, 0.0
      %v612 = vadd.f32 %v499, %v611
      %613 = vadd.xlane.f32.xlu0 %v612
      %v614 = vpop.xlane.xlu0 %613
      %v615 = vsel %vm322, %v502, 0.0
      %v616 = vadd.f32 %v501, %v615
      %617 = vadd.xlane.f32.xlu0 %v616
      %v618 = vpop.xlane.xlu0 %617
      %v619 = vsel %vm322, %v504, 0.0
      %v620 = vadd.f32 %v503, %v619
      %621 = vadd.xlane.f32.xlu0 %v620
      %v622 = vpop.xlane.xlu0 %621
      %v623 = vsel %vm322, %v506, 0.0
      %v624 = vadd.f32 %v505, %v623
      %625 = vadd.xlane.f32.xlu0 %v624
      %v626 = vpop.xlane.xlu0 %625
      %v627 = vsel %vm322, %v508, 0.0
      %v628 = vadd.f32 %v507, %v627
      %629 = vadd.xlane.f32.xlu0 %v628
      %v630 = vpop.xlane.xlu0 %629
      %v631 = vsel %vm322, %v510, 0.0
      %v632 = vadd.f32 %v509, %v631
      %633 = vadd.xlane.f32.xlu0 %v632
      %v634 = vpop.xlane.xlu0 %633
      %v635 = vsel %vm322, %v512, 0.0
      %v636 = vadd.f32 %v511, %v635
      %637 = vadd.xlane.f32.xlu0 %v636
      %v638 = vpop.xlane.xlu0 %637
      %v639 = vsel %vm322, %v514, 0.0
      %v640 = vadd.f32 %v513, %v639
      %641 = vadd.xlane.f32.xlu0 %v640
      %v642 = vpop.xlane.xlu0 %641
      %v643 = vmul.f32 %v326, 0.0051020407
      %v644 = vmul.f32 %v330, 0.0051020407
      %v645 = vmul.f32 %v334, 0.0051020407
      %v646 = vmul.f32 %v338, 0.0051020407
      %v647 = vmul.f32 %v342, 0.0051020407
      %v648 = vmul.f32 %v346, 0.0051020407
      %v649 = vmul.f32 %v350, 0.0051020407
      %v650 = vmul.f32 %v354, 0.0051020407
      %v651 = vmul.f32 %v358, 0.0051020407
      %v652 = vmul.f32 %v362, 0.0051020407
      %v653 = vmul.f32 %v366, 0.0051020407
      %v654 = vmul.f32 %v370, 0.0051020407
      %v655 = vmul.f32 %v374, 0.0051020407
      %v656 = vmul.f32 %v378, 0.0051020407
      %v657 = vmul.f32 %v382, 0.0051020407
      %v658 = vmul.f32 %v386, 0.0051020407
      %v659 = vmul.f32 %v390, 0.0051020407
      %v660 = vmul.f32 %v394, 0.0051020407
      %v661 = vmul.f32 %v398, 0.0051020407
      %v662 = vmul.f32 %v402, 0.0051020407
      %v663 = vmul.f32 %v406, 0.0051020407
      %v664 = vmul.f32 %v410, 0.0051020407
      %v665 = vmul.f32 %v414, 0.0051020407
      %v666 = vmul.f32 %v418, 0.0051020407
      %v667 = vmul.f32 %v422, 0.0051020407
      %v668 = vmul.f32 %v426, 0.0051020407
      %v669 = vmul.f32 %v430, 0.0051020407
      %v670 = vmul.f32 %v434, 0.0051020407
      %v671 = vmul.f32 %v438, 0.0051020407
      %v672 = vmul.f32 %v442, 0.0051020407
      %v673 = vmul.f32 %v446, 0.0051020407
      %v674 = vmul.f32 %v450, 0.0051020407
      %v675 = vmul.f32 %v518, 0.0051020407
      %v676 = vmul.f32 %v522, 0.0051020407
      %v677 = vmul.f32 %v526, 0.0051020407
      %v678 = vmul.f32 %v530, 0.0051020407
      %v679 = vmul.f32 %v534, 0.0051020407
      %v680 = vmul.f32 %v538, 0.0051020407
      %v681 = vmul.f32 %v542, 0.0051020407
      %v682 = vmul.f32 %v546, 0.0051020407
      %v683 = vmul.f32 %v550, 0.0051020407
      %v684 = vmul.f32 %v554, 0.0051020407
      %v685 = vmul.f32 %v558, 0.0051020407
      %v686 = vmul.f32 %v562, 0.0051020407
      %v687 = vmul.f32 %v566, 0.0051020407
      %v688 = vmul.f32 %v570, 0.0051020407
      %v689 = vmul.f32 %v574, 0.0051020407
      %v690 = vmul.f32 %v578, 0.0051020407
      %v691 = vmul.f32 %v582, 0.0051020407
      %v692 = vmul.f32 %v586, 0.0051020407
      %v693 = vmul.f32 %v590, 0.0051020407
      %v694 = vmul.f32 %v594, 0.0051020407
      %v695 = vmul.f32 %v598, 0.0051020407
      %v696 = vmul.f32 %v602, 0.0051020407
      %v697 = vmul.f32 %v606, 0.0051020407
      %v698 = vmul.f32 %v610, 0.0051020407
      %v699 = vmul.f32 %v614, 0.0051020407
      %v700 = vmul.f32 %v618, 0.0051020407
      %v701 = vmul.f32 %v622, 0.0051020407
      %v702 = vmul.f32 %v626, 0.0051020407
      %v703 = vmul.f32 %v630, 0.0051020407
      %v704 = vmul.f32 %v634, 0.0051020407
      %v705 = vmul.f32 %v638, 0.0051020407
      %v706 = vmul.f32 %v642, 0.0051020407
      %v707 = vmul.f32 %v643, %v643
      %v708 = vmul.f32 %v644, %v644
      %v709 = vmul.f32 %v645, %v645
      %v710 = vmul.f32 %v646, %v646
      %v711 = vmul.f32 %v647, %v647
      %v712 = vmul.f32 %v648, %v648
      %v713 = vmul.f32 %v649, %v649
      %v714 = vmul.f32 %v650, %v650
      %v715 = vmul.f32 %v651, %v651
      %v716 = vmul.f32 %v652, %v652
      %v717 = vmul.f32 %v653, %v653
      %v718 = vmul.f32 %v654, %v654
      %v719 = vmul.f32 %v655, %v655
      %v720 = vmul.f32 %v656, %v656
      %v721 = vmul.f32 %v657, %v657
      %v722 = vmul.f32 %v658, %v658
      %v723 = vmul.f32 %v659, %v659
      %v724 = vmul.f32 %v660, %v660
      %v725 = vmul.f32 %v661, %v661
      %v726 = vmul.f32 %v662, %v662
      %v727 = vmul.f32 %v663, %v663
      %v728 = vmul.f32 %v664, %v664
      %v729 = vmul.f32 %v665, %v665
      %v730 = vmul.f32 %v666, %v666
      %v731 = vmul.f32 %v667, %v667
      %v732 = vmul.f32 %v668, %v668
      %v733 = vmul.f32 %v669, %v669
      %v734 = vmul.f32 %v670, %v670
      %v735 = vmul.f32 %v671, %v671
      %v736 = vmul.f32 %v672, %v672
      %v737 = vmul.f32 %v673, %v673
      %v738 = vmul.f32 %v674, %v674
      %v739 = vsub.f32 %v675, %v707
      %v740 = vsub.f32 %v676, %v708
      %v741 = vsub.f32 %v677, %v709
      %v742 = vsub.f32 %v678, %v710
      %v743 = vsub.f32 %v679, %v711
      %v744 = vsub.f32 %v680, %v712
      %v745 = vsub.f32 %v681, %v713
      %v746 = vsub.f32 %v682, %v714
      %v747 = vsub.f32 %v683, %v715
      %v748 = vsub.f32 %v684, %v716
      %v749 = vsub.f32 %v685, %v717
      %v750 = vsub.f32 %v686, %v718
      %v751 = vsub.f32 %v687, %v719
      %v752 = vsub.f32 %v688, %v720
      %v753 = vsub.f32 %v689, %v721
      %v754 = vsub.f32 %v690, %v722
      %v755 = vsub.f32 %v691, %v723
      %v756 = vsub.f32 %v692, %v724
      %v757 = vsub.f32 %v693, %v725
      %v758 = vsub.f32 %v694, %v726
      %v759 = vsub.f32 %v695, %v727
      %v760 = vsub.f32 %v696, %v728
      %v761 = vsub.f32 %v697, %v729
      %v762 = vsub.f32 %v698, %v730
      %v763 = vsub.f32 %v699, %v731
      %v764 = vsub.f32 %v700, %v732
      %v765 = vsub.f32 %v701, %v733
      %v766 = vsub.f32 %v702, %v734
      %v767 = vsub.f32 %v703, %v735
      %v768 = vsub.f32 %v704, %v736
      %v769 = vsub.f32 %v705, %v737
      %v770 = vsub.f32 %v706, %v738
      %v771 = vadd.f32 %v739, 1e-05
      %v772 = vadd.f32 %v740, 1e-05
      %v773 = vadd.f32 %v741, 1e-05
      %v774 = vadd.f32 %v742, 1e-05
      %v775 = vadd.f32 %v743, 1e-05
      %v776 = vadd.f32 %v744, 1e-05
      %v777 = vadd.f32 %v745, 1e-05
      %v778 = vadd.f32 %v746, 1e-05
      %v779 = vadd.f32 %v747, 1e-05
      %v780 = vadd.f32 %v748, 1e-05
      %v781 = vadd.f32 %v749, 1e-05
      %v782 = vadd.f32 %v750, 1e-05
      %v783 = vadd.f32 %v751, 1e-05
      %v784 = vadd.f32 %v752, 1e-05
      %v785 = vadd.f32 %v753, 1e-05
      %v786 = vadd.f32 %v754, 1e-05
      %v787 = vadd.f32 %v755, 1e-05
      %v788 = vadd.f32 %v756, 1e-05
      %v789 = vadd.f32 %v757, 1e-05
      %v790 = vadd.f32 %v758, 1e-05
      %v791 = vadd.f32 %v759, 1e-05
      %v792 = vadd.f32 %v760, 1e-05
      %v793 = vadd.f32 %v761, 1e-05
      %v794 = vadd.f32 %v762, 1e-05
      %v795 = vadd.f32 %v763, 1e-05
      %v796 = vadd.f32 %v764, 1e-05
      %v797 = vadd.f32 %v765, 1e-05
      %v798 = vadd.f32 %v766, 1e-05
      %v799 = vadd.f32 %v767, 1e-05
      %v800 = vadd.f32 %v768, 1e-05
      %v801 = vadd.f32 %v769, 1e-05
      %v802 = vadd.f32 %v770, 1e-05
      %v803 = vrsqrt.pop %v771
      %v804 = vmul.f32 %v803, %v771
      %v805 = vmul.f32 %v804, %v803
      %v806 = vmul.f32 0.5, %v805
      %v807 = vsub.f32 1.5, %v806
      %v808 = vmul.f32 %v803, %v807
      %vm809 = vweird.f32 %v771
      %vm810 = vweird.f32 %v803
      %vm811 = vmor %vm809, %vm810
      %v812 = vsel %vm811, %v803, %v808
      %v813 = vrsqrt.pop %v772
      %v814 = vmul.f32 %v813, %v772
      %v815 = vmul.f32 %v814, %v813
      %v816 = vmul.f32 0.5, %v815
      %v817 = vsub.f32 1.5, %v816
      %v818 = vmul.f32 %v813, %v817
      %vm819 = vweird.f32 %v772
      %vm820 = vweird.f32 %v813
      %vm821 = vmor %vm819, %vm820
      %v822 = vsel %vm821, %v813, %v818
      %v823 = vrsqrt.pop %v773
      %v824 = vmul.f32 %v823, %v773
      %v825 = vmul.f32 %v824, %v823
      %v826 = vmul.f32 0.5, %v825
      %v827 = vsub.f32 1.5, %v826
      %v828 = vmul.f32 %v823, %v827
      %vm829 = vweird.f32 %v773
      %vm830 = vweird.f32 %v823
      %vm831 = vmor %vm829, %vm830
      %v832 = vsel %vm831, %v823, %v828
      %v833 = vrsqrt.pop %v774
      %v834 = vmul.f32 %v833, %v774
      %v835 = vmul.f32 %v834, %v833
      %v836 = vmul.f32 0.5, %v835
      %v837 = vsub.f32 1.5, %v836
      %v838 = vmul.f32 %v833, %v837
      %vm839 = vweird.f32 %v774
      %vm840 = vweird.f32 %v833
      %vm841 = vmor %vm839, %vm840
      %v842 = vsel %vm841, %v833, %v838
      %v843 = vrsqrt.pop %v775
      %v844 = vmul.f32 %v843, %v775
      %v845 = vmul.f32 %v844, %v843
      %v846 = vmul.f32 0.5, %v845
      %v847 = vsub.f32 1.5, %v846
      %v848 = vmul.f32 %v843, %v847
      %vm849 = vweird.f32 %v775
      %vm850 = vweird.f32 %v843
      %vm851 = vmor %vm849, %vm850
      %v852 = vsel %vm851, %v843, %v848
      %v853 = vrsqrt.pop %v776
      %v854 = vmul.f32 %v853, %v776
      %v855 = vmul.f32 %v854, %v853
      %v856 = vmul.f32 0.5, %v855
      %v857 = vsub.f32 1.5, %v856
      %v858 = vmul.f32 %v853, %v857
      %vm859 = vweird.f32 %v776
      %vm860 = vweird.f32 %v853
      %vm861 = vmor %vm859, %vm860
      %v862 = vsel %vm861, %v853, %v858
      %v863 = vrsqrt.pop %v777
      %v864 = vmul.f32 %v863, %v777
      %v865 = vmul.f32 %v864, %v863
      %v866 = vmul.f32 0.5, %v865
      %v867 = vsub.f32 1.5, %v866
      %v868 = vmul.f32 %v863, %v867
      %vm869 = vweird.f32 %v777
      %vm870 = vweird.f32 %v863
      %vm871 = vmor %vm869, %vm870
      %v872 = vsel %vm871, %v863, %v868
      %v873 = vrsqrt.pop %v778
      %v874 = vmul.f32 %v873, %v778
      %v875 = vmul.f32 %v874, %v873
      %v876 = vmul.f32 0.5, %v875
      %v877 = vsub.f32 1.5, %v876
      %v878 = vmul.f32 %v873, %v877
      %vm879 = vweird.f32 %v778
      %vm880 = vweird.f32 %v873
      %vm881 = vmor %vm879, %vm880
      %v882 = vsel %vm881, %v873, %v878
      %v883 = vrsqrt.pop %v779
      %v884 = vmul.f32 %v883, %v779
      %v885 = vmul.f32 %v884, %v883
      %v886 = vmul.f32 0.5, %v885
      %v887 = vsub.f32 1.5, %v886
      %v888 = vmul.f32 %v883, %v887
      %vm889 = vweird.f32 %v779
      %vm890 = vweird.f32 %v883
      %vm891 = vmor %vm889, %vm890
      %v892 = vsel %vm891, %v883, %v888
      %v893 = vrsqrt.pop %v780
      %v894 = vmul.f32 %v893, %v780
      %v895 = vmul.f32 %v894, %v893
      %v896 = vmul.f32 0.5, %v895
      %v897 = vsub.f32 1.5, %v896
      %v898 = vmul.f32 %v893, %v897
      %vm899 = vweird.f32 %v780
      %vm900 = vweird.f32 %v893
      %vm901 = vmor %vm899, %vm900
      %v902 = vsel %vm901, %v893, %v898
      %v903 = vrsqrt.pop %v781
      %v904 = vmul.f32 %v903, %v781
      %v905 = vmul.f32 %v904, %v903
      %v906 = vmul.f32 0.5, %v905
      %v907 = vsub.f32 1.5, %v906
      %v908 = vmul.f32 %v903, %v907
      %vm909 = vweird.f32 %v781
      %vm910 = vweird.f32 %v903
      %vm911 = vmor %vm909, %vm910
      %v912 = vsel %vm911, %v903, %v908
      %v913 = vrsqrt.pop %v782
      %v914 = vmul.f32 %v913, %v782
      %v915 = vmul.f32 %v914, %v913
      %v916 = vmul.f32 0.5, %v915
      %v917 = vsub.f32 1.5, %v916
      %v918 = vmul.f32 %v913, %v917
      %vm919 = vweird.f32 %v782
      %vm920 = vweird.f32 %v913
      %vm921 = vmor %vm919, %vm920
      %v922 = vsel %vm921, %v913, %v918
      %v923 = vrsqrt.pop %v783
      %v924 = vmul.f32 %v923, %v783
      %v925 = vmul.f32 %v924, %v923
      %v926 = vmul.f32 0.5, %v925
      %v927 = vsub.f32 1.5, %v926
      %v928 = vmul.f32 %v923, %v927
      %vm929 = vweird.f32 %v783
      %vm930 = vweird.f32 %v923
      %vm931 = vmor %vm929, %vm930
      %v932 = vsel %vm931, %v923, %v928
      %v933 = vrsqrt.pop %v784
      %v934 = vmul.f32 %v933, %v784
      %v935 = vmul.f32 %v934, %v933
      %v936 = vmul.f32 0.5, %v935
      %v937 = vsub.f32 1.5, %v936
      %v938 = vmul.f32 %v933, %v937
      %vm939 = vweird.f32 %v784
      %vm940 = vweird.f32 %v933
      %vm941 = vmor %vm939, %vm940
      %v942 = vsel %vm941, %v933, %v938
      %v943 = vrsqrt.pop %v785
      %v944 = vmul.f32 %v943, %v785
      %v945 = vmul.f32 %v944, %v943
      %v946 = vmul.f32 0.5, %v945
      %v947 = vsub.f32 1.5, %v946
      %v948 = vmul.f32 %v943, %v947
      %vm949 = vweird.f32 %v785
      %vm950 = vweird.f32 %v943
      %vm951 = vmor %vm949, %vm950
      %v952 = vsel %vm951, %v943, %v948
      %v953 = vrsqrt.pop %v786
      %v954 = vmul.f32 %v953, %v786
      %v955 = vmul.f32 %v954, %v953
      %v956 = vmul.f32 0.5, %v955
      %v957 = vsub.f32 1.5, %v956
      %v958 = vmul.f32 %v953, %v957
      %vm959 = vweird.f32 %v786
      %vm960 = vweird.f32 %v953
      %vm961 = vmor %vm959, %vm960
      %v962 = vsel %vm961, %v953, %v958
      %v963 = vrsqrt.pop %v787
      %v964 = vmul.f32 %v963, %v787
      %v965 = vmul.f32 %v964, %v963
      %v966 = vmul.f32 0.5, %v965
      %v967 = vsub.f32 1.5, %v966
      %v968 = vmul.f32 %v963, %v967
      %vm969 = vweird.f32 %v787
      %vm970 = vweird.f32 %v963
      %vm971 = vmor %vm969, %vm970
      %v972 = vsel %vm971, %v963, %v968
      %v973 = vrsqrt.pop %v788
      %v974 = vmul.f32 %v973, %v788
      %v975 = vmul.f32 %v974, %v973
      %v976 = vmul.f32 0.5, %v975
      %v977 = vsub.f32 1.5, %v976
      %v978 = vmul.f32 %v973, %v977
      %vm979 = vweird.f32 %v788
      %vm980 = vweird.f32 %v973
      %vm981 = vmor %vm979, %vm980
      %v982 = vsel %vm981, %v973, %v978
      %v983 = vrsqrt.pop %v789
      %v984 = vmul.f32 %v983, %v789
      %v985 = vmul.f32 %v984, %v983
      %v986 = vmul.f32 0.5, %v985
      %v987 = vsub.f32 1.5, %v986
      %v988 = vmul.f32 %v983, %v987
      %vm989 = vweird.f32 %v789
      %vm990 = vweird.f32 %v983
      %vm991 = vmor %vm989, %vm990
      %v992 = vsel %vm991, %v983, %v988
      %v993 = vrsqrt.pop %v790
      %v994 = vmul.f32 %v993, %v790
      %v995 = vmul.f32 %v994, %v993
      %v996 = vmul.f32 0.5, %v995
      %v997 = vsub.f32 1.5, %v996
      %v998 = vmul.f32 %v993, %v997
      %vm999 = vweird.f32 %v790
      %vm1000 = vweird.f32 %v993
      %vm1001 = vmor %vm999, %vm1000
      %v1002 = vsel %vm1001, %v993, %v998
      %v1003 = vrsqrt.pop %v791
      %v1004 = vmul.f32 %v1003, %v791
      %v1005 = vmul.f32 %v1004, %v1003
      %v1006 = vmul.f32 0.5, %v1005
      %v1007 = vsub.f32 1.5, %v1006
      %v1008 = vmul.f32 %v1003, %v1007
      %vm1009 = vweird.f32 %v791
      %vm1010 = vweird.f32 %v1003
      %vm1011 = vmor %vm1009, %vm1010
      %v1012 = vsel %vm1011, %v1003, %v1008
      %v1013 = vrsqrt.pop %v792
      %v1014 = vmul.f32 %v1013, %v792
      %v1015 = vmul.f32 %v1014, %v1013
      %v1016 = vmul.f32 0.5, %v1015
      %v1017 = vsub.f32 1.5, %v1016
      %v1018 = vmul.f32 %v1013, %v1017
      %vm1019 = vweird.f32 %v792
      %vm1020 = vweird.f32 %v1013
      %vm1021 = vmor %vm1019, %vm1020
      %v1022 = vsel %vm1021, %v1013, %v1018
      %v1023 = vrsqrt.pop %v793
      %v1024 = vmul.f32 %v1023, %v793
      %v1025 = vmul.f32 %v1024, %v1023
      %v1026 = vmul.f32 0.5, %v1025
      %v1027 = vsub.f32 1.5, %v1026
      %v1028 = vmul.f32 %v1023, %v1027
      %vm1029 = vweird.f32 %v793
      %vm1030 = vweird.f32 %v1023
      %vm1031 = vmor %vm1029, %vm1030
      %v1032 = vsel %vm1031, %v1023, %v1028
      %v1033 = vrsqrt.pop %v794
      %v1034 = vmul.f32 %v1033, %v794
      %v1035 = vmul.f32 %v1034, %v1033
      %v1036 = vmul.f32 0.5, %v1035
      %v1037 = vsub.f32 1.5, %v1036
      %v1038 = vmul.f32 %v1033, %v1037
      %vm1039 = vweird.f32 %v794
      %vm1040 = vweird.f32 %v1033
      %vm1041 = vmor %vm1039, %vm1040
      %v1042 = vsel %vm1041, %v1033, %v1038
      %v1043 = vrsqrt.pop %v795
      %v1044 = vmul.f32 %v1043, %v795
      %v1045 = vmul.f32 %v1044, %v1043
      %v1046 = vmul.f32 0.5, %v1045
      %v1047 = vsub.f32 1.5, %v1046
      %v1048 = vmul.f32 %v1043, %v1047
      %vm1049 = vweird.f32 %v795
      %vm1050 = vweird.f32 %v1043
      %vm1051 = vmor %vm1049, %vm1050
      %v1052 = vsel %vm1051, %v1043, %v1048
      %v1053 = vrsqrt.pop %v796
      %v1054 = vmul.f32 %v1053, %v796
      %v1055 = vmul.f32 %v1054, %v1053
      %v1056 = vmul.f32 0.5, %v1055
      %v1057 = vsub.f32 1.5, %v1056
      %v1058 = vmul.f32 %v1053, %v1057
      %vm1059 = vweird.f32 %v796
      %vm1060 = vweird.f32 %v1053
      %vm1061 = vmor %vm1059, %vm1060
      %v1062 = vsel %vm1061, %v1053, %v1058
      %v1063 = vrsqrt.pop %v797
      %v1064 = vmul.f32 %v1063, %v797
      %v1065 = vmul.f32 %v1064, %v1063
      %v1066 = vmul.f32 0.5, %v1065
      %v1067 = vsub.f32 1.5, %v1066
      %v1068 = vmul.f32 %v1063, %v1067
      %vm1069 = vweird.f32 %v797
      %vm1070 = vweird.f32 %v1063
      %vm1071 = vmor %vm1069, %vm1070
      %v1072 = vsel %vm1071, %v1063, %v1068
      %v1073 = vrsqrt.pop %v798
      %v1074 = vmul.f32 %v1073, %v798
      %v1075 = vmul.f32 %v1074, %v1073
      %v1076 = vmul.f32 0.5, %v1075
      %v1077 = vsub.f32 1.5, %v1076
      %v1078 = vmul.f32 %v1073, %v1077
      %vm1079 = vweird.f32 %v798
      %vm1080 = vweird.f32 %v1073
      %vm1081 = vmor %vm1079, %vm1080
      %v1082 = vsel %vm1081, %v1073, %v1078
      %v1083 = vrsqrt.pop %v799
      %v1084 = vmul.f32 %v1083, %v799
      %v1085 = vmul.f32 %v1084, %v1083
      %v1086 = vmul.f32 0.5, %v1085
      %v1087 = vsub.f32 1.5, %v1086
      %v1088 = vmul.f32 %v1083, %v1087
      %vm1089 = vweird.f32 %v799
      %vm1090 = vweird.f32 %v1083
      %vm1091 = vmor %vm1089, %vm1090
      %v1092 = vsel %vm1091, %v1083, %v1088
      %v1093 = vrsqrt.pop %v800
      %v1094 = vmul.f32 %v1093, %v800
      %v1095 = vmul.f32 %v1094, %v1093
      %v1096 = vmul.f32 0.5, %v1095
      %v1097 = vsub.f32 1.5, %v1096
      %v1098 = vmul.f32 %v1093, %v1097
      %vm1099 = vweird.f32 %v800
      %vm1100 = vweird.f32 %v1093
      %vm1101 = vmor %vm1099, %vm1100
      %v1102 = vsel %vm1101, %v1093, %v1098
      %v1103 = vrsqrt.pop %v801
      %v1104 = vmul.f32 %v1103, %v801
      %v1105 = vmul.f32 %v1104, %v1103
      %v1106 = vmul.f32 0.5, %v1105
      %v1107 = vsub.f32 1.5, %v1106
      %v1108 = vmul.f32 %v1103, %v1107
      %vm1109 = vweird.f32 %v801
      %vm1110 = vweird.f32 %v1103
      %vm1111 = vmor %vm1109, %vm1110
      %v1112 = vsel %vm1111, %v1103, %v1108
      %v1113 = vrsqrt.pop %v802
      %v1114 = vmul.f32 %v1113, %v802
      %v1115 = vmul.f32 %v1114, %v1113
      %v1116 = vmul.f32 0.5, %v1115
      %v1117 = vsub.f32 1.5, %v1116
      %v1118 = vmul.f32 %v1113, %v1117
      %vm1119 = vweird.f32 %v802
      %vm1120 = vweird.f32 %v1113
      %vm1121 = vmor %vm1119, %vm1120
      %v1122 = vsel %vm1121, %v1113, %v1118
      %v1123 = vld [vmem:[%s1] sm:$0xff]
      %v1124 = vld [vmem:[%s1 + $0x8] sm:$0xff]
      %v1125 = vld [vmem:[%s1 + $0x10] sm:$0xff]
      %v1126 = vld [vmem:[%s1 + $0x18] sm:$0xff]
      %v1127 = vld [vmem:[%s1 + $0x20] sm:$0xff]
      %v1128 = vld [vmem:[%s1 + $0x28] sm:$0xff]
      %v1129 = vld [vmem:[%s1 + $0x30] sm:$0xff]
      %v1130 = vld [vmem:[%s1 + $0x38] sm:$0xff]
      %v1131 = vld [vmem:[%s1 + $0x40] sm:$0xff]
      %v1132 = vld [vmem:[%s1 + $0x48] sm:$0xff]
      %v1133 = vld [vmem:[%s1 + $0x50] sm:$0xff]
      %v1134 = vld [vmem:[%s1 + $0x58] sm:$0xff]
      %v1135 = vld [vmem:[%s1 + $0x60] sm:$0xff]
      %v1136 = vld [vmem:[%s1 + $0x68] sm:$0xff]
      %v1137 = vld [vmem:[%s1 + $0x70] sm:$0xff]
      %v1138 = vld [vmem:[%s1 + $0x78] sm:$0xff]
      %v1139 = vld [vmem:[%s1 + $0x80] sm:$0xff]
      %v1140 = vld [vmem:[%s1 + $0x88] sm:$0xff]
      %v1141 = vld [vmem:[%s1 + $0x90] sm:$0xff]
      %v1142 = vld [vmem:[%s1 + $0x98] sm:$0xff]
      %v1143 = vld [vmem:[%s1 + $0xa0] sm:$0xff]
      %v1144 = vld [vmem:[%s1 + $0xa8] sm:$0xff]
      %v1145 = vld [vmem:[%s1 + $0xb0] sm:$0xff]
      %v1146 = vld [vmem:[%s1 + $0xb8] sm:$0xff]
      %v1147 = vld [vmem:[%s1 + $0xc0] sm:$0xff]
      %v1148 = vld [vmem:[%s1 + $0xc8] sm:$0xff]
      %v1149 = vld [vmem:[%s1 + $0xd0] sm:$0xff]
      %v1150 = vld [vmem:[%s1 + $0xd8] sm:$0xff]
      %v1151 = vld [vmem:[%s1 + $0xe0] sm:$0xff]
      %v1152 = vld [vmem:[%s1 + $0xe8] sm:$0xff]
      %v1153 = vld [vmem:[%s1 + $0xf0] sm:$0xff]
      %v1154 = vld [vmem:[%s1 + $0xf8] sm:$0xff]
      %v1155 = vmul.f32 %v1123, %v812
      %v1156 = vmul.f32 %v1124, %v822
      %v1157 = vmul.f32 %v1125, %v832
      %v1158 = vmul.f32 %v1126, %v842
      %v1159 = vmul.f32 %v1127, %v852
      %v1160 = vmul.f32 %v1128, %v862
      %v1161 = vmul.f32 %v1129, %v872
      %v1162 = vmul.f32 %v1130, %v882
      %v1163 = vmul.f32 %v1131, %v892
      %v1164 = vmul.f32 %v1132, %v902
      %v1165 = vmul.f32 %v1133, %v912
      %v1166 = vmul.f32 %v1134, %v922
      %v1167 = vmul.f32 %v1135, %v932
      %v1168 = vmul.f32 %v1136, %v942
      %v1169 = vmul.f32 %v1137, %v952
      %v1170 = vmul.f32 %v1138, %v962
      %v1171 = vmul.f32 %v1139, %v972
      %v1172 = vmul.f32 %v1140, %v982
      %v1173 = vmul.f32 %v1141, %v992
      %v1174 = vmul.f32 %v1142, %v1002
      %v1175 = vmul.f32 %v1143, %v1012
      %v1176 = vmul.f32 %v1144, %v1022
      %v1177 = vmul.f32 %v1145, %v1032
      %v1178 = vmul.f32 %v1146, %v1042
      %v1179 = vmul.f32 %v1147, %v1052
      %v1180 = vmul.f32 %v1148, %v1062
      %v1181 = vmul.f32 %v1149, %v1072
      %v1182 = vmul.f32 %v1150, %v1082
      %v1183 = vmul.f32 %v1151, %v1092
      %v1184 = vmul.f32 %v1152, %v1102
      %v1185 = vmul.f32 %v1153, %v1112
      %v1186 = vmul.f32 %v1154, %v1122
      %v1187 = vld [vmem:[%s2] sm:$0xff]
      %v1188 = vld [vmem:[%s2 + $0x8] sm:$0xff]
      %v1189 = vld [vmem:[%s2 + $0x10] sm:$0xff]
      %v1190 = vld [vmem:[%s2 + $0x18] sm:$0xff]
      %v1191 = vld [vmem:[%s2 + $0x20] sm:$0xff]
      %v1192 = vld [vmem:[%s2 + $0x28] sm:$0xff]
      %v1193 = vld [vmem:[%s2 + $0x30] sm:$0xff]
      %v1194 = vld [vmem:[%s2 + $0x38] sm:$0xff]
      %v1195 = vld [vmem:[%s2 + $0x40] sm:$0xff]
      %v1196 = vld [vmem:[%s2 + $0x48] sm:$0xff]
      %v1197 = vld [vmem:[%s2 + $0x50] sm:$0xff]
      %v1198 = vld [vmem:[%s2 + $0x58] sm:$0xff]
      %v1199 = vld [vmem:[%s2 + $0x60] sm:$0xff]
      %v1200 = vld [vmem:[%s2 + $0x68] sm:$0xff]
      %v1201 = vld [vmem:[%s2 + $0x70] sm:$0xff]
      %v1202 = vld [vmem:[%s2 + $0x78] sm:$0xff]
      %v1203 = vld [vmem:[%s2 + $0x80] sm:$0xff]
      %v1204 = vld [vmem:[%s2 + $0x88] sm:$0xff]
      %v1205 = vld [vmem:[%s2 + $0x90] sm:$0xff]
      %v1206 = vld [vmem:[%s2 + $0x98] sm:$0xff]
      %v1207 = vld [vmem:[%s2 + $0xa0] sm:$0xff]
      %v1208 = vld [vmem:[%s2 + $0xa8] sm:$0xff]
      %v1209 = vld [vmem:[%s2 + $0xb0] sm:$0xff]
      %v1210 = vld [vmem:[%s2 + $0xb8] sm:$0xff]
      %v1211 = vld [vmem:[%s2 + $0xc0] sm:$0xff]
      %v1212 = vld [vmem:[%s2 + $0xc8] sm:$0xff]
      %v1213 = vld [vmem:[%s2 + $0xd0] sm:$0xff]
      %v1214 = vld [vmem:[%s2 + $0xd8] sm:$0xff]
      %v1215 = vld [vmem:[%s2 + $0xe0] sm:$0xff]
      %v1216 = vld [vmem:[%s2 + $0xe8] sm:$0xff]
      %v1217 = vld [vmem:[%s2 + $0xf0] sm:$0xff]
      %v1218 = vld [vmem:[%s2 + $0xf8] sm:$0xff]
      %v1219 = vmul.f32 %v643, %v1155
      %v1220 = vmul.f32 %v644, %v1156
      %v1221 = vmul.f32 %v645, %v1157
      %v1222 = vmul.f32 %v646, %v1158
      %v1223 = vmul.f32 %v647, %v1159
      %v1224 = vmul.f32 %v648, %v1160
      %v1225 = vmul.f32 %v649, %v1161
      %v1226 = vmul.f32 %v650, %v1162
      %v1227 = vmul.f32 %v651, %v1163
      %v1228 = vmul.f32 %v652, %v1164
      %v1229 = vmul.f32 %v653, %v1165
      %v1230 = vmul.f32 %v654, %v1166
      %v1231 = vmul.f32 %v655, %v1167
      %v1232 = vmul.f32 %v656, %v1168
      %v1233 = vmul.f32 %v657, %v1169
      %v1234 = vmul.f32 %v658, %v1170
      %v1235 = vmul.f32 %v659, %v1171
      %v1236 = vmul.f32 %v660, %v1172
      %v1237 = vmul.f32 %v661, %v1173
      %v1238 = vmul.f32 %v662, %v1174
      %v1239 = vmul.f32 %v663, %v1175
      %v1240 = vmul.f32 %v664, %v1176
      %v1241 = vmul.f32 %v665, %v1177
      %v1242 = vmul.f32 %v666, %v1178
      %v1243 = vmul.f32 %v667, %v1179
      %v1244 = vmul.f32 %v668, %v1180
      %v1245 = vmul.f32 %v669, %v1181
      %v1246 = vmul.f32 %v670, %v1182
      %v1247 = vmul.f32 %v671, %v1183
      %v1248 = vmul.f32 %v672, %v1184
      %v1249 = vmul.f32 %v673, %v1185
      %v1250 = vmul.f32 %v674, %v1186
      %v1251 = vsub.f32 %v1187, %v1219
      %v1252 = vsub.f32 %v1188, %v1220
      %v1253 = vsub.f32 %v1189, %v1221
      %v1254 = vsub.f32 %v1190, %v1222
      %v1255 = vsub.f32 %v1191, %v1223
      %v1256 = vsub.f32 %v1192, %v1224
      %v1257 = vsub.f32 %v1193, %v1225
      %v1258 = vsub.f32 %v1194, %v1226
      %v1259 = vsub.f32 %v1195, %v1227
      %v1260 = vsub.f32 %v1196, %v1228
      %v1261 = vsub.f32 %v1197, %v1229
      %v1262 = vsub.f32 %v1198, %v1230
      %v1263 = vsub.f32 %v1199, %v1231
      %v1264 = vsub.f32 %v1200, %v1232
      %v1265 = vsub.f32 %v1201, %v1233
      %v1266 = vsub.f32 %v1202, %v1234
      %v1267 = vsub.f32 %v1203, %v1235
      %v1268 = vsub.f32 %v1204, %v1236
      %v1269 = vsub.f32 %v1205, %v1237
      %v1270 = vsub.f32 %v1206, %v1238
      %v1271 = vsub.f32 %v1207, %v1239
      %v1272 = vsub.f32 %v1208, %v1240
      %v1273 = vsub.f32 %v1209, %v1241
      %v1274 = vsub.f32 %v1210, %v1242
      %v1275 = vsub.f32 %v1211, %v1243
      %v1276 = vsub.f32 %v1212, %v1244
      %v1277 = vsub.f32 %v1213, %v1245
      %v1278 = vsub.f32 %v1214, %v1246
      %v1279 = vsub.f32 %v1215, %v1247
      %v1280 = vsub.f32 %v1216, %v1248
      %v1281 = vsub.f32 %v1217, %v1249
      %v1282 = vsub.f32 %v1218, %v1250
      %1284 = vset.pattern.permute.xlu0 0
      %1285 = vperm.xlu0 %1284, %v1155
      %v1286 = vpop.permute.xlu0 %1285
      %1289 = vset.pattern.permute.xlu0 0
      %1290 = vperm.xlu0 %1289, %v1156
      %v1291 = vpop.permute.xlu0 %1290
      %1294 = vset.pattern.permute.xlu0 0
      %1295 = vperm.xlu0 %1294, %v1157
      %v1296 = vpop.permute.xlu0 %1295
      %1299 = vset.pattern.permute.xlu0 0
      %1300 = vperm.xlu0 %1299, %v1158
      %v1301 = vpop.permute.xlu0 %1300
      %1304 = vset.pattern.permute.xlu0 0
      %1305 = vperm.xlu0 %1304, %v1159
      %v1306 = vpop.permute.xlu0 %1305
      %1309 = vset.pattern.permute.xlu0 0
      %1310 = vperm.xlu0 %1309, %v1160
      %v1311 = vpop.permute.xlu0 %1310
      %1314 = vset.pattern.permute.xlu0 0
      %1315 = vperm.xlu0 %1314, %v1161
      %v1316 = vpop.permute.xlu0 %1315
      %1319 = vset.pattern.permute.xlu0 0
      %1320 = vperm.xlu0 %1319, %v1162
      %v1321 = vpop.permute.xlu0 %1320
      %1324 = vset.pattern.permute.xlu0 0
      %1325 = vperm.xlu0 %1324, %v1163
      %v1326 = vpop.permute.xlu0 %1325
      %1329 = vset.pattern.permute.xlu0 0
      %1330 = vperm.xlu0 %1329, %v1164
      %v1331 = vpop.permute.xlu0 %1330
      %1334 = vset.pattern.permute.xlu0 0
      %1335 = vperm.xlu0 %1334, %v1165
      %v1336 = vpop.permute.xlu0 %1335
      %1339 = vset.pattern.permute.xlu0 0
      %1340 = vperm.xlu0 %1339, %v1166
      %v1341 = vpop.permute.xlu0 %1340
      %1344 = vset.pattern.permute.xlu0 0
      %1345 = vperm.xlu0 %1344, %v1167
      %v1346 = vpop.permute.xlu0 %1345
      %1349 = vset.pattern.permute.xlu0 0
      %1350 = vperm.xlu0 %1349, %v1168
      %v1351 = vpop.permute.xlu0 %1350
      %1354 = vset.pattern.permute.xlu0 0
      %1355 = vperm.xlu0 %1354, %v1169
      %v1356 = vpop.permute.xlu0 %1355
      %1359 = vset.pattern.permute.xlu0 0
      %1360 = vperm.xlu0 %1359, %v1170
      %v1361 = vpop.permute.xlu0 %1360
      %1364 = vset.pattern.permute.xlu0 0
      %1365 = vperm.xlu0 %1364, %v1171
      %v1366 = vpop.permute.xlu0 %1365
      %1369 = vset.pattern.permute.xlu0 0
      %1370 = vperm.xlu0 %1369, %v1172
      %v1371 = vpop.permute.xlu0 %1370
      %1374 = vset.pattern.permute.xlu0 0
      %1375 = vperm.xlu0 %1374, %v1173
      %v1376 = vpop.permute.xlu0 %1375
      %1379 = vset.pattern.permute.xlu0 0
      %1380 = vperm.xlu0 %1379, %v1174
      %v1381 = vpop.permute.xlu0 %1380
      %1384 = vset.pattern.permute.xlu0 0
      %1385 = vperm.xlu0 %1384, %v1175
      %v1386 = vpop.permute.xlu0 %1385
      %1389 = vset.pattern.permute.xlu0 0
      %1390 = vperm.xlu0 %1389, %v1176
      %v1391 = vpop.permute.xlu0 %1390
      %1394 = vset.pattern.permute.xlu0 0
      %1395 = vperm.xlu0 %1394, %v1177
      %v1396 = vpop.permute.xlu0 %1395
      %1399 = vset.pattern.permute.xlu0 0
      %1400 = vperm.xlu0 %1399, %v1178
      %v1401 = vpop.permute.xlu0 %1400
      %1404 = vset.pattern.permute.xlu0 0
      %1405 = vperm.xlu0 %1404, %v1179
      %v1406 = vpop.permute.xlu0 %1405
      %1409 = vset.pattern.permute.xlu0 0
      %1410 = vperm.xlu0 %1409, %v1180
      %v1411 = vpop.permute.xlu0 %1410
      %1414 = vset.pattern.permute.xlu0 0
      %1415 = vperm.xlu0 %1414, %v1181
      %v1416 = vpop.permute.xlu0 %1415
      %1419 = vset.pattern.permute.xlu0 0
      %1420 = vperm.xlu0 %1419, %v1182
      %v1421 = vpop.permute.xlu0 %1420
      %1424 = vset.pattern.permute.xlu0 0
      %1425 = vperm.xlu0 %1424, %v1183
      %v1426 = vpop.permute.xlu0 %1425
      %1429 = vset.pattern.permute.xlu0 0
      %1430 = vperm.xlu0 %1429, %v1184
      %v1431 = vpop.permute.xlu0 %1430
      %1434 = vset.pattern.permute.xlu0 0
      %1435 = vperm.xlu0 %1434, %v1185
      %v1436 = vpop.permute.xlu0 %1435
      %1439 = vset.pattern.permute.xlu0 0
      %1440 = vperm.xlu0 %1439, %v1186
      %v1441 = vpop.permute.xlu0 %1440
      %v1443 = vmul.f32 %v258, %v1286
      %v1444 = vmul.f32 %v259, %v1286
      %v1445 = vmul.f32 %v260, %v1291
      %v1446 = vmul.f32 %v261, %v1291
      %v1447 = vmul.f32 %v262, %v1296
      %v1448 = vmul.f32 %v263, %v1296
      %v1449 = vmul.f32 %v264, %v1301
      %v1450 = vmul.f32 %v265, %v1301
      %v1451 = vmul.f32 %v266, %v1306
      %v1452 = vmul.f32 %v267, %v1306
      %v1453 = vmul.f32 %v268, %v1311
      %v1454 = vmul.f32 %v269, %v1311
      %v1455 = vmul.f32 %v270, %v1316
      %v1456 = vmul.f32 %v271, %v1316
      %v1457 = vmul.f32 %v272, %v1321
      %v1458 = vmul.f32 %v273, %v1321
      %v1459 = vmul.f32 %v274, %v1326
      %v1460 = vmul.f32 %v275, %v1326
      %v1461 = vmul.f32 %v276, %v1331
      %v1462 = vmul.f32 %v277, %v1331
      %v1463 = vmul.f32 %v278, %v1336
      %v1464 = vmul.f32 %v279, %v1336
      %v1465 = vmul.f32 %v280, %v1341
      %v1466 = vmul.f32 %v281, %v1341
      %v1467 = vmul.f32 %v282, %v1346
      %v1468 = vmul.f32 %v283, %v1346
      %v1469 = vmul.f32 %v284, %v1351
      %v1470 = vmul.f32 %v285, %v1351
      %v1471 = vmul.f32 %v286, %v1356
      %v1472 = vmul.f32 %v287, %v1356
      %v1473 = vmul.f32 %v288, %v1361
      %v1474 = vmul.f32 %v289, %v1361
      %v1475 = vmul.f32 %v290, %v1366
      %v1476 = vmul.f32 %v291, %v1366
      %v1477 = vmul.f32 %v292, %v1371
      %v1478 = vmul.f32 %v293, %v1371
      %v1479 = vmul.f32 %v294, %v1376
      %v1480 = vmul.f32 %v295, %v1376
      %v1481 = vmul.f32 %v296, %v1381
      %v1482 = vmul.f32 %v297, %v1381
      %v1483 = vmul.f32 %v298, %v1386
      %v1484 = vmul.f32 %v299, %v1386
      %v1485 = vmul.f32 %v300, %v1391
      %v1486 = vmul.f32 %v301, %v1391
      %v1487 = vmul.f32 %v302, %v1396
      %v1488 = vmul.f32 %v303, %v1396
      %v1489 = vmul.f32 %v304, %v1401
      %v1490 = vmul.f32 %v305, %v1401
      %v1491 = vmul.f32 %v306, %v1406
      %v1492 = vmul.f32 %v307, %v1406
      %v1493 = vmul.f32 %v308, %v1411
      %v1494 = vmul.f32 %v309, %v1411
      %v1495 = vmul.f32 %v310, %v1416
      %v1496 = vmul.f32 %v311, %v1416
      %v1497 = vmul.f32 %v312, %v1421
      %v1498 = vmul.f32 %v313, %v1421
      %v1499 = vmul.f32 %v314, %v1426
      %v1500 = vmul.f32 %v315, %v1426
      %v1501 = vmul.f32 %v316, %v1431
      %v1502 = vmul.f32 %v317, %v1431
      %v1503 = vmul.f32 %v318, %v1436
      %v1504 = vmul.f32 %v319, %v1436
      %v1505 = vmul.f32 %v320, %v1441
      %v1506 = vmul.f32 %v321, %v1441
      %1508 = vset.pattern.permute.xlu0 0
      %1509 = vperm.xlu0 %1508, %v1251
      %v1510 = vpop.permute.xlu0 %1509
      %1513 = vset.pattern.permute.xlu0 0
      %1514 = vperm.xlu0 %1513, %v1252
      %v1515 = vpop.permute.xlu0 %1514
      %1518 = vset.pattern.permute.xlu0 0
      %1519 = vperm.xlu0 %1518, %v1253
      %v1520 = vpop.permute.xlu0 %1519
      %1523 = vset.pattern.permute.xlu0 0
      %1524 = vperm.xlu0 %1523, %v1254
      %v1525 = vpop.permute.xlu0 %1524
      %1528 = vset.pattern.permute.xlu0 0
      %1529 = vperm.xlu0 %1528, %v1255
      %v1530 = vpop.permute.xlu0 %1529
      %1533 = vset.pattern.permute.xlu0 0
      %1534 = vperm.xlu0 %1533, %v1256
      %v1535 = vpop.permute.xlu0 %1534
      %1538 = vset.pattern.permute.xlu0 0
      %1539 = vperm.xlu0 %1538, %v1257
      %v1540 = vpop.permute.xlu0 %1539
      %1543 = vset.pattern.permute.xlu0 0
      %1544 = vperm.xlu0 %1543, %v1258
      %v1545 = vpop.permute.xlu0 %1544
      %1548 = vset.pattern.permute.xlu0 0
      %1549 = vperm.xlu0 %1548, %v1259
      %v1550 = vpop.permute.xlu0 %1549
      %1553 = vset.pattern.permute.xlu0 0
      %1554 = vperm.xlu0 %1553, %v1260
      %v1555 = vpop.permute.xlu0 %1554
      %1558 = vset.pattern.permute.xlu0 0
      %1559 = vperm.xlu0 %1558, %v1261
      %v1560 = vpop.permute.xlu0 %1559
      %1563 = vset.pattern.permute.xlu0 0
      %1564 = vperm.xlu0 %1563, %v1262
      %v1565 = vpop.permute.xlu0 %1564
      %1568 = vset.pattern.permute.xlu0 0
      %1569 = vperm.xlu0 %1568, %v1263
      %v1570 = vpop.permute.xlu0 %1569
      %1573 = vset.pattern.permute.xlu0 0
      %1574 = vperm.xlu0 %1573, %v1264
      %v1575 = vpop.permute.xlu0 %1574
      %1578 = vset.pattern.permute.xlu0 0
      %1579 = vperm.xlu0 %1578, %v1265
      %v1580 = vpop.permute.xlu0 %1579
      %1583 = vset.pattern.permute.xlu0 0
      %1584 = vperm.xlu0 %1583, %v1266
      %v1585 = vpop.permute.xlu0 %1584
      %1588 = vset.pattern.permute.xlu0 0
      %1589 = vperm.xlu0 %1588, %v1267
      %v1590 = vpop.permute.xlu0 %1589
      %1593 = vset.pattern.permute.xlu0 0
      %1594 = vperm.xlu0 %1593, %v1268
      %v1595 = vpop.permute.xlu0 %1594
      %1598 = vset.pattern.permute.xlu0 0
      %1599 = vperm.xlu0 %1598, %v1269
      %v1600 = vpop.permute.xlu0 %1599
      %1603 = vset.pattern.permute.xlu0 0
      %1604 = vperm.xlu0 %1603, %v1270
      %v1605 = vpop.permute.xlu0 %1604
      %1608 = vset.pattern.permute.xlu0 0
      %1609 = vperm.xlu0 %1608, %v1271
      %v1610 = vpop.permute.xlu0 %1609
      %1613 = vset.pattern.permute.xlu0 0
      %1614 = vperm.xlu0 %1613, %v1272
      %v1615 = vpop.permute.xlu0 %1614
      %1618 = vset.pattern.permute.xlu0 0
      %1619 = vperm.xlu0 %1618, %v1273
      %v1620 = vpop.permute.xlu0 %1619
      %1623 = vset.pattern.permute.xlu0 0
      %1624 = vperm.xlu0 %1623, %v1274
      %v1625 = vpop.permute.xlu0 %1624
      %1628 = vset.pattern.permute.xlu0 0
      %1629 = vperm.xlu0 %1628, %v1275
      %v1630 = vpop.permute.xlu0 %1629
      %1633 = vset.pattern.permute.xlu0 0
      %1634 = vperm.xlu0 %1633, %v1276
      %v1635 = vpop.permute.xlu0 %1634
      %1638 = vset.pattern.permute.xlu0 0
      %1639 = vperm.xlu0 %1638, %v1277
      %v1640 = vpop.permute.xlu0 %1639
      %1643 = vset.pattern.permute.xlu0 0
      %1644 = vperm.xlu0 %1643, %v1278
      %v1645 = vpop.permute.xlu0 %1644
      %1648 = vset.pattern.permute.xlu0 0
      %1649 = vperm.xlu0 %1648, %v1279
      %v1650 = vpop.permute.xlu0 %1649
      %1653 = vset.pattern.permute.xlu0 0
      %1654 = vperm.xlu0 %1653, %v1280
      %v1655 = vpop.permute.xlu0 %1654
      %1658 = vset.pattern.permute.xlu0 0
      %1659 = vperm.xlu0 %1658, %v1281
      %v1660 = vpop.permute.xlu0 %1659
      %1663 = vset.pattern.permute.xlu0 0
      %1664 = vperm.xlu0 %1663, %v1282
      %v1665 = vpop.permute.xlu0 %1664
      %v1667 = vadd.f32 %v1443, %v1510
      %v1668 = vadd.f32 %v1444, %v1510
      %v1669 = vadd.f32 %v1445, %v1515
      %v1670 = vadd.f32 %v1446, %v1515
      %v1671 = vadd.f32 %v1447, %v1520
      %v1672 = vadd.f32 %v1448, %v1520
      %v1673 = vadd.f32 %v1449, %v1525
      %v1674 = vadd.f32 %v1450, %v1525
      %v1675 = vadd.f32 %v1451, %v1530
      %v1676 = vadd.f32 %v1452, %v1530
      %v1677 = vadd.f32 %v1453, %v1535
      %v1678 = vadd.f32 %v1454, %v1535
      %v1679 = vadd.f32 %v1455, %v1540
      %v1680 = vadd.f32 %v1456, %v1540
      %v1681 = vadd.f32 %v1457, %v1545
      %v1682 = vadd.f32 %v1458, %v1545
      %v1683 = vadd.f32 %v1459, %v1550
      %v1684 = vadd.f32 %v1460, %v1550
      %v1685 = vadd.f32 %v1461, %v1555
      %v1686 = vadd.f32 %v1462, %v1555
      %v1687 = vadd.f32 %v1463, %v1560
      %v1688 = vadd.f32 %v1464, %v1560
      %v1689 = vadd.f32 %v1465, %v1565
      %v1690 = vadd.f32 %v1466, %v1565
      %v1691 = vadd.f32 %v1467, %v1570
      %v1692 = vadd.f32 %v1468, %v1570
      %v1693 = vadd.f32 %v1469, %v1575
      %v1694 = vadd.f32 %v1470, %v1575
      %v1695 = vadd.f32 %v1471, %v1580
      %v1696 = vadd.f32 %v1472, %v1580
      %v1697 = vadd.f32 %v1473, %v1585
      %v1698 = vadd.f32 %v1474, %v1585
      %v1699 = vadd.f32 %v1475, %v1590
      %v1700 = vadd.f32 %v1476, %v1590
      %v1701 = vadd.f32 %v1477, %v1595
      %v1702 = vadd.f32 %v1478, %v1595
      %v1703 = vadd.f32 %v1479, %v1600
      %v1704 = vadd.f32 %v1480, %v1600
      %v1705 = vadd.f32 %v1481, %v1605
      %v1706 = vadd.f32 %v1482, %v1605
      %v1707 = vadd.f32 %v1483, %v1610
      %v1708 = vadd.f32 %v1484, %v1610
      %v1709 = vadd.f32 %v1485, %v1615
      %v1710 = vadd.f32 %v1486, %v1615
      %v1711 = vadd.f32 %v1487, %v1620
      %v1712 = vadd.f32 %v1488, %v1620
      %v1713 = vadd.f32 %v1489, %v1625
      %v1714 = vadd.f32 %v1490, %v1625
      %v1715 = vadd.f32 %v1491, %v1630
      %v1716 = vadd.f32 %v1492, %v1630
      %v1717 = vadd.f32 %v1493, %v1635
      %v1718 = vadd.f32 %v1494, %v1635
      %v1719 = vadd.f32 %v1495, %v1640
      %v1720 = vadd.f32 %v1496, %v1640
      %v1721 = vadd.f32 %v1497, %v1645
      %v1722 = vadd.f32 %v1498, %v1645
      %v1723 = vadd.f32 %v1499, %v1650
      %v1724 = vadd.f32 %v1500, %v1650
      %v1725 = vadd.f32 %v1501, %v1655
      %v1726 = vadd.f32 %v1502, %v1655
      %v1727 = vadd.f32 %v1503, %v1660
      %v1728 = vadd.f32 %v1504, %v1660
      %v1729 = vadd.f32 %v1505, %v1665
      %v1730 = vadd.f32 %v1506, %v1665
      %v1731 = vmax.f32 %v1667, 0.0
      %v1732 = vmax.f32 %v1668, 0.0
      %v1733 = vmax.f32 %v1669, 0.0
      %v1734 = vmax.f32 %v1670, 0.0
      %v1735 = vmax.f32 %v1671, 0.0
      %v1736 = vmax.f32 %v1672, 0.0
      %v1737 = vmax.f32 %v1673, 0.0
      %v1738 = vmax.f32 %v1674, 0.0
      %v1739 = vmax.f32 %v1675, 0.0
      %v1740 = vmax.f32 %v1676, 0.0
      %v1741 = vmax.f32 %v1677, 0.0
      %v1742 = vmax.f32 %v1678, 0.0
      %v1743 = vmax.f32 %v1679, 0.0
      %v1744 = vmax.f32 %v1680, 0.0
      %v1745 = vmax.f32 %v1681, 0.0
      %v1746 = vmax.f32 %v1682, 0.0
      %v1747 = vmax.f32 %v1683, 0.0
      %v1748 = vmax.f32 %v1684, 0.0
      %v1749 = vmax.f32 %v1685, 0.0
      %v1750 = vmax.f32 %v1686, 0.0
      %v1751 = vmax.f32 %v1687, 0.0
      %v1752 = vmax.f32 %v1688, 0.0
      %v1753 = vmax.f32 %v1689, 0.0
      %v1754 = vmax.f32 %v1690, 0.0
      %v1755 = vmax.f32 %v1691, 0.0
      %v1756 = vmax.f32 %v1692, 0.0
      %v1757 = vmax.f32 %v1693, 0.0
      %v1758 = vmax.f32 %v1694, 0.0
      %v1759 = vmax.f32 %v1695, 0.0
      %v1760 = vmax.f32 %v1696, 0.0
      %v1761 = vmax.f32 %v1697, 0.0
      %v1762 = vmax.f32 %v1698, 0.0
      %v1763 = vmax.f32 %v1699, 0.0
      %v1764 = vmax.f32 %v1700, 0.0
      %v1765 = vmax.f32 %v1701, 0.0
      %v1766 = vmax.f32 %v1702, 0.0
      %v1767 = vmax.f32 %v1703, 0.0
      %v1768 = vmax.f32 %v1704, 0.0
      %v1769 = vmax.f32 %v1705, 0.0
      %v1770 = vmax.f32 %v1706, 0.0
      %v1771 = vmax.f32 %v1707, 0.0
      %v1772 = vmax.f32 %v1708, 0.0
      %v1773 = vmax.f32 %v1709, 0.0
      %v1774 = vmax.f32 %v1710, 0.0
      %v1775 = vmax.f32 %v1711, 0.0
      %v1776 = vmax.f32 %v1712, 0.0
      %v1777 = vmax.f32 %v1713, 0.0
      %v1778 = vmax.f32 %v1714, 0.0
      %v1779 = vmax.f32 %v1715, 0.0
      %v1780 = vmax.f32 %v1716, 0.0
      %v1781 = vmax.f32 %v1717, 0.0
      %v1782 = vmax.f32 %v1718, 0.0
      %v1783 = vmax.f32 %v1719, 0.0
      %v1784 = vmax.f32 %v1720, 0.0
      %v1785 = vmax.f32 %v1721, 0.0
      %v1786 = vmax.f32 %v1722, 0.0
      %v1787 = vmax.f32 %v1723, 0.0
      %v1788 = vmax.f32 %v1724, 0.0
      %v1789 = vmax.f32 %v1725, 0.0
      %v1790 = vmax.f32 %v1726, 0.0
      %v1791 = vmax.f32 %v1727, 0.0
      %v1792 = vmax.f32 %v1728, 0.0
      %v1793 = vmax.f32 %v1729, 0.0
      %v1794 = vmax.f32 %v1730, 0.0
      %v1795 = vpack.c.bf16 %v1732, %v1731
      %v1796 = vpack.c.bf16 %v1734, %v1733
      %v1797 = vpack.c.bf16 %v1736, %v1735
      %v1798 = vpack.c.bf16 %v1738, %v1737
      %v1799 = vpack.c.bf16 %v1740, %v1739
      %v1800 = vpack.c.bf16 %v1742, %v1741
      %v1801 = vpack.c.bf16 %v1744, %v1743
      %v1802 = vpack.c.bf16 %v1746, %v1745
      %v1803 = vpack.c.bf16 %v1748, %v1747
      %v1804 = vpack.c.bf16 %v1750, %v1749
      %v1805 = vpack.c.bf16 %v1752, %v1751
      %v1806 = vpack.c.bf16 %v1754, %v1753
      %v1807 = vpack.c.bf16 %v1756, %v1755
      %v1808 = vpack.c.bf16 %v1758, %v1757
      %v1809 = vpack.c.bf16 %v1760, %v1759
      %v1810 = vpack.c.bf16 %v1762, %v1761
      %v1811 = vpack.c.bf16 %v1764, %v1763
      %v1812 = vpack.c.bf16 %v1766, %v1765
      %v1813 = vpack.c.bf16 %v1768, %v1767
      %v1814 = vpack.c.bf16 %v1770, %v1769
      %v1815 = vpack.c.bf16 %v1772, %v1771
      %v1816 = vpack.c.bf16 %v1774, %v1773
      %v1817 = vpack.c.bf16 %v1776, %v1775
      %v1818 = vpack.c.bf16 %v1778, %v1777
      %v1819 = vpack.c.bf16 %v1780, %v1779
      %v1820 = vpack.c.bf16 %v1782, %v1781
      %v1821 = vpack.c.bf16 %v1784, %v1783
      %v1822 = vpack.c.bf16 %v1786, %v1785
      %v1823 = vpack.c.bf16 %v1788, %v1787
      %v1824 = vpack.c.bf16 %v1790, %v1789
      %v1825 = vpack.c.bf16 %v1792, %v1791
      %v1826 = vpack.c.bf16 %v1794, %v1793
      %v1827 = vunpack.c.l.bf16 %v1795
      %v1828 = vunpack.c.h.bf16 %v1795
      %v1829 = vunpack.c.l.bf16 %v1796
      %v1830 = vunpack.c.h.bf16 %v1796
      %v1831 = vunpack.c.l.bf16 %v1797
      %v1832 = vunpack.c.h.bf16 %v1797
      %v1833 = vunpack.c.l.bf16 %v1798
      %v1834 = vunpack.c.h.bf16 %v1798
      %v1835 = vunpack.c.l.bf16 %v1799
      %v1836 = vunpack.c.h.bf16 %v1799
      %v1837 = vunpack.c.l.bf16 %v1800
      %v1838 = vunpack.c.h.bf16 %v1800
      %v1839 = vunpack.c.l.bf16 %v1801
      %v1840 = vunpack.c.h.bf16 %v1801
      %v1841 = vunpack.c.l.bf16 %v1802
      %v1842 = vunpack.c.h.bf16 %v1802
      %v1843 = vunpack.c.l.bf16 %v1803
      %v1844 = vunpack.c.h.bf16 %v1803
      %v1845 = vunpack.c.l.bf16 %v1804
      %v1846 = vunpack.c.h.bf16 %v1804
      %v1847 = vunpack.c.l.bf16 %v1805
      %v1848 = vunpack.c.h.bf16 %v1805
      %v1849 = vunpack.c.l.bf16 %v1806
      %v1850 = vunpack.c.h.bf16 %v1806
      %v1851 = vunpack.c.l.bf16 %v1807
      %v1852 = vunpack.c.h.bf16 %v1807
      %v1853 = vunpack.c.l.bf16 %v1808
      %v1854 = vunpack.c.h.bf16 %v1808
      %v1855 = vunpack.c.l.bf16 %v1809
      %v1856 = vunpack.c.h.bf16 %v1809
      %v1857 = vunpack.c.l.bf16 %v1810
      %v1858 = vunpack.c.h.bf16 %v1810
      %v1859 = vunpack.c.l.bf16 %v1811
      %v1860 = vunpack.c.h.bf16 %v1811
      %v1861 = vunpack.c.l.bf16 %v1812
      %v1862 = vunpack.c.h.bf16 %v1812
      %v1863 = vunpack.c.l.bf16 %v1813
      %v1864 = vunpack.c.h.bf16 %v1813
      %v1865 = vunpack.c.l.bf16 %v1814
      %v1866 = vunpack.c.h.bf16 %v1814
      %v1867 = vunpack.c.l.bf16 %v1815
      %v1868 = vunpack.c.h.bf16 %v1815
      %v1869 = vunpack.c.l.bf16 %v1816
      %v1870 = vunpack.c.h.bf16 %v1816
      %v1871 = vunpack.c.l.bf16 %v1817
      %v1872 = vunpack.c.h.bf16 %v1817
      %v1873 = vunpack.c.l.bf16 %v1818
      %v1874 = vunpack.c.h.bf16 %v1818
      %v1875 = vunpack.c.l.bf16 %v1819
      %v1876 = vunpack.c.h.bf16 %v1819
      %v1877 = vunpack.c.l.bf16 %v1820
      %v1878 = vunpack.c.h.bf16 %v1820
      %v1879 = vunpack.c.l.bf16 %v1821
      %v1880 = vunpack.c.h.bf16 %v1821
      %v1881 = vunpack.c.l.bf16 %v1822
      %v1882 = vunpack.c.h.bf16 %v1822
      %v1883 = vunpack.c.l.bf16 %v1823
      %v1884 = vunpack.c.h.bf16 %v1823
      %v1885 = vunpack.c.l.bf16 %v1824
      %v1886 = vunpack.c.h.bf16 %v1824
      %v1887 = vunpack.c.l.bf16 %v1825
      %v1888 = vunpack.c.h.bf16 %v1825
      %v1889 = vunpack.c.l.bf16 %v1826
      %v1890 = vunpack.c.h.bf16 %v1826
      %v1891 = vsub.f32 %v1731, %v1827
      %v1892 = vsub.f32 %v1732, %v1828
      %v1893 = vsub.f32 %v1733, %v1829
      %v1894 = vsub.f32 %v1734, %v1830
      %v1895 = vsub.f32 %v1735, %v1831
      %v1896 = vsub.f32 %v1736, %v1832
      %v1897 = vsub.f32 %v1737, %v1833
      %v1898 = vsub.f32 %v1738, %v1834
      %v1899 = vsub.f32 %v1739, %v1835
      %v1900 = vsub.f32 %v1740, %v1836
      %v1901 = vsub.f32 %v1741, %v1837
      %v1902 = vsub.f32 %v1742, %v1838
      %v1903 = vsub.f32 %v1743, %v1839
      %v1904 = vsub.f32 %v1744, %v1840
      %v1905 = vsub.f32 %v1745, %v1841
      %v1906 = vsub.f32 %v1746, %v1842
      %v1907 = vsub.f32 %v1747, %v1843
      %v1908 = vsub.f32 %v1748, %v1844
      %v1909 = vsub.f32 %v1749, %v1845
      %v1910 = vsub.f32 %v1750, %v1846
      %v1911 = vsub.f32 %v1751, %v1847
      %v1912 = vsub.f32 %v1752, %v1848
      %v1913 = vsub.f32 %v1753, %v1849
      %v1914 = vsub.f32 %v1754, %v1850
      %v1915 = vsub.f32 %v1755, %v1851
      %v1916 = vsub.f32 %v1756, %v1852
      %v1917 = vsub.f32 %v1757, %v1853
      %v1918 = vsub.f32 %v1758, %v1854
      %v1919 = vsub.f32 %v1759, %v1855
      %v1920 = vsub.f32 %v1760, %v1856
      %v1921 = vsub.f32 %v1761, %v1857
      %v1922 = vsub.f32 %v1762, %v1858
      %v1923 = vsub.f32 %v1763, %v1859
      %v1924 = vsub.f32 %v1764, %v1860
      %v1925 = vsub.f32 %v1765, %v1861
      %v1926 = vsub.f32 %v1766, %v1862
      %v1927 = vsub.f32 %v1767, %v1863
      %v1928 = vsub.f32 %v1768, %v1864
      %v1929 = vsub.f32 %v1769, %v1865
      %v1930 = vsub.f32 %v1770, %v1866
      %v1931 = vsub.f32 %v1771, %v1867
      %v1932 = vsub.f32 %v1772, %v1868
      %v1933 = vsub.f32 %v1773, %v1869
      %v1934 = vsub.f32 %v1774, %v1870
      %v1935 = vsub.f32 %v1775, %v1871
      %v1936 = vsub.f32 %v1776, %v1872
      %v1937 = vsub.f32 %v1777, %v1873
      %v1938 = vsub.f32 %v1778, %v1874
      %v1939 = vsub.f32 %v1779, %v1875
      %v1940 = vsub.f32 %v1780, %v1876
      %v1941 = vsub.f32 %v1781, %v1877
      %v1942 = vsub.f32 %v1782, %v1878
      %v1943 = vsub.f32 %v1783, %v1879
      %v1944 = vsub.f32 %v1784, %v1880
      %v1945 = vsub.f32 %v1785, %v1881
      %v1946 = vsub.f32 %v1786, %v1882
      %v1947 = vsub.f32 %v1787, %v1883
      %v1948 = vsub.f32 %v1788, %v1884
      %v1949 = vsub.f32 %v1789, %v1885
      %v1950 = vsub.f32 %v1790, %v1886
      %v1951 = vsub.f32 %v1791, %v1887
      %v1952 = vsub.f32 %v1792, %v1888
      %v1953 = vsub.f32 %v1793, %v1889
      %v1954 = vsub.f32 %v1794, %v1890
      %v1955 = vpack.c.bf16 %v1893, %v1891
      %v1956 = vpack.c.bf16 %v1894, %v1892
      %v1957 = vpack.c.bf16 %v1897, %v1895
      %v1958 = vpack.c.bf16 %v1898, %v1896
      %v1959 = vpack.c.bf16 %v1901, %v1899
      %v1960 = vpack.c.bf16 %v1902, %v1900
      %v1961 = vpack.c.bf16 %v1905, %v1903
      %v1962 = vpack.c.bf16 %v1906, %v1904
      %v1963 = vpack.c.bf16 %v1909, %v1907
      %v1964 = vpack.c.bf16 %v1910, %v1908
      %v1965 = vpack.c.bf16 %v1913, %v1911
      %v1966 = vpack.c.bf16 %v1914, %v1912
      %v1967 = vpack.c.bf16 %v1917, %v1915
      %v1968 = vpack.c.bf16 %v1918, %v1916
      %v1969 = vpack.c.bf16 %v1921, %v1919
      %v1970 = vpack.c.bf16 %v1922, %v1920
      %v1971 = vpack.c.bf16 %v1925, %v1923
      %v1972 = vpack.c.bf16 %v1926, %v1924
      %v1973 = vpack.c.bf16 %v1929, %v1927
      %v1974 = vpack.c.bf16 %v1930, %v1928
      %v1975 = vpack.c.bf16 %v1933, %v1931
      %v1976 = vpack.c.bf16 %v1934, %v1932
      %v1977 = vpack.c.bf16 %v1937, %v1935
      %v1978 = vpack.c.bf16 %v1938, %v1936
      %v1979 = vpack.c.bf16 %v1941, %v1939
      %v1980 = vpack.c.bf16 %v1942, %v1940
      %v1981 = vpack.c.bf16 %v1945, %v1943
      %v1982 = vpack.c.bf16 %v1946, %v1944
      %v1983 = vpack.c.bf16 %v1949, %v1947
      %v1984 = vpack.c.bf16 %v1950, %v1948
      %v1985 = vpack.c.bf16 %v1953, %v1951
      %v1986 = vpack.c.bf16 %v1954, %v1952
      %v1987 = vld [vmem:[%s242] sm:$0xff]
      %v1988 = vld [vmem:[%s242 + $0x8] sm:$0xff]
      %v1989 = vld [vmem:[%s242 + $0x10] sm:$0xff]
      %v1990 = vld [vmem:[%s242 + $0x18] sm:$0xff]
      %v1991 = vld [vmem:[%s242 + $0x20] sm:$0xff]
      %v1992 = vld [vmem:[%s242 + $0x28] sm:$0xff]
      %v1993 = vld [vmem:[%s242 + $0x30] sm:$0xff]
      %v1994 = vld [vmem:[%s242 + $0x38] sm:$0xff]
      %v1995 = vld [vmem:[%s242 + $0x40] sm:$0xff]
      %v1996 = vld [vmem:[%s242 + $0x48] sm:$0xff]
      %v1997 = vld [vmem:[%s242 + $0x50] sm:$0xff]
      %v1998 = vld [vmem:[%s242 + $0x58] sm:$0xff]
      %v1999 = vld [vmem:[%s242 + $0x60] sm:$0xff]
      %v2000 = vld [vmem:[%s242 + $0x68] sm:$0xff]
      %v2001 = vld [vmem:[%s242 + $0x70] sm:$0xff]
      %v2002 = vld [vmem:[%s242 + $0x78] sm:$0xff]
      %v2003 = vld [vmem:[%s242 + $0x80] sm:$0xff]
      %v2004 = vld [vmem:[%s242 + $0x88] sm:$0xff]
      %v2005 = vld [vmem:[%s242 + $0x90] sm:$0xff]
      %v2006 = vld [vmem:[%s242 + $0x98] sm:$0xff]
      %v2007 = vld [vmem:[%s242 + $0xa0] sm:$0xff]
      %v2008 = vld [vmem:[%s242 + $0xa8] sm:$0xff]
      %v2009 = vld [vmem:[%s242 + $0xb0] sm:$0xff]
      %v2010 = vld [vmem:[%s242 + $0xb8] sm:$0xff]
      %v2011 = vld [vmem:[%s242 + $0xc0] sm:$0xff]
      %v2012 = vld [vmem:[%s242 + $0xc8] sm:$0xff]
      %v2013 = vld [vmem:[%s242 + $0xd0] sm:$0xff]
      %v2014 = vld [vmem:[%s242 + $0xd8] sm:$0xff]
      %v2015 = vld [vmem:[%s242 + $0xe0] sm:$0xff]
      %v2016 = vld [vmem:[%s242 + $0xe8] sm:$0xff]
      %v2017 = vld [vmem:[%s242 + $0xf0] sm:$0xff]
      %v2018 = vld [vmem:[%s242 + $0xf8] sm:$0xff]
      %v2019 = vld [vmem:[%s242 + $0x100] sm:$0xff]
      %v2020 = vld [vmem:[%s242 + $0x108] sm:$0xff]
      %v2021 = vld [vmem:[%s242 + $0x110] sm:$0xff]
      %v2022 = vld [vmem:[%s242 + $0x118] sm:$0xff]
      %v2023 = vld [vmem:[%s242 + $0x120] sm:$0xff]
      %v2024 = vld [vmem:[%s242 + $0x128] sm:$0xff]
      %v2025 = vld [vmem:[%s242 + $0x130] sm:$0xff]
      %v2026 = vld [vmem:[%s242 + $0x138] sm:$0xff]
      %v2027 = vld [vmem:[%s242 + $0x140] sm:$0xff]
      %v2028 = vld [vmem:[%s242 + $0x148] sm:$0xff]
      %v2029 = vld [vmem:[%s242 + $0x150] sm:$0xff]
      %v2030 = vld [vmem:[%s242 + $0x158] sm:$0xff]
      %v2031 = vld [vmem:[%s242 + $0x160] sm:$0xff]
      %v2032 = vld [vmem:[%s242 + $0x168] sm:$0xff]
      %v2033 = vld [vmem:[%s242 + $0x170] sm:$0xff]
      %v2034 = vld [vmem:[%s242 + $0x178] sm:$0xff]
      %v2035 = vld [vmem:[%s242 + $0x180] sm:$0xff]
      %v2036 = vld [vmem:[%s242 + $0x188] sm:$0xff]
      %v2037 = vld [vmem:[%s242 + $0x190] sm:$0xff]
      %v2038 = vld [vmem:[%s242 + $0x198] sm:$0xff]
      %v2039 = vld [vmem:[%s242 + $0x1a0] sm:$0xff]
      %v2040 = vld [vmem:[%s242 + $0x1a8] sm:$0xff]
      %v2041 = vld [vmem:[%s242 + $0x1b0] sm:$0xff]
      %v2042 = vld [vmem:[%s242 + $0x1b8] sm:$0xff]
      %v2043 = vld [vmem:[%s242 + $0x1c0] sm:$0xff]
      %v2044 = vld [vmem:[%s242 + $0x1c8] sm:$0xff]
      %v2045 = vld [vmem:[%s242 + $0x1d0] sm:$0xff]
      %v2046 = vld [vmem:[%s242 + $0x1d8] sm:$0xff]
      %v2047 = vld [vmem:[%s242 + $0x1e0] sm:$0xff]
      %v2048 = vld [vmem:[%s242 + $0x1e8] sm:$0xff]
      %v2049 = vld [vmem:[%s242 + $0x1f0] sm:$0xff]
      %v2050 = vld [vmem:[%s242 + $0x1f8] sm:$0xff]
      %v2051 = vld [vmem:[%s249] sm:$0xff]
      %v2052 = vld [vmem:[%s249 + $0x8] sm:$0xff]
      %v2053 = vld [vmem:[%s249 + $0x10] sm:$0xff]
      %v2054 = vld [vmem:[%s249 + $0x18] sm:$0xff]
      %v2055 = vld [vmem:[%s249 + $0x20] sm:$0xff]
      %v2056 = vld [vmem:[%s249 + $0x28] sm:$0xff]
      %v2057 = vld [vmem:[%s249 + $0x30] sm:$0xff]
      %v2058 = vld [vmem:[%s249 + $0x38] sm:$0xff]
      %v2059 = vld [vmem:[%s249 + $0x40] sm:$0xff]
      %v2060 = vld [vmem:[%s249 + $0x48] sm:$0xff]
      %v2061 = vld [vmem:[%s249 + $0x50] sm:$0xff]
      %v2062 = vld [vmem:[%s249 + $0x58] sm:$0xff]
      %v2063 = vld [vmem:[%s249 + $0x60] sm:$0xff]
      %v2064 = vld [vmem:[%s249 + $0x68] sm:$0xff]
      %v2065 = vld [vmem:[%s249 + $0x70] sm:$0xff]
      %v2066 = vld [vmem:[%s249 + $0x78] sm:$0xff]
      %v2067 = vld [vmem:[%s249 + $0x80] sm:$0xff]
      %v2068 = vld [vmem:[%s249 + $0x88] sm:$0xff]
      %v2069 = vld [vmem:[%s249 + $0x90] sm:$0xff]
      %v2070 = vld [vmem:[%s249 + $0x98] sm:$0xff]
      %v2071 = vld [vmem:[%s249 + $0xa0] sm:$0xff]
      %v2072 = vld [vmem:[%s249 + $0xa8] sm:$0xff]
      %v2073 = vld [vmem:[%s249 + $0xb0] sm:$0xff]
      %v2074 = vld [vmem:[%s249 + $0xb8] sm:$0xff]
      %v2075 = vld [vmem:[%s249 + $0xc0] sm:$0xff]
      %v2076 = vld [vmem:[%s249 + $0xc8] sm:$0xff]
      %v2077 = vld [vmem:[%s249 + $0xd0] sm:$0xff]
      %v2078 = vld [vmem:[%s249 + $0xd8] sm:$0xff]
      %v2079 = vld [vmem:[%s249 + $0xe0] sm:$0xff]
      %v2080 = vld [vmem:[%s249 + $0xe8] sm:$0xff]
      %v2081 = vld [vmem:[%s249 + $0xf0] sm:$0xff]
      %v2082 = vld [vmem:[%s249 + $0xf8] sm:$0xff]
      %v2083 = vld [vmem:[%s249 + $0x100] sm:$0xff]
      %v2084 = vld [vmem:[%s249 + $0x108] sm:$0xff]
      %v2085 = vld [vmem:[%s249 + $0x110] sm:$0xff]
      %v2086 = vld [vmem:[%s249 + $0x118] sm:$0xff]
      %v2087 = vld [vmem:[%s249 + $0x120] sm:$0xff]
      %v2088 = vld [vmem:[%s249 + $0x128] sm:$0xff]
      %v2089 = vld [vmem:[%s249 + $0x130] sm:$0xff]
      %v2090 = vld [vmem:[%s249 + $0x138] sm:$0xff]
      %v2091 = vld [vmem:[%s249 + $0x140] sm:$0xff]
      %v2092 = vld [vmem:[%s249 + $0x148] sm:$0xff]
      %v2093 = vld [vmem:[%s249 + $0x150] sm:$0xff]
      %v2094 = vld [vmem:[%s249 + $0x158] sm:$0xff]
      %v2095 = vld [vmem:[%s249 + $0x160] sm:$0xff]
      %v2096 = vld [vmem:[%s249 + $0x168] sm:$0xff]
      %v2097 = vld [vmem:[%s249 + $0x170] sm:$0xff]
      %v2098 = vld [vmem:[%s249 + $0x178] sm:$0xff]
      %v2099 = vld [vmem:[%s249 + $0x180] sm:$0xff]
      %v2100 = vld [vmem:[%s249 + $0x188] sm:$0xff]
      %v2101 = vld [vmem:[%s249 + $0x190] sm:$0xff]
      %v2102 = vld [vmem:[%s249 + $0x198] sm:$0xff]
      %v2103 = vld [vmem:[%s249 + $0x1a0] sm:$0xff]
      %v2104 = vld [vmem:[%s249 + $0x1a8] sm:$0xff]
      %v2105 = vld [vmem:[%s249 + $0x1b0] sm:$0xff]
      %v2106 = vld [vmem:[%s249 + $0x1b8] sm:$0xff]
      %v2107 = vld [vmem:[%s249 + $0x1c0] sm:$0xff]
      %v2108 = vld [vmem:[%s249 + $0x1c8] sm:$0xff]
      %v2109 = vld [vmem:[%s249 + $0x1d0] sm:$0xff]
      %v2110 = vld [vmem:[%s249 + $0x1d8] sm:$0xff]
      %v2111 = vld [vmem:[%s249 + $0x1e0] sm:$0xff]
      %v2112 = vld [vmem:[%s249 + $0x1e8] sm:$0xff]
      %v2113 = vld [vmem:[%s249 + $0x1f0] sm:$0xff]
      %v2114 = vld [vmem:[%s249 + $0x1f8] sm:$0xff]
      %v2179 = vunpack.c.l.b16 %v2051
      %v2180 = vunpack.c.h.b16 %v2051
      %v2181 = vunpack.c.l.b16 %v2052
      %v2182 = vunpack.c.h.b16 %v2052
      %v2183 = vunpack.c.l.b16 %v2053
      %v2184 = vunpack.c.h.b16 %v2053
      %v2185 = vunpack.c.l.b16 %v2054
      %v2186 = vunpack.c.h.b16 %v2054
      %v2187 = vunpack.c.l.b16 %v2055
      %v2188 = vunpack.c.h.b16 %v2055
      %v2189 = vunpack.c.l.b16 %v2056
      %v2190 = vunpack.c.h.b16 %v2056
      %v2191 = vunpack.c.l.b16 %v2057
      %v2192 = vunpack.c.h.b16 %v2057
      %v2193 = vunpack.c.l.b16 %v2058
      %v2194 = vunpack.c.h.b16 %v2058
      %v2195 = vunpack.c.l.b16 %v2059
      %v2196 = vunpack.c.h.b16 %v2059
      %v2197 = vunpack.c.l.b16 %v2060
      %v2198 = vunpack.c.h.b16 %v2060
      %v2199 = vunpack.c.l.b16 %v2061
      %v2200 = vunpack.c.h.b16 %v2061
      %v2201 = vunpack.c.l.b16 %v2062
      %v2202 = vunpack.c.h.b16 %v2062
      %v2203 = vunpack.c.l.b16 %v2063
      %v2204 = vunpack.c.h.b16 %v2063
      %v2205 = vunpack.c.l.b16 %v2064
      %v2206 = vunpack.c.h.b16 %v2064
      %v2207 = vunpack.c.l.b16 %v2065
      %v2208 = vunpack.c.h.b16 %v2065
      %v2209 = vunpack.c.l.b16 %v2066
      %v2210 = vunpack.c.h.b16 %v2066
      %v2211 = vunpack.c.l.b16 %v2067
      %v2212 = vunpack.c.h.b16 %v2067
      %v2213 = vunpack.c.l.b16 %v2068
      %v2214 = vunpack.c.h.b16 %v2068
      %v2215 = vunpack.c.l.b16 %v2069
      %v2216 = vunpack.c.h.b16 %v2069
      %v2217 = vunpack.c.l.b16 %v2070
      %v2218 = vunpack.c.h.b16 %v2070
      %v2219 = vunpack.c.l.b16 %v2071
      %v2220 = vunpack.c.h.b16 %v2071
      %v2221 = vunpack.c.l.b16 %v2072
      %v2222 = vunpack.c.h.b16 %v2072
      %v2223 = vunpack.c.l.b16 %v2073
      %v2224 = vunpack.c.h.b16 %v2073
      %v2225 = vunpack.c.l.b16 %v2074
      %v2226 = vunpack.c.h.b16 %v2074
      %v2227 = vunpack.c.l.b16 %v2075
      %v2228 = vunpack.c.h.b16 %v2075
      %v2229 = vunpack.c.l.b16 %v2076
      %v2230 = vunpack.c.h.b16 %v2076
      %v2231 = vunpack.c.l.b16 %v2077
      %v2232 = vunpack.c.h.b16 %v2077
      %v2233 = vunpack.c.l.b16 %v2078
      %v2234 = vunpack.c.h.b16 %v2078
      %v2235 = vunpack.c.l.b16 %v2079
      %v2236 = vunpack.c.h.b16 %v2079
      %v2237 = vunpack.c.l.b16 %v2080
      %v2238 = vunpack.c.h.b16 %v2080
      %v2239 = vunpack.c.l.b16 %v2081
      %v2240 = vunpack.c.h.b16 %v2081
      %v2241 = vunpack.c.l.b16 %v2082
      %v2242 = vunpack.c.h.b16 %v2082
      %v2243 = vunpack.c.l.b16 %v2083
      %v2244 = vunpack.c.h.b16 %v2083
      %v2245 = vunpack.c.l.b16 %v2084
      %v2246 = vunpack.c.h.b16 %v2084
      %v2247 = vunpack.c.l.b16 %v2085
      %v2248 = vunpack.c.h.b16 %v2085
      %v2249 = vunpack.c.l.b16 %v2086
      %v2250 = vunpack.c.h.b16 %v2086
      %v2251 = vunpack.c.l.b16 %v2087
      %v2252 = vunpack.c.h.b16 %v2087
      %v2253 = vunpack.c.l.b16 %v2088
      %v2254 = vunpack.c.h.b16 %v2088
      %v2255 = vunpack.c.l.b16 %v2089
      %v2256 = vunpack.c.h.b16 %v2089
      %v2257 = vunpack.c.l.b16 %v2090
      %v2258 = vunpack.c.h.b16 %v2090
      %v2259 = vunpack.c.l.b16 %v2091
      %v2260 = vunpack.c.h.b16 %v2091
      %v2261 = vunpack.c.l.b16 %v2092
      %v2262 = vunpack.c.h.b16 %v2092
      %v2263 = vunpack.c.l.b16 %v2093
      %v2264 = vunpack.c.h.b16 %v2093
      %v2265 = vunpack.c.l.b16 %v2094
      %v2266 = vunpack.c.h.b16 %v2094
      %v2267 = vunpack.c.l.b16 %v2095
      %v2268 = vunpack.c.h.b16 %v2095
      %v2269 = vunpack.c.l.b16 %v2096
      %v2270 = vunpack.c.h.b16 %v2096
      %v2271 = vunpack.c.l.b16 %v2097
      %v2272 = vunpack.c.h.b16 %v2097
      %v2273 = vunpack.c.l.b16 %v2098
      %v2274 = vunpack.c.h.b16 %v2098
      %v2275 = vunpack.c.l.b16 %v2099
      %v2276 = vunpack.c.h.b16 %v2099
      %v2277 = vunpack.c.l.b16 %v2100
      %v2278 = vunpack.c.h.b16 %v2100
      %v2279 = vunpack.c.l.b16 %v2101
      %v2280 = vunpack.c.h.b16 %v2101
      %v2281 = vunpack.c.l.b16 %v2102
      %v2282 = vunpack.c.h.b16 %v2102
      %v2283 = vunpack.c.l.b16 %v2103
      %v2284 = vunpack.c.h.b16 %v2103
      %v2285 = vunpack.c.l.b16 %v2104
      %v2286 = vunpack.c.h.b16 %v2104
      %v2287 = vunpack.c.l.b16 %v2105
      %v2288 = vunpack.c.h.b16 %v2105
      %v2289 = vunpack.c.l.b16 %v2106
      %v2290 = vunpack.c.h.b16 %v2106
      %v2291 = vunpack.c.l.b16 %v2107
      %v2292 = vunpack.c.h.b16 %v2107
      %v2293 = vunpack.c.l.b16 %v2108
      %v2294 = vunpack.c.h.b16 %v2108
      %v2295 = vunpack.c.l.b16 %v2109
      %v2296 = vunpack.c.h.b16 %v2109
      %v2297 = vunpack.c.l.b16 %v2110
      %v2298 = vunpack.c.h.b16 %v2110
      %v2299 = vunpack.c.l.b16 %v2111
      %v2300 = vunpack.c.h.b16 %v2111
      %v2301 = vunpack.c.l.b16 %v2112
      %v2302 = vunpack.c.h.b16 %v2112
      %v2303 = vunpack.c.l.b16 %v2113
      %v2304 = vunpack.c.h.b16 %v2113
      %v2305 = vunpack.c.l.b16 %v2114
      %v2306 = vunpack.c.h.b16 %v2114
      %v2307 = vpack.c.b16 %v2181, %v2179
      %v2308 = vpack.c.b16 %v2182, %v2180
      %v2309 = vpack.c.b16 %v2185, %v2183
      %v2310 = vpack.c.b16 %v2186, %v2184
      %v2311 = vpack.c.b16 %v2189, %v2187
      %v2312 = vpack.c.b16 %v2190, %v2188
      %v2313 = vpack.c.b16 %v2193, %v2191
      %v2314 = vpack.c.b16 %v2194, %v2192
      %v2315 = vpack.c.b16 %v2197, %v2195
      %v2316 = vpack.c.b16 %v2198, %v2196
      %v2317 = vpack.c.b16 %v2201, %v2199
      %v2318 = vpack.c.b16 %v2202, %v2200
      %v2319 = vpack.c.b16 %v2205, %v2203
      %v2320 = vpack.c.b16 %v2206, %v2204
      %v2321 = vpack.c.b16 %v2209, %v2207
      %v2322 = vpack.c.b16 %v2210, %v2208
      %v2323 = vpack.c.b16 %v2213, %v2211
      %v2324 = vpack.c.b16 %v2214, %v2212
      %v2325 = vpack.c.b16 %v2217, %v2215
      %v2326 = vpack.c.b16 %v2218, %v2216
      %v2327 = vpack.c.b16 %v2221, %v2219
      %v2328 = vpack.c.b16 %v2222, %v2220
      %v2329 = vpack.c.b16 %v2225, %v2223
      %v2330 = vpack.c.b16 %v2226, %v2224
      %v2331 = vpack.c.b16 %v2229, %v2227
      %v2332 = vpack.c.b16 %v2230, %v2228
      %v2333 = vpack.c.b16 %v2233, %v2231
      %v2334 = vpack.c.b16 %v2234, %v2232
      %v2335 = vpack.c.b16 %v2237, %v2235
      %v2336 = vpack.c.b16 %v2238, %v2236
      %v2337 = vpack.c.b16 %v2241, %v2239
      %v2338 = vpack.c.b16 %v2242, %v2240
      %v2339 = vpack.c.b16 %v2245, %v2243
      %v2340 = vpack.c.b16 %v2246, %v2244
      %v2341 = vpack.c.b16 %v2249, %v2247
      %v2342 = vpack.c.b16 %v2250, %v2248
      %v2343 = vpack.c.b16 %v2253, %v2251
      %v2344 = vpack.c.b16 %v2254, %v2252
      %v2345 = vpack.c.b16 %v2257, %v2255
      %v2346 = vpack.c.b16 %v2258, %v2256
      %v2347 = vpack.c.b16 %v2261, %v2259
      %v2348 = vpack.c.b16 %v2262, %v2260
      %v2349 = vpack.c.b16 %v2265, %v2263
      %v2350 = vpack.c.b16 %v2266, %v2264
      %v2351 = vpack.c.b16 %v2269, %v2267
      %v2352 = vpack.c.b16 %v2270, %v2268
      %v2353 = vpack.c.b16 %v2273, %v2271
      %v2354 = vpack.c.b16 %v2274, %v2272
      %v2355 = vpack.c.b16 %v2277, %v2275
      %v2356 = vpack.c.b16 %v2278, %v2276
      %v2357 = vpack.c.b16 %v2281, %v2279
      %v2358 = vpack.c.b16 %v2282, %v2280
      %v2359 = vpack.c.b16 %v2285, %v2283
      %v2360 = vpack.c.b16 %v2286, %v2284
      %v2361 = vpack.c.b16 %v2289, %v2287
      %v2362 = vpack.c.b16 %v2290, %v2288
      %v2363 = vpack.c.b16 %v2293, %v2291
      %v2364 = vpack.c.b16 %v2294, %v2292
      %v2365 = vpack.c.b16 %v2297, %v2295
      %v2366 = vpack.c.b16 %v2298, %v2296
      %v2367 = vpack.c.b16 %v2301, %v2299
      %v2368 = vpack.c.b16 %v2302, %v2300
      %v2369 = vpack.c.b16 %v2305, %v2303
      %v2370 = vpack.c.b16 %v2306, %v2304
      %v2467 = vunpack.c.l.b16 %v1795
      %v2468 = vunpack.c.h.b16 %v1795
      %v2469 = vunpack.c.l.b16 %v1796
      %v2470 = vunpack.c.h.b16 %v1796
      %v2471 = vunpack.c.l.b16 %v1797
      %v2472 = vunpack.c.h.b16 %v1797
      %v2473 = vunpack.c.l.b16 %v1798
      %v2474 = vunpack.c.h.b16 %v1798
      %v2475 = vunpack.c.l.b16 %v1799
      %v2476 = vunpack.c.h.b16 %v1799
      %v2477 = vunpack.c.l.b16 %v1800
      %v2478 = vunpack.c.h.b16 %v1800
      %v2479 = vunpack.c.l.b16 %v1801
      %v2480 = vunpack.c.h.b16 %v1801
      %v2481 = vunpack.c.l.b16 %v1802
      %v2482 = vunpack.c.h.b16 %v1802
      %v2483 = vunpack.c.l.b16 %v1803
      %v2484 = vunpack.c.h.b16 %v1803
      %v2485 = vunpack.c.l.b16 %v1804
      %v2486 = vunpack.c.h.b16 %v1804
      %v2487 = vunpack.c.l.b16 %v1805
      %v2488 = vunpack.c.h.b16 %v1805
      %v2489 = vunpack.c.l.b16 %v1806
      %v2490 = vunpack.c.h.b16 %v1806
      %v2491 = vunpack.c.l.b16 %v1807
      %v2492 = vunpack.c.h.b16 %v1807
      %v2493 = vunpack.c.l.b16 %v1808
      %v2494 = vunpack.c.h.b16 %v1808
      %v2495 = vunpack.c.l.b16 %v1809
      %v2496 = vunpack.c.h.b16 %v1809
      %v2497 = vunpack.c.l.b16 %v1810
      %v2498 = vunpack.c.h.b16 %v1810
      %v2499 = vunpack.c.l.b16 %v1811
      %v2500 = vunpack.c.h.b16 %v1811
      %v2501 = vunpack.c.l.b16 %v1812
      %v2502 = vunpack.c.h.b16 %v1812
      %v2503 = vunpack.c.l.b16 %v1813
      %v2504 = vunpack.c.h.b16 %v1813
      %v2505 = vunpack.c.l.b16 %v1814
      %v2506 = vunpack.c.h.b16 %v1814
      %v2507 = vunpack.c.l.b16 %v1815
      %v2508 = vunpack.c.h.b16 %v1815
      %v2509 = vunpack.c.l.b16 %v1816
      %v2510 = vunpack.c.h.b16 %v1816
      %v2511 = vunpack.c.l.b16 %v1817
      %v2512 = vunpack.c.h.b16 %v1817
      %v2513 = vunpack.c.l.b16 %v1818
      %v2514 = vunpack.c.h.b16 %v1818
      %v2515 = vunpack.c.l.b16 %v1819
      %v2516 = vunpack.c.h.b16 %v1819
      %v2517 = vunpack.c.l.b16 %v1820
      %v2518 = vunpack.c.h.b16 %v1820
      %v2519 = vunpack.c.l.b16 %v1821
      %v2520 = vunpack.c.h.b16 %v1821
      %v2521 = vunpack.c.l.b16 %v1822
      %v2522 = vunpack.c.h.b16 %v1822
      %v2523 = vunpack.c.l.b16 %v1823
      %v2524 = vunpack.c.h.b16 %v1823
      %v2525 = vunpack.c.l.b16 %v1824
      %v2526 = vunpack.c.h.b16 %v1824
      %v2527 = vunpack.c.l.b16 %v1825
      %v2528 = vunpack.c.h.b16 %v1825
      %v2529 = vunpack.c.l.b16 %v1826
      %v2530 = vunpack.c.h.b16 %v1826
      %v2531 = vpack.c.b16 %v2469, %v2467
      %v2532 = vpack.c.b16 %v2470, %v2468
      %v2533 = vpack.c.b16 %v2473, %v2471
      %v2534 = vpack.c.b16 %v2474, %v2472
      %v2535 = vpack.c.b16 %v2477, %v2475
      %v2536 = vpack.c.b16 %v2478, %v2476
      %v2537 = vpack.c.b16 %v2481, %v2479
      %v2538 = vpack.c.b16 %v2482, %v2480
      %v2539 = vpack.c.b16 %v2485, %v2483
      %v2540 = vpack.c.b16 %v2486, %v2484
      %v2541 = vpack.c.b16 %v2489, %v2487
      %v2542 = vpack.c.b16 %v2490, %v2488
      %v2543 = vpack.c.b16 %v2493, %v2491
      %v2544 = vpack.c.b16 %v2494, %v2492
      %v2545 = vpack.c.b16 %v2497, %v2495
      %v2546 = vpack.c.b16 %v2498, %v2496
      %v2547 = vpack.c.b16 %v2501, %v2499
      %v2548 = vpack.c.b16 %v2502, %v2500
      %v2549 = vpack.c.b16 %v2505, %v2503
      %v2550 = vpack.c.b16 %v2506, %v2504
      %v2551 = vpack.c.b16 %v2509, %v2507
      %v2552 = vpack.c.b16 %v2510, %v2508
      %v2553 = vpack.c.b16 %v2513, %v2511
      %v2554 = vpack.c.b16 %v2514, %v2512
      %v2555 = vpack.c.b16 %v2517, %v2515
      %v2556 = vpack.c.b16 %v2518, %v2516
      %v2557 = vpack.c.b16 %v2521, %v2519
      %v2558 = vpack.c.b16 %v2522, %v2520
      %v2559 = vpack.c.b16 %v2525, %v2523
      %v2560 = vpack.c.b16 %v2526, %v2524
      %v2561 = vpack.c.b16 %v2529, %v2527
      %v2562 = vpack.c.b16 %v2530, %v2528
      %2595 = vmatpush.bf16.msra.mxu0 %v2545
      %2596 = vmatpush.bf16.msra.mxu0 %v2543
      %2597 = vmatpush.bf16.msra.mxu0 %v2541
      %2598 = vmatpush.bf16.msra.mxu0 %v2539
      %2599 = vmatpush.bf16.msra.mxu0 %v2537
      %2600 = vmatpush.bf16.msra.mxu0 %v2535
      %2601 = vmatpush.bf16.msra.mxu0 %v2533
      %2602 = vmatpush.bf16.msra.mxu0 %v2531
      %2603 = vmatmul.bf16.gmra.mxu0 %v2307
      %v2604 = vpop.f32.mrf.mxu0
      %v2605 = vadd.f32 0.0, %v2604
      %v2606 = vpop.f32.mrf.mxu0
      %v2607 = vadd.f32 0.0, %v2606
      %2608 = vmatmul.bf16.gmra.mxu0 %v2309
      %v2609 = vpop.f32.mrf.mxu0
      %v2610 = vadd.f32 0.0, %v2609
      %v2611 = vpop.f32.mrf.mxu0
      %v2612 = vadd.f32 0.0, %v2611
      %2613 = vmatmul.bf16.gmra.mxu0 %v2311
      %v2614 = vpop.f32.mrf.mxu0
      %v2615 = vadd.f32 0.0, %v2614
      %v2616 = vpop.f32.mrf.mxu0
      %v2617 = vadd.f32 0.0, %v2616
      %2618 = vmatmul.bf16.gmra.mxu0 %v2313
      %v2619 = vpop.f32.mrf.mxu0
      %v2620 = vadd.f32 0.0, %v2619
      %v2621 = vpop.f32.mrf.mxu0
      %v2622 = vadd.f32 0.0, %v2621
      %2623 = vmatmul.bf16.gmra.mxu0 %v2315
      %v2624 = vpop.f32.mrf.mxu0
      %v2625 = vadd.f32 0.0, %v2624
      %v2626 = vpop.f32.mrf.mxu0
      %v2627 = vadd.f32 0.0, %v2626
      %2628 = vmatmul.bf16.gmra.mxu0 %v2317
      %v2629 = vpop.f32.mrf.mxu0
      %v2630 = vadd.f32 0.0, %v2629
      %v2631 = vpop.f32.mrf.mxu0
      %v2632 = vadd.f32 0.0, %v2631
      %2633 = vmatmul.bf16.gmra.mxu0 %v2319
      %v2634 = vpop.f32.mrf.mxu0
      %v2635 = vadd.f32 0.0, %v2634
      %v2636 = vpop.f32.mrf.mxu0
      %v2637 = vadd.f32 0.0, %v2636
      %2638 = vmatmul.bf16.gmra.mxu0 %v2321
      %v2639 = vpop.f32.mrf.mxu0
      %v2640 = vadd.f32 0.0, %v2639
      %v2641 = vpop.f32.mrf.mxu0
      %v2642 = vadd.f32 0.0, %v2641
      %2643 = vmatmul.bf16.gmra.mxu0 %v2323
      %v2644 = vpop.f32.mrf.mxu0
      %v2645 = vadd.f32 0.0, %v2644
      %v2646 = vpop.f32.mrf.mxu0
      %v2647 = vadd.f32 0.0, %v2646
      %2648 = vmatmul.bf16.gmra.mxu0 %v2325
      %v2649 = vpop.f32.mrf.mxu0
      %v2650 = vadd.f32 0.0, %v2649
      %v2651 = vpop.f32.mrf.mxu0
      %v2652 = vadd.f32 0.0, %v2651
      %2653 = vmatmul.bf16.gmra.mxu0 %v2327
      %v2654 = vpop.f32.mrf.mxu0
      %v2655 = vadd.f32 0.0, %v2654
      %v2656 = vpop.f32.mrf.mxu0
      %v2657 = vadd.f32 0.0, %v2656
      %2658 = vmatmul.bf16.gmra.mxu0 %v2329
      %v2659 = vpop.f32.mrf.mxu0
      %v2660 = vadd.f32 0.0, %v2659
      %v2661 = vpop.f32.mrf.mxu0
      %v2662 = vadd.f32 0.0, %v2661
      %2663 = vmatmul.bf16.gmra.mxu0 %v2331
      %v2664 = vpop.f32.mrf.mxu0
      %v2665 = vadd.f32 0.0, %v2664
      %v2666 = vpop.f32.mrf.mxu0
      %v2667 = vadd.f32 0.0, %v2666
      %2668 = vmatmul.bf16.gmra.mxu0 %v2333
      %v2669 = vpop.f32.mrf.mxu0
      %v2670 = vadd.f32 0.0, %v2669
      %v2671 = vpop.f32.mrf.mxu0
      %v2672 = vadd.f32 0.0, %v2671
      %2673 = vmatmul.bf16.gmra.mxu0 %v2335
      %v2674 = vpop.f32.mrf.mxu0
      %v2675 = vadd.f32 0.0, %v2674
      %v2676 = vpop.f32.mrf.mxu0
      %v2677 = vadd.f32 0.0, %v2676
      %2678 = vmatmul.bf16.gmra.mxu0 %v2337
      %v2679 = vpop.f32.mrf.mxu0
      %v2680 = vadd.f32 0.0, %v2679
      %v2681 = vpop.f32.mrf.mxu0
      %v2682 = vadd.f32 0.0, %v2681
      %2683 = vmatmul.bf16.gmra.mxu0 %v2339
      %v2684 = vpop.f32.mrf.mxu0
      %v2685 = vadd.f32 0.0, %v2684
      %v2686 = vpop.f32.mrf.mxu0
      %v2687 = vadd.f32 0.0, %v2686
      %2688 = vmatmul.bf16.gmra.mxu0 %v2341
      %v2689 = vpop.f32.mrf.mxu0
      %v2690 = vadd.f32 0.0, %v2689
      %v2691 = vpop.f32.mrf.mxu0
      %v2692 = vadd.f32 0.0, %v2691
      %2693 = vmatmul.bf16.gmra.mxu0 %v2343
      %v2694 = vpop.f32.mrf.mxu0
      %v2695 = vadd.f32 0.0, %v2694
      %v2696 = vpop.f32.mrf.mxu0
      %v2697 = vadd.f32 0.0, %v2696
      %2698 = vmatmul.bf16.gmra.mxu0 %v2345
      %v2699 = vpop.f32.mrf.mxu0
      %v2700 = vadd.f32 0.0, %v2699
      %v2701 = vpop.f32.mrf.mxu0
      %v2702 = vadd.f32 0.0, %v2701
      %2703 = vmatmul.bf16.gmra.mxu0 %v2347
      %v2704 = vpop.f32.mrf.mxu0
      %v2705 = vadd.f32 0.0, %v2704
      %v2706 = vpop.f32.mrf.mxu0
      %v2707 = vadd.f32 0.0, %v2706
      %2708 = vmatmul.bf16.gmra.mxu0 %v2349
      %v2709 = vpop.f32.mrf.mxu0
      %v2710 = vadd.f32 0.0, %v2709
      %v2711 = vpop.f32.mrf.mxu0
      %v2712 = vadd.f32 0.0, %v2711
      %2713 = vmatmul.bf16.gmra.mxu0 %v2351
      %v2714 = vpop.f32.mrf.mxu0
      %v2715 = vadd.f32 0.0, %v2714
      %v2716 = vpop.f32.mrf.mxu0
      %v2717 = vadd.f32 0.0, %v2716
      %2718 = vmatmul.bf16.gmra.mxu0 %v2353
      %v2719 = vpop.f32.mrf.mxu0
      %v2720 = vadd.f32 0.0, %v2719
      %v2721 = vpop.f32.mrf.mxu0
      %v2722 = vadd.f32 0.0, %v2721
      %2723 = vmatmul.bf16.gmra.mxu0 %v2355
      %v2724 = vpop.f32.mrf.mxu0
      %v2725 = vadd.f32 0.0, %v2724
      %v2726 = vpop.f32.mrf.mxu0
      %v2727 = vadd.f32 0.0, %v2726
      %2728 = vmatmul.bf16.gmra.mxu0 %v2357
      %v2729 = vpop.f32.mrf.mxu0
      %v2730 = vadd.f32 0.0, %v2729
      %v2731 = vpop.f32.mrf.mxu0
      %v2732 = vadd.f32 0.0, %v2731
      %2733 = vmatmul.bf16.gmra.mxu0 %v2359
      %v2734 = vpop.f32.mrf.mxu0
      %v2735 = vadd.f32 0.0, %v2734
      %v2736 = vpop.f32.mrf.mxu0
      %v2737 = vadd.f32 0.0, %v2736
      %2738 = vmatmul.bf16.gmra.mxu0 %v2361
      %v2739 = vpop.f32.mrf.mxu0
      %v2740 = vadd.f32 0.0, %v2739
      %v2741 = vpop.f32.mrf.mxu0
      %v2742 = vadd.f32 0.0, %v2741
      %2743 = vmatmul.bf16.gmra.mxu0 %v2363
      %v2744 = vpop.f32.mrf.mxu0
      %v2745 = vadd.f32 0.0, %v2744
      %v2746 = vpop.f32.mrf.mxu0
      %v2747 = vadd.f32 0.0, %v2746
      %2748 = vmatmul.bf16.gmra.mxu0 %v2365
      %v2749 = vpop.f32.mrf.mxu0
      %v2750 = vadd.f32 0.0, %v2749
      %v2751 = vpop.f32.mrf.mxu0
      %v2752 = vadd.f32 0.0, %v2751
      %2753 = vmatmul.bf16.gmra.mxu0 %v2367
      %v2754 = vpop.f32.mrf.mxu0
      %v2755 = vadd.f32 0.0, %v2754
      %v2756 = vpop.f32.mrf.mxu0
      %v2757 = vadd.f32 0.0, %v2756
      %2758 = vmatmul.bf16.gmra.mxu0 %v2369
      %v2759 = vpop.f32.mrf.mxu0
      %v2760 = vadd.f32 0.0, %v2759
      %v2761 = vpop.f32.mrf.mxu0
      %v2762 = vadd.f32 0.0, %v2761
      %2763 = vdwg.mxu0
      %2764 = vmatpush.bf16.msra.mxu0 %v2561
      %2765 = vmatpush.bf16.msra.mxu0 %v2559
      %2766 = vmatpush.bf16.msra.mxu0 %v2557
      %2767 = vmatpush.bf16.msra.mxu0 %v2555
      %2768 = vmatpush.bf16.msra.mxu0 %v2553
      %2769 = vmatpush.bf16.msra.mxu0 %v2551
      %2770 = vmatpush.bf16.msra.mxu0 %v2549
      %2771 = vmatpush.bf16.msra.mxu0 %v2547
      %2772 = vmatmul.bf16.gmra.mxu0 %v2308
      %v2773 = vpop.f32.mrf.mxu0
      %v2774 = vadd.f32 %v2605, %v2773
      %v2775 = vpop.f32.mrf.mxu0
      %v2776 = vadd.f32 %v2607, %v2775
      %2777 = vmatmul.bf16.gmra.mxu0 %v2310
      %v2778 = vpop.f32.mrf.mxu0
      %v2779 = vadd.f32 %v2610, %v2778
      %v2780 = vpop.f32.mrf.mxu0
      %v2781 = vadd.f32 %v2612, %v2780
      %2782 = vmatmul.bf16.gmra.mxu0 %v2312
      %v2783 = vpop.f32.mrf.mxu0
      %v2784 = vadd.f32 %v2615, %v2783
      %v2785 = vpop.f32.mrf.mxu0
      %v2786 = vadd.f32 %v2617, %v2785
      %2787 = vmatmul.bf16.gmra.mxu0 %v2314
      %v2788 = vpop.f32.mrf.mxu0
      %v2789 = vadd.f32 %v2620, %v2788
      %v2790 = vpop.f32.mrf.mxu0
      %v2791 = vadd.f32 %v2622, %v2790
      %2792 = vmatmul.bf16.gmra.mxu0 %v2316
      %v2793 = vpop.f32.mrf.mxu0
      %v2794 = vadd.f32 %v2625, %v2793
      %v2795 = vpop.f32.mrf.mxu0
      %v2796 = vadd.f32 %v2627, %v2795
      %2797 = vmatmul.bf16.gmra.mxu0 %v2318
      %v2798 = vpop.f32.mrf.mxu0
      %v2799 = vadd.f32 %v2630, %v2798
      %v2800 = vpop.f32.mrf.mxu0
      %v2801 = vadd.f32 %v2632, %v2800
      %2802 = vmatmul.bf16.gmra.mxu0 %v2320
      %v2803 = vpop.f32.mrf.mxu0
      %v2804 = vadd.f32 %v2635, %v2803
      %v2805 = vpop.f32.mrf.mxu0
      %v2806 = vadd.f32 %v2637, %v2805
      %2807 = vmatmul.bf16.gmra.mxu0 %v2322
      %v2808 = vpop.f32.mrf.mxu0
      %v2809 = vadd.f32 %v2640, %v2808
      %v2810 = vpop.f32.mrf.mxu0
      %v2811 = vadd.f32 %v2642, %v2810
      %2812 = vmatmul.bf16.gmra.mxu0 %v2324
      %v2813 = vpop.f32.mrf.mxu0
      %v2814 = vadd.f32 %v2645, %v2813
      %v2815 = vpop.f32.mrf.mxu0
      %v2816 = vadd.f32 %v2647, %v2815
      %2817 = vmatmul.bf16.gmra.mxu0 %v2326
      %v2818 = vpop.f32.mrf.mxu0
      %v2819 = vadd.f32 %v2650, %v2818
      %v2820 = vpop.f32.mrf.mxu0
      %v2821 = vadd.f32 %v2652, %v2820
      %2822 = vmatmul.bf16.gmra.mxu0 %v2328
      %v2823 = vpop.f32.mrf.mxu0
      %v2824 = vadd.f32 %v2655, %v2823
      %v2825 = vpop.f32.mrf.mxu0
      %v2826 = vadd.f32 %v2657, %v2825
      %2827 = vmatmul.bf16.gmra.mxu0 %v2330
      %v2828 = vpop.f32.mrf.mxu0
      %v2829 = vadd.f32 %v2660, %v2828
      %v2830 = vpop.f32.mrf.mxu0
      %v2831 = vadd.f32 %v2662, %v2830
      %2832 = vmatmul.bf16.gmra.mxu0 %v2332
      %v2833 = vpop.f32.mrf.mxu0
      %v2834 = vadd.f32 %v2665, %v2833
      %v2835 = vpop.f32.mrf.mxu0
      %v2836 = vadd.f32 %v2667, %v2835
      %2837 = vmatmul.bf16.gmra.mxu0 %v2334
      %v2838 = vpop.f32.mrf.mxu0
      %v2839 = vadd.f32 %v2670, %v2838
      %v2840 = vpop.f32.mrf.mxu0
      %v2841 = vadd.f32 %v2672, %v2840
      %2842 = vmatmul.bf16.gmra.mxu0 %v2336
      %v2843 = vpop.f32.mrf.mxu0
      %v2844 = vadd.f32 %v2675, %v2843
      %v2845 = vpop.f32.mrf.mxu0
      %v2846 = vadd.f32 %v2677, %v2845
      %2847 = vmatmul.bf16.gmra.mxu0 %v2338
      %v2848 = vpop.f32.mrf.mxu0
      %v2849 = vadd.f32 %v2680, %v2848
      %v2850 = vpop.f32.mrf.mxu0
      %v2851 = vadd.f32 %v2682, %v2850
      %2852 = vmatmul.bf16.gmra.mxu0 %v2340
      %v2853 = vpop.f32.mrf.mxu0
      %v2854 = vadd.f32 %v2685, %v2853
      %v2855 = vpop.f32.mrf.mxu0
      %v2856 = vadd.f32 %v2687, %v2855
      %2857 = vmatmul.bf16.gmra.mxu0 %v2342
      %v2858 = vpop.f32.mrf.mxu0
      %v2859 = vadd.f32 %v2690, %v2858
      %v2860 = vpop.f32.mrf.mxu0
      %v2861 = vadd.f32 %v2692, %v2860
      %2862 = vmatmul.bf16.gmra.mxu0 %v2344
      %v2863 = vpop.f32.mrf.mxu0
      %v2864 = vadd.f32 %v2695, %v2863
      %v2865 = vpop.f32.mrf.mxu0
      %v2866 = vadd.f32 %v2697, %v2865
      %2867 = vmatmul.bf16.gmra.mxu0 %v2346
      %v2868 = vpop.f32.mrf.mxu0
      %v2869 = vadd.f32 %v2700, %v2868
      %v2870 = vpop.f32.mrf.mxu0
      %v2871 = vadd.f32 %v2702, %v2870
      %2872 = vmatmul.bf16.gmra.mxu0 %v2348
      %v2873 = vpop.f32.mrf.mxu0
      %v2874 = vadd.f32 %v2705, %v2873
      %v2875 = vpop.f32.mrf.mxu0
      %v2876 = vadd.f32 %v2707, %v2875
      %2877 = vmatmul.bf16.gmra.mxu0 %v2350
      %v2878 = vpop.f32.mrf.mxu0
      %v2879 = vadd.f32 %v2710, %v2878
      %v2880 = vpop.f32.mrf.mxu0
      %v2881 = vadd.f32 %v2712, %v2880
      %2882 = vmatmul.bf16.gmra.mxu0 %v2352
      %v2883 = vpop.f32.mrf.mxu0
      %v2884 = vadd.f32 %v2715, %v2883
      %v2885 = vpop.f32.mrf.mxu0
      %v2886 = vadd.f32 %v2717, %v2885
      %2887 = vmatmul.bf16.gmra.mxu0 %v2354
      %v2888 = vpop.f32.mrf.mxu0
      %v2889 = vadd.f32 %v2720, %v2888
      %v2890 = vpop.f32.mrf.mxu0
      %v2891 = vadd.f32 %v2722, %v2890
      %2892 = vmatmul.bf16.gmra.mxu0 %v2356
      %v2893 = vpop.f32.mrf.mxu0
      %v2894 = vadd.f32 %v2725, %v2893
      %v2895 = vpop.f32.mrf.mxu0
      %v2896 = vadd.f32 %v2727, %v2895
      %2897 = vmatmul.bf16.gmra.mxu0 %v2358
      %v2898 = vpop.f32.mrf.mxu0
      %v2899 = vadd.f32 %v2730, %v2898
      %v2900 = vpop.f32.mrf.mxu0
      %v2901 = vadd.f32 %v2732, %v2900
      %2902 = vmatmul.bf16.gmra.mxu0 %v2360
      %v2903 = vpop.f32.mrf.mxu0
      %v2904 = vadd.f32 %v2735, %v2903
      %v2905 = vpop.f32.mrf.mxu0
      %v2906 = vadd.f32 %v2737, %v2905
      %2907 = vmatmul.bf16.gmra.mxu0 %v2362
      %v2908 = vpop.f32.mrf.mxu0
      %v2909 = vadd.f32 %v2740, %v2908
      %v2910 = vpop.f32.mrf.mxu0
      %v2911 = vadd.f32 %v2742, %v2910
      %2912 = vmatmul.bf16.gmra.mxu0 %v2364
      %v2913 = vpop.f32.mrf.mxu0
      %v2914 = vadd.f32 %v2745, %v2913
      %v2915 = vpop.f32.mrf.mxu0
      %v2916 = vadd.f32 %v2747, %v2915
      %2917 = vmatmul.bf16.gmra.mxu0 %v2366
      %v2918 = vpop.f32.mrf.mxu0
      %v2919 = vadd.f32 %v2750, %v2918
      %v2920 = vpop.f32.mrf.mxu0
      %v2921 = vadd.f32 %v2752, %v2920
      %2922 = vmatmul.bf16.gmra.mxu0 %v2368
      %v2923 = vpop.f32.mrf.mxu0
      %v2924 = vadd.f32 %v2755, %v2923
      %v2925 = vpop.f32.mrf.mxu0
      %v2926 = vadd.f32 %v2757, %v2925
      %2927 = vmatmul.bf16.gmra.mxu0 %v2370
      %v2928 = vpop.f32.mrf.mxu0
      %v2929 = vadd.f32 %v2760, %v2928
      %v2930 = vpop.f32.mrf.mxu0
      %v2931 = vadd.f32 %v2762, %v2930
      %2932 = vdwg.mxu0
      %2933 = vmatpush.bf16.msra.mxu0 %v2546
      %2934 = vmatpush.bf16.msra.mxu0 %v2544
      %2935 = vmatpush.bf16.msra.mxu0 %v2542
      %2936 = vmatpush.bf16.msra.mxu0 %v2540
      %2937 = vmatpush.bf16.msra.mxu0 %v2538
      %2938 = vmatpush.bf16.msra.mxu0 %v2536
      %2939 = vmatpush.bf16.msra.mxu0 %v2534
      %2940 = vmatpush.bf16.msra.mxu0 %v2532
      %2941 = vmatmul.bf16.gmra.mxu0 %v2307
      %v2942 = vpop.f32.mrf.mxu0
      %v2943 = vadd.f32 0.0, %v2942
      %v2944 = vpop.f32.mrf.mxu0
      %v2945 = vadd.f32 0.0, %v2944
      %2946 = vmatmul.bf16.gmra.mxu0 %v2309
      %v2947 = vpop.f32.mrf.mxu0
      %v2948 = vadd.f32 0.0, %v2947
      %v2949 = vpop.f32.mrf.mxu0
      %v2950 = vadd.f32 0.0, %v2949
      %2951 = vmatmul.bf16.gmra.mxu0 %v2311
      %v2952 = vpop.f32.mrf.mxu0
      %v2953 = vadd.f32 0.0, %v2952
      %v2954 = vpop.f32.mrf.mxu0
      %v2955 = vadd.f32 0.0, %v2954
      %2956 = vmatmul.bf16.gmra.mxu0 %v2313
      %v2957 = vpop.f32.mrf.mxu0
      %v2958 = vadd.f32 0.0, %v2957
      %v2959 = vpop.f32.mrf.mxu0
      %v2960 = vadd.f32 0.0, %v2959
      %2961 = vmatmul.bf16.gmra.mxu0 %v2315
      %v2962 = vpop.f32.mrf.mxu0
      %v2963 = vadd.f32 0.0, %v2962
      %v2964 = vpop.f32.mrf.mxu0
      %v2965 = vadd.f32 0.0, %v2964
      %2966 = vmatmul.bf16.gmra.mxu0 %v2317
      %v2967 = vpop.f32.mrf.mxu0
      %v2968 = vadd.f32 0.0, %v2967
      %v2969 = vpop.f32.mrf.mxu0
      %v2970 = vadd.f32 0.0, %v2969
      %2971 = vmatmul.bf16.gmra.mxu0 %v2319
      %v2972 = vpop.f32.mrf.mxu0
      %v2973 = vadd.f32 0.0, %v2972
      %v2974 = vpop.f32.mrf.mxu0
      %v2975 = vadd.f32 0.0, %v2974
      %2976 = vmatmul.bf16.gmra.mxu0 %v2321
      %v2977 = vpop.f32.mrf.mxu0
      %v2978 = vadd.f32 0.0, %v2977
      %v2979 = vpop.f32.mrf.mxu0
      %v2980 = vadd.f32 0.0, %v2979
      %2981 = vmatmul.bf16.gmra.mxu0 %v2323
      %v2982 = vpop.f32.mrf.mxu0
      %v2983 = vadd.f32 0.0, %v2982
      %v2984 = vpop.f32.mrf.mxu0
      %v2985 = vadd.f32 0.0, %v2984
      %2986 = vmatmul.bf16.gmra.mxu0 %v2325
      %v2987 = vpop.f32.mrf.mxu0
      %v2988 = vadd.f32 0.0, %v2987
      %v2989 = vpop.f32.mrf.mxu0
      %v2990 = vadd.f32 0.0, %v2989
      %2991 = vmatmul.bf16.gmra.mxu0 %v2327
      %v2992 = vpop.f32.mrf.mxu0
      %v2993 = vadd.f32 0.0, %v2992
      %v2994 = vpop.f32.mrf.mxu0
      %v2995 = vadd.f32 0.0, %v2994
      %2996 = vmatmul.bf16.gmra.mxu0 %v2329
      %v2997 = vpop.f32.mrf.mxu0
      %v2998 = vadd.f32 0.0, %v2997
      %v2999 = vpop.f32.mrf.mxu0
      %v3000 = vadd.f32 0.0, %v2999
      %3001 = vmatmul.bf16.gmra.mxu0 %v2331
      %v3002 = vpop.f32.mrf.mxu0
      %v3003 = vadd.f32 0.0, %v3002
      %v3004 = vpop.f32.mrf.mxu0
      %v3005 = vadd.f32 0.0, %v3004
      %3006 = vmatmul.bf16.gmra.mxu0 %v2333
      %v3007 = vpop.f32.mrf.mxu0
      %v3008 = vadd.f32 0.0, %v3007
      %v3009 = vpop.f32.mrf.mxu0
      %v3010 = vadd.f32 0.0, %v3009
      %3011 = vmatmul.bf16.gmra.mxu0 %v2335
      %v3012 = vpop.f32.mrf.mxu0
      %v3013 = vadd.f32 0.0, %v3012
      %v3014 = vpop.f32.mrf.mxu0
      %v3015 = vadd.f32 0.0, %v3014
      %3016 = vmatmul.bf16.gmra.mxu0 %v2337
      %v3017 = vpop.f32.mrf.mxu0
      %v3018 = vadd.f32 0.0, %v3017
      %v3019 = vpop.f32.mrf.mxu0
      %v3020 = vadd.f32 0.0, %v3019
      %3021 = vmatmul.bf16.gmra.mxu0 %v2339
      %v3022 = vpop.f32.mrf.mxu0
      %v3023 = vadd.f32 0.0, %v3022
      %v3024 = vpop.f32.mrf.mxu0
      %v3025 = vadd.f32 0.0, %v3024
      %3026 = vmatmul.bf16.gmra.mxu0 %v2341
      %v3027 = vpop.f32.mrf.mxu0
      %v3028 = vadd.f32 0.0, %v3027
      %v3029 = vpop.f32.mrf.mxu0
      %v3030 = vadd.f32 0.0, %v3029
      %3031 = vmatmul.bf16.gmra.mxu0 %v2343
      %v3032 = vpop.f32.mrf.mxu0
      %v3033 = vadd.f32 0.0, %v3032
      %v3034 = vpop.f32.mrf.mxu0
      %v3035 = vadd.f32 0.0, %v3034
      %3036 = vmatmul.bf16.gmra.mxu0 %v2345
      %v3037 = vpop.f32.mrf.mxu0
      %v3038 = vadd.f32 0.0, %v3037
      %v3039 = vpop.f32.mrf.mxu0
      %v3040 = vadd.f32 0.0, %v3039
      %3041 = vmatmul.bf16.gmra.mxu0 %v2347
      %v3042 = vpop.f32.mrf.mxu0
      %v3043 = vadd.f32 0.0, %v3042
      %v3044 = vpop.f32.mrf.mxu0
      %v3045 = vadd.f32 0.0, %v3044
      %3046 = vmatmul.bf16.gmra.mxu0 %v2349
      %v3047 = vpop.f32.mrf.mxu0
      %v3048 = vadd.f32 0.0, %v3047
      %v3049 = vpop.f32.mrf.mxu0
      %v3050 = vadd.f32 0.0, %v3049
      %3051 = vmatmul.bf16.gmra.mxu0 %v2351
      %v3052 = vpop.f32.mrf.mxu0
      %v3053 = vadd.f32 0.0, %v3052
      %v3054 = vpop.f32.mrf.mxu0
      %v3055 = vadd.f32 0.0, %v3054
      %3056 = vmatmul.bf16.gmra.mxu0 %v2353
      %v3057 = vpop.f32.mrf.mxu0
      %v3058 = vadd.f32 0.0, %v3057
      %v3059 = vpop.f32.mrf.mxu0
      %v3060 = vadd.f32 0.0, %v3059
      %3061 = vmatmul.bf16.gmra.mxu0 %v2355
      %v3062 = vpop.f32.mrf.mxu0
      %v3063 = vadd.f32 0.0, %v3062
      %v3064 = vpop.f32.mrf.mxu0
      %v3065 = vadd.f32 0.0, %v3064
      %3066 = vmatmul.bf16.gmra.mxu0 %v2357
      %v3067 = vpop.f32.mrf.mxu0
      %v3068 = vadd.f32 0.0, %v3067
      %v3069 = vpop.f32.mrf.mxu0
      %v3070 = vadd.f32 0.0, %v3069
      %3071 = vmatmul.bf16.gmra.mxu0 %v2359
      %v3072 = vpop.f32.mrf.mxu0
      %v3073 = vadd.f32 0.0, %v3072
      %v3074 = vpop.f32.mrf.mxu0
      %v3075 = vadd.f32 0.0, %v3074
      %3076 = vmatmul.bf16.gmra.mxu0 %v2361
      %v3077 = vpop.f32.mrf.mxu0
      %v3078 = vadd.f32 0.0, %v3077
      %v3079 = vpop.f32.mrf.mxu0
      %v3080 = vadd.f32 0.0, %v3079
      %3081 = vmatmul.bf16.gmra.mxu0 %v2363
      %v3082 = vpop.f32.mrf.mxu0
      %v3083 = vadd.f32 0.0, %v3082
      %v3084 = vpop.f32.mrf.mxu0
      %v3085 = vadd.f32 0.0, %v3084
      %3086 = vmatmul.bf16.gmra.mxu0 %v2365
      %v3087 = vpop.f32.mrf.mxu0
      %v3088 = vadd.f32 0.0, %v3087
      %v3089 = vpop.f32.mrf.mxu0
      %v3090 = vadd.f32 0.0, %v3089
      %3091 = vmatmul.bf16.gmra.mxu0 %v2367
      %v3092 = vpop.f32.mrf.mxu0
      %v3093 = vadd.f32 0.0, %v3092
      %v3094 = vpop.f32.mrf.mxu0
      %v3095 = vadd.f32 0.0, %v3094
      %3096 = vmatmul.bf16.gmra.mxu0 %v2369
      %v3097 = vpop.f32.mrf.mxu0
      %v3098 = vadd.f32 0.0, %v3097
      %v3099 = vpop.f32.mrf.mxu0
      %v3100 = vadd.f32 0.0, %v3099
      %3101 = vdwg.mxu0
      %3102 = vmatpush.bf16.msra.mxu0 %v2562
      %3103 = vmatpush.bf16.msra.mxu0 %v2560
      %3104 = vmatpush.bf16.msra.mxu0 %v2558
      %3105 = vmatpush.bf16.msra.mxu0 %v2556
      %3106 = vmatpush.bf16.msra.mxu0 %v2554
      %3107 = vmatpush.bf16.msra.mxu0 %v2552
      %3108 = vmatpush.bf16.msra.mxu0 %v2550
      %3109 = vmatpush.bf16.msra.mxu0 %v2548
      %3110 = vmatmul.bf16.gmra.mxu0 %v2308
      %v3111 = vpop.f32.mrf.mxu0
      %v3112 = vadd.f32 %v2943, %v3111
      %v3113 = vpop.f32.mrf.mxu0
      %v3114 = vadd.f32 %v2945, %v3113
      %3115 = vmatmul.bf16.gmra.mxu0 %v2310
      %v3116 = vpop.f32.mrf.mxu0
      %v3117 = vadd.f32 %v2948, %v3116
      %v3118 = vpop.f32.mrf.mxu0
      %v3119 = vadd.f32 %v2950, %v3118
      %3120 = vmatmul.bf16.gmra.mxu0 %v2312
      %v3121 = vpop.f32.mrf.mxu0
      %v3122 = vadd.f32 %v2953, %v3121
      %v3123 = vpop.f32.mrf.mxu0
      %v3124 = vadd.f32 %v2955, %v3123
      %3125 = vmatmul.bf16.gmra.mxu0 %v2314
      %v3126 = vpop.f32.mrf.mxu0
      %v3127 = vadd.f32 %v2958, %v3126
      %v3128 = vpop.f32.mrf.mxu0
      %v3129 = vadd.f32 %v2960, %v3128
      %3130 = vmatmul.bf16.gmra.mxu0 %v2316
      %v3131 = vpop.f32.mrf.mxu0
      %v3132 = vadd.f32 %v2963, %v3131
      %v3133 = vpop.f32.mrf.mxu0
      %v3134 = vadd.f32 %v2965, %v3133
      %3135 = vmatmul.bf16.gmra.mxu0 %v2318
      %v3136 = vpop.f32.mrf.mxu0
      %v3137 = vadd.f32 %v2968, %v3136
      %v3138 = vpop.f32.mrf.mxu0
      %v3139 = vadd.f32 %v2970, %v3138
      %3140 = vmatmul.bf16.gmra.mxu0 %v2320
      %v3141 = vpop.f32.mrf.mxu0
      %v3142 = vadd.f32 %v2973, %v3141
      %v3143 = vpop.f32.mrf.mxu0
      %v3144 = vadd.f32 %v2975, %v3143
      %3145 = vmatmul.bf16.gmra.mxu0 %v2322
      %v3146 = vpop.f32.mrf.mxu0
      %v3147 = vadd.f32 %v2978, %v3146
      %v3148 = vpop.f32.mrf.mxu0
      %v3149 = vadd.f32 %v2980, %v3148
      %3150 = vmatmul.bf16.gmra.mxu0 %v2324
      %v3151 = vpop.f32.mrf.mxu0
      %v3152 = vadd.f32 %v2983, %v3151
      %v3153 = vpop.f32.mrf.mxu0
      %v3154 = vadd.f32 %v2985, %v3153
      %3155 = vmatmul.bf16.gmra.mxu0 %v2326
      %v3156 = vpop.f32.mrf.mxu0
      %v3157 = vadd.f32 %v2988, %v3156
      %v3158 = vpop.f32.mrf.mxu0
      %v3159 = vadd.f32 %v2990, %v3158
      %3160 = vmatmul.bf16.gmra.mxu0 %v2328
      %v3161 = vpop.f32.mrf.mxu0
      %v3162 = vadd.f32 %v2993, %v3161
      %v3163 = vpop.f32.mrf.mxu0
      %v3164 = vadd.f32 %v2995, %v3163
      %3165 = vmatmul.bf16.gmra.mxu0 %v2330
      %v3166 = vpop.f32.mrf.mxu0
      %v3167 = vadd.f32 %v2998, %v3166
      %v3168 = vpop.f32.mrf.mxu0
      %v3169 = vadd.f32 %v3000, %v3168
      %3170 = vmatmul.bf16.gmra.mxu0 %v2332
      %v3171 = vpop.f32.mrf.mxu0
      %v3172 = vadd.f32 %v3003, %v3171
      %v3173 = vpop.f32.mrf.mxu0
      %v3174 = vadd.f32 %v3005, %v3173
      %3175 = vmatmul.bf16.gmra.mxu0 %v2334
      %v3176 = vpop.f32.mrf.mxu0
      %v3177 = vadd.f32 %v3008, %v3176
      %v3178 = vpop.f32.mrf.mxu0
      %v3179 = vadd.f32 %v3010, %v3178
      %3180 = vmatmul.bf16.gmra.mxu0 %v2336
      %v3181 = vpop.f32.mrf.mxu0
      %v3182 = vadd.f32 %v3013, %v3181
      %v3183 = vpop.f32.mrf.mxu0
      %v3184 = vadd.f32 %v3015, %v3183
      %3185 = vmatmul.bf16.gmra.mxu0 %v2338
      %v3186 = vpop.f32.mrf.mxu0
      %v3187 = vadd.f32 %v3018, %v3186
      %v3188 = vpop.f32.mrf.mxu0
      %v3189 = vadd.f32 %v3020, %v3188
      %3190 = vmatmul.bf16.gmra.mxu0 %v2340
      %v3191 = vpop.f32.mrf.mxu0
      %v3192 = vadd.f32 %v3023, %v3191
      %v3193 = vpop.f32.mrf.mxu0
      %v3194 = vadd.f32 %v3025, %v3193
      %3195 = vmatmul.bf16.gmra.mxu0 %v2342
      %v3196 = vpop.f32.mrf.mxu0
      %v3197 = vadd.f32 %v3028, %v3196
      %v3198 = vpop.f32.mrf.mxu0
      %v3199 = vadd.f32 %v3030, %v3198
      %3200 = vmatmul.bf16.gmra.mxu0 %v2344
      %v3201 = vpop.f32.mrf.mxu0
      %v3202 = vadd.f32 %v3033, %v3201
      %v3203 = vpop.f32.mrf.mxu0
      %v3204 = vadd.f32 %v3035, %v3203
      %3205 = vmatmul.bf16.gmra.mxu0 %v2346
      %v3206 = vpop.f32.mrf.mxu0
      %v3207 = vadd.f32 %v3038, %v3206
      %v3208 = vpop.f32.mrf.mxu0
      %v3209 = vadd.f32 %v3040, %v3208
      %3210 = vmatmul.bf16.gmra.mxu0 %v2348
      %v3211 = vpop.f32.mrf.mxu0
      %v3212 = vadd.f32 %v3043, %v3211
      %v3213 = vpop.f32.mrf.mxu0
      %v3214 = vadd.f32 %v3045, %v3213
      %3215 = vmatmul.bf16.gmra.mxu0 %v2350
      %v3216 = vpop.f32.mrf.mxu0
      %v3217 = vadd.f32 %v3048, %v3216
      %v3218 = vpop.f32.mrf.mxu0
      %v3219 = vadd.f32 %v3050, %v3218
      %3220 = vmatmul.bf16.gmra.mxu0 %v2352
      %v3221 = vpop.f32.mrf.mxu0
      %v3222 = vadd.f32 %v3053, %v3221
      %v3223 = vpop.f32.mrf.mxu0
      %v3224 = vadd.f32 %v3055, %v3223
      %3225 = vmatmul.bf16.gmra.mxu0 %v2354
      %v3226 = vpop.f32.mrf.mxu0
      %v3227 = vadd.f32 %v3058, %v3226
      %v3228 = vpop.f32.mrf.mxu0
      %v3229 = vadd.f32 %v3060, %v3228
      %3230 = vmatmul.bf16.gmra.mxu0 %v2356
      %v3231 = vpop.f32.mrf.mxu0
      %v3232 = vadd.f32 %v3063, %v3231
      %v3233 = vpop.f32.mrf.mxu0
      %v3234 = vadd.f32 %v3065, %v3233
      %3235 = vmatmul.bf16.gmra.mxu0 %v2358
      %v3236 = vpop.f32.mrf.mxu0
      %v3237 = vadd.f32 %v3068, %v3236
      %v3238 = vpop.f32.mrf.mxu0
      %v3239 = vadd.f32 %v3070, %v3238
      %3240 = vmatmul.bf16.gmra.mxu0 %v2360
      %v3241 = vpop.f32.mrf.mxu0
      %v3242 = vadd.f32 %v3073, %v3241
      %v3243 = vpop.f32.mrf.mxu0
      %v3244 = vadd.f32 %v3075, %v3243
      %3245 = vmatmul.bf16.gmra.mxu0 %v2362
      %v3246 = vpop.f32.mrf.mxu0
      %v3247 = vadd.f32 %v3078, %v3246
      %v3248 = vpop.f32.mrf.mxu0
      %v3249 = vadd.f32 %v3080, %v3248
      %3250 = vmatmul.bf16.gmra.mxu0 %v2364
      %v3251 = vpop.f32.mrf.mxu0
      %v3252 = vadd.f32 %v3083, %v3251
      %v3253 = vpop.f32.mrf.mxu0
      %v3254 = vadd.f32 %v3085, %v3253
      %3255 = vmatmul.bf16.gmra.mxu0 %v2366
      %v3256 = vpop.f32.mrf.mxu0
      %v3257 = vadd.f32 %v3088, %v3256
      %v3258 = vpop.f32.mrf.mxu0
      %v3259 = vadd.f32 %v3090, %v3258
      %3260 = vmatmul.bf16.gmra.mxu0 %v2368
      %v3261 = vpop.f32.mrf.mxu0
      %v3262 = vadd.f32 %v3093, %v3261
      %v3263 = vpop.f32.mrf.mxu0
      %v3264 = vadd.f32 %v3095, %v3263
      %3265 = vmatmul.bf16.gmra.mxu0 %v2370
      %v3266 = vpop.f32.mrf.mxu0
      %v3267 = vadd.f32 %v3098, %v3266
      %v3268 = vpop.f32.mrf.mxu0
      %v3269 = vadd.f32 %v3100, %v3268
      %3270 = vdwg.mxu0
      %v3335 = vunpack.c.l.b16 %v1987
      %v3336 = vunpack.c.h.b16 %v1987
      %v3337 = vunpack.c.l.b16 %v1988
      %v3338 = vunpack.c.h.b16 %v1988
      %v3339 = vunpack.c.l.b16 %v1989
      %v3340 = vunpack.c.h.b16 %v1989
      %v3341 = vunpack.c.l.b16 %v1990
      %v3342 = vunpack.c.h.b16 %v1990
      %v3343 = vunpack.c.l.b16 %v1991
      %v3344 = vunpack.c.h.b16 %v1991
      %v3345 = vunpack.c.l.b16 %v1992
      %v3346 = vunpack.c.h.b16 %v1992
      %v3347 = vunpack.c.l.b16 %v1993
      %v3348 = vunpack.c.h.b16 %v1993
      %v3349 = vunpack.c.l.b16 %v1994
      %v3350 = vunpack.c.h.b16 %v1994
      %v3351 = vunpack.c.l.b16 %v1995
      %v3352 = vunpack.c.h.b16 %v1995
      %v3353 = vunpack.c.l.b16 %v1996
      %v3354 = vunpack.c.h.b16 %v1996
      %v3355 = vunpack.c.l.b16 %v1997
      %v3356 = vunpack.c.h.b16 %v1997
      %v3357 = vunpack.c.l.b16 %v1998
      %v3358 = vunpack.c.h.b16 %v1998
      %v3359 = vunpack.c.l.b16 %v1999
      %v3360 = vunpack.c.h.b16 %v1999
      %v3361 = vunpack.c.l.b16 %v2000
      %v3362 = vunpack.c.h.b16 %v2000
      %v3363 = vunpack.c.l.b16 %v2001
      %v3364 = vunpack.c.h.b16 %v2001
      %v3365 = vunpack.c.l.b16 %v2002
      %v3366 = vunpack.c.h.b16 %v2002
      %v3367 = vunpack.c.l.b16 %v2003
      %v3368 = vunpack.c.h.b16 %v2003
      %v3369 = vunpack.c.l.b16 %v2004
      %v3370 = vunpack.c.h.b16 %v2004
      %v3371 = vunpack.c.l.b16 %v2005
      %v3372 = vunpack.c.h.b16 %v2005
      %v3373 = vunpack.c.l.b16 %v2006
      %v3374 = vunpack.c.h.b16 %v2006
      %v3375 = vunpack.c.l.b16 %v2007
      %v3376 = vunpack.c.h.b16 %v2007
      %v3377 = vunpack.c.l.b16 %v2008
      %v3378 = vunpack.c.h.b16 %v2008
      %v3379 = vunpack.c.l.b16 %v2009
      %v3380 = vunpack.c.h.b16 %v2009
      %v3381 = vunpack.c.l.b16 %v2010
      %v3382 = vunpack.c.h.b16 %v2010
      %v3383 = vunpack.c.l.b16 %v2011
      %v3384 = vunpack.c.h.b16 %v2011
      %v3385 = vunpack.c.l.b16 %v2012
      %v3386 = vunpack.c.h.b16 %v2012
      %v3387 = vunpack.c.l.b16 %v2013
      %v3388 = vunpack.c.h.b16 %v2013
      %v3389 = vunpack.c.l.b16 %v2014
      %v3390 = vunpack.c.h.b16 %v2014
      %v3391 = vunpack.c.l.b16 %v2015
      %v3392 = vunpack.c.h.b16 %v2015
      %v3393 = vunpack.c.l.b16 %v2016
      %v3394 = vunpack.c.h.b16 %v2016
      %v3395 = vunpack.c.l.b16 %v2017
      %v3396 = vunpack.c.h.b16 %v2017
      %v3397 = vunpack.c.l.b16 %v2018
      %v3398 = vunpack.c.h.b16 %v2018
      %v3399 = vunpack.c.l.b16 %v2019
      %v3400 = vunpack.c.h.b16 %v2019
      %v3401 = vunpack.c.l.b16 %v2020
      %v3402 = vunpack.c.h.b16 %v2020
      %v3403 = vunpack.c.l.b16 %v2021
      %v3404 = vunpack.c.h.b16 %v2021
      %v3405 = vunpack.c.l.b16 %v2022
      %v3406 = vunpack.c.h.b16 %v2022
      %v3407 = vunpack.c.l.b16 %v2023
      %v3408 = vunpack.c.h.b16 %v2023
      %v3409 = vunpack.c.l.b16 %v2024
      %v3410 = vunpack.c.h.b16 %v2024
      %v3411 = vunpack.c.l.b16 %v2025
      %v3412 = vunpack.c.h.b16 %v2025
      %v3413 = vunpack.c.l.b16 %v2026
      %v3414 = vunpack.c.h.b16 %v2026
      %v3415 = vunpack.c.l.b16 %v2027
      %v3416 = vunpack.c.h.b16 %v2027
      %v3417 = vunpack.c.l.b16 %v2028
      %v3418 = vunpack.c.h.b16 %v2028
      %v3419 = vunpack.c.l.b16 %v2029
      %v3420 = vunpack.c.h.b16 %v2029
      %v3421 = vunpack.c.l.b16 %v2030
      %v3422 = vunpack.c.h.b16 %v2030
      %v3423 = vunpack.c.l.b16 %v2031
      %v3424 = vunpack.c.h.b16 %v2031
      %v3425 = vunpack.c.l.b16 %v2032
      %v3426 = vunpack.c.h.b16 %v2032
      %v3427 = vunpack.c.l.b16 %v2033
      %v3428 = vunpack.c.h.b16 %v2033
      %v3429 = vunpack.c.l.b16 %v2034
      %v3430 = vunpack.c.h.b16 %v2034
      %v3431 = vunpack.c.l.b16 %v2035
      %v3432 = vunpack.c.h.b16 %v2035
      %v3433 = vunpack.c.l.b16 %v2036
      %v3434 = vunpack.c.h.b16 %v2036
      %v3435 = vunpack.c.l.b16 %v2037
      %v3436 = vunpack.c.h.b16 %v2037
      %v3437 = vunpack.c.l.b16 %v2038
      %v3438 = vunpack.c.h.b16 %v2038
      %v3439 = vunpack.c.l.b16 %v2039
      %v3440 = vunpack.c.h.b16 %v2039
      %v3441 = vunpack.c.l.b16 %v2040
      %v3442 = vunpack.c.h.b16 %v2040
      %v3443 = vunpack.c.l.b16 %v2041
      %v3444 = vunpack.c.h.b16 %v2041
      %v3445 = vunpack.c.l.b16 %v2042
      %v3446 = vunpack.c.h.b16 %v2042
      %v3447 = vunpack.c.l.b16 %v2043
      %v3448 = vunpack.c.h.b16 %v2043
      %v3449 = vunpack.c.l.b16 %v2044
      %v3450 = vunpack.c.h.b16 %v2044
      %v3451 = vunpack.c.l.b16 %v2045
      %v3452 = vunpack.c.h.b16 %v2045
      %v3453 = vunpack.c.l.b16 %v2046
      %v3454 = vunpack.c.h.b16 %v2046
      %v3455 = vunpack.c.l.b16 %v2047
      %v3456 = vunpack.c.h.b16 %v2047
      %v3457 = vunpack.c.l.b16 %v2048
      %v3458 = vunpack.c.h.b16 %v2048
      %v3459 = vunpack.c.l.b16 %v2049
      %v3460 = vunpack.c.h.b16 %v2049
      %v3461 = vunpack.c.l.b16 %v2050
      %v3462 = vunpack.c.h.b16 %v2050
      %v3463 = vpack.c.b16 %v3337, %v3335
      %v3464 = vpack.c.b16 %v3338, %v3336
      %v3465 = vpack.c.b16 %v3341, %v3339
      %v3466 = vpack.c.b16 %v3342, %v3340
      %v3467 = vpack.c.b16 %v3345, %v3343
      %v3468 = vpack.c.b16 %v3346, %v3344
      %v3469 = vpack.c.b16 %v3349, %v3347
      %v3470 = vpack.c.b16 %v3350, %v3348
      %v3471 = vpack.c.b16 %v3353, %v3351
      %v3472 = vpack.c.b16 %v3354, %v3352
      %v3473 = vpack.c.b16 %v3357, %v3355
      %v3474 = vpack.c.b16 %v3358, %v3356
      %v3475 = vpack.c.b16 %v3361, %v3359
      %v3476 = vpack.c.b16 %v3362, %v3360
      %v3477 = vpack.c.b16 %v3365, %v3363
      %v3478 = vpack.c.b16 %v3366, %v3364
      %v3479 = vpack.c.b16 %v3369, %v3367
      %v3480 = vpack.c.b16 %v3370, %v3368
      %v3481 = vpack.c.b16 %v3373, %v3371
      %v3482 = vpack.c.b16 %v3374, %v3372
      %v3483 = vpack.c.b16 %v3377, %v3375
      %v3484 = vpack.c.b16 %v3378, %v3376
      %v3485 = vpack.c.b16 %v3381, %v3379
      %v3486 = vpack.c.b16 %v3382, %v3380
      %v3487 = vpack.c.b16 %v3385, %v3383
      %v3488 = vpack.c.b16 %v3386, %v3384
      %v3489 = vpack.c.b16 %v3389, %v3387
      %v3490 = vpack.c.b16 %v3390, %v3388
      %v3491 = vpack.c.b16 %v3393, %v3391
      %v3492 = vpack.c.b16 %v3394, %v3392
      %v3493 = vpack.c.b16 %v3397, %v3395
      %v3494 = vpack.c.b16 %v3398, %v3396
      %v3495 = vpack.c.b16 %v3401, %v3399
      %v3496 = vpack.c.b16 %v3402, %v3400
      %v3497 = vpack.c.b16 %v3405, %v3403
      %v3498 = vpack.c.b16 %v3406, %v3404
      %v3499 = vpack.c.b16 %v3409, %v3407
      %v3500 = vpack.c.b16 %v3410, %v3408
      %v3501 = vpack.c.b16 %v3413, %v3411
      %v3502 = vpack.c.b16 %v3414, %v3412
      %v3503 = vpack.c.b16 %v3417, %v3415
      %v3504 = vpack.c.b16 %v3418, %v3416
      %v3505 = vpack.c.b16 %v3421, %v3419
      %v3506 = vpack.c.b16 %v3422, %v3420
      %v3507 = vpack.c.b16 %v3425, %v3423
      %v3508 = vpack.c.b16 %v3426, %v3424
      %v3509 = vpack.c.b16 %v3429, %v3427
      %v3510 = vpack.c.b16 %v3430, %v3428
      %v3511 = vpack.c.b16 %v3433, %v3431
      %v3512 = vpack.c.b16 %v3434, %v3432
      %v3513 = vpack.c.b16 %v3437, %v3435
      %v3514 = vpack.c.b16 %v3438, %v3436
      %v3515 = vpack.c.b16 %v3441, %v3439
      %v3516 = vpack.c.b16 %v3442, %v3440
      %v3517 = vpack.c.b16 %v3445, %v3443
      %v3518 = vpack.c.b16 %v3446, %v3444
      %v3519 = vpack.c.b16 %v3449, %v3447
      %v3520 = vpack.c.b16 %v3450, %v3448
      %v3521 = vpack.c.b16 %v3453, %v3451
      %v3522 = vpack.c.b16 %v3454, %v3452
      %v3523 = vpack.c.b16 %v3457, %v3455
      %v3524 = vpack.c.b16 %v3458, %v3456
      %v3525 = vpack.c.b16 %v3461, %v3459
      %v3526 = vpack.c.b16 %v3462, %v3460
      %3591 = vmatpush.bf16.msra.mxu0 %v2545
      %3592 = vmatpush.bf16.msra.mxu0 %v2543
      %3593 = vmatpush.bf16.msra.mxu0 %v2541
      %3594 = vmatpush.bf16.msra.mxu0 %v2539
      %3595 = vmatpush.bf16.msra.mxu0 %v2537
      %3596 = vmatpush.bf16.msra.mxu0 %v2535
      %3597 = vmatpush.bf16.msra.mxu0 %v2533
      %3598 = vmatpush.bf16.msra.mxu0 %v2531
      %3599 = vmatmul.bf16.gmra.mxu0 %v3463
      %v3600 = vpop.f32.mrf.mxu0
      %v3601 = vadd.f32 %v2774, %v3600
      %v3602 = vpop.f32.mrf.mxu0
      %v3603 = vadd.f32 %v2776, %v3602
      %3604 = vmatmul.bf16.gmra.mxu0 %v3465
      %v3605 = vpop.f32.mrf.mxu0
      %v3606 = vadd.f32 %v2779, %v3605
      %v3607 = vpop.f32.mrf.mxu0
      %v3608 = vadd.f32 %v2781, %v3607
      %3609 = vmatmul.bf16.gmra.mxu0 %v3467
      %v3610 = vpop.f32.mrf.mxu0
      %v3611 = vadd.f32 %v2784, %v3610
      %v3612 = vpop.f32.mrf.mxu0
      %v3613 = vadd.f32 %v2786, %v3612
      %3614 = vmatmul.bf16.gmra.mxu0 %v3469
      %v3615 = vpop.f32.mrf.mxu0
      %v3616 = vadd.f32 %v2789, %v3615
      %v3617 = vpop.f32.mrf.mxu0
      %v3618 = vadd.f32 %v2791, %v3617
      %3619 = vmatmul.bf16.gmra.mxu0 %v3471
      %v3620 = vpop.f32.mrf.mxu0
      %v3621 = vadd.f32 %v2794, %v3620
      %v3622 = vpop.f32.mrf.mxu0
      %v3623 = vadd.f32 %v2796, %v3622
      %3624 = vmatmul.bf16.gmra.mxu0 %v3473
      %v3625 = vpop.f32.mrf.mxu0
      %v3626 = vadd.f32 %v2799, %v3625
      %v3627 = vpop.f32.mrf.mxu0
      %v3628 = vadd.f32 %v2801, %v3627
      %3629 = vmatmul.bf16.gmra.mxu0 %v3475
      %v3630 = vpop.f32.mrf.mxu0
      %v3631 = vadd.f32 %v2804, %v3630
      %v3632 = vpop.f32.mrf.mxu0
      %v3633 = vadd.f32 %v2806, %v3632
      %3634 = vmatmul.bf16.gmra.mxu0 %v3477
      %v3635 = vpop.f32.mrf.mxu0
      %v3636 = vadd.f32 %v2809, %v3635
      %v3637 = vpop.f32.mrf.mxu0
      %v3638 = vadd.f32 %v2811, %v3637
      %3639 = vmatmul.bf16.gmra.mxu0 %v3479
      %v3640 = vpop.f32.mrf.mxu0
      %v3641 = vadd.f32 %v2814, %v3640
      %v3642 = vpop.f32.mrf.mxu0
      %v3643 = vadd.f32 %v2816, %v3642
      %3644 = vmatmul.bf16.gmra.mxu0 %v3481
      %v3645 = vpop.f32.mrf.mxu0
      %v3646 = vadd.f32 %v2819, %v3645
      %v3647 = vpop.f32.mrf.mxu0
      %v3648 = vadd.f32 %v2821, %v3647
      %3649 = vmatmul.bf16.gmra.mxu0 %v3483
      %v3650 = vpop.f32.mrf.mxu0
      %v3651 = vadd.f32 %v2824, %v3650
      %v3652 = vpop.f32.mrf.mxu0
      %v3653 = vadd.f32 %v2826, %v3652
      %3654 = vmatmul.bf16.gmra.mxu0 %v3485
      %v3655 = vpop.f32.mrf.mxu0
      %v3656 = vadd.f32 %v2829, %v3655
      %v3657 = vpop.f32.mrf.mxu0
      %v3658 = vadd.f32 %v2831, %v3657
      %3659 = vmatmul.bf16.gmra.mxu0 %v3487
      %v3660 = vpop.f32.mrf.mxu0
      %v3661 = vadd.f32 %v2834, %v3660
      %v3662 = vpop.f32.mrf.mxu0
      %v3663 = vadd.f32 %v2836, %v3662
      %3664 = vmatmul.bf16.gmra.mxu0 %v3489
      %v3665 = vpop.f32.mrf.mxu0
      %v3666 = vadd.f32 %v2839, %v3665
      %v3667 = vpop.f32.mrf.mxu0
      %v3668 = vadd.f32 %v2841, %v3667
      %3669 = vmatmul.bf16.gmra.mxu0 %v3491
      %v3670 = vpop.f32.mrf.mxu0
      %v3671 = vadd.f32 %v2844, %v3670
      %v3672 = vpop.f32.mrf.mxu0
      %v3673 = vadd.f32 %v2846, %v3672
      %3674 = vmatmul.bf16.gmra.mxu0 %v3493
      %v3675 = vpop.f32.mrf.mxu0
      %v3676 = vadd.f32 %v2849, %v3675
      %v3677 = vpop.f32.mrf.mxu0
      %v3678 = vadd.f32 %v2851, %v3677
      %3679 = vmatmul.bf16.gmra.mxu0 %v3495
      %v3680 = vpop.f32.mrf.mxu0
      %v3681 = vadd.f32 %v2854, %v3680
      %v3682 = vpop.f32.mrf.mxu0
      %v3683 = vadd.f32 %v2856, %v3682
      %3684 = vmatmul.bf16.gmra.mxu0 %v3497
      %v3685 = vpop.f32.mrf.mxu0
      %v3686 = vadd.f32 %v2859, %v3685
      %v3687 = vpop.f32.mrf.mxu0
      %v3688 = vadd.f32 %v2861, %v3687
      %3689 = vmatmul.bf16.gmra.mxu0 %v3499
      %v3690 = vpop.f32.mrf.mxu0
      %v3691 = vadd.f32 %v2864, %v3690
      %v3692 = vpop.f32.mrf.mxu0
      %v3693 = vadd.f32 %v2866, %v3692
      %3694 = vmatmul.bf16.gmra.mxu0 %v3501
      %v3695 = vpop.f32.mrf.mxu0
      %v3696 = vadd.f32 %v2869, %v3695
      %v3697 = vpop.f32.mrf.mxu0
      %v3698 = vadd.f32 %v2871, %v3697
      %3699 = vmatmul.bf16.gmra.mxu0 %v3503
      %v3700 = vpop.f32.mrf.mxu0
      %v3701 = vadd.f32 %v2874, %v3700
      %v3702 = vpop.f32.mrf.mxu0
      %v3703 = vadd.f32 %v2876, %v3702
      %3704 = vmatmul.bf16.gmra.mxu0 %v3505
      %v3705 = vpop.f32.mrf.mxu0
      %v3706 = vadd.f32 %v2879, %v3705
      %v3707 = vpop.f32.mrf.mxu0
      %v3708 = vadd.f32 %v2881, %v3707
      %3709 = vmatmul.bf16.gmra.mxu0 %v3507
      %v3710 = vpop.f32.mrf.mxu0
      %v3711 = vadd.f32 %v2884, %v3710
      %v3712 = vpop.f32.mrf.mxu0
      %v3713 = vadd.f32 %v2886, %v3712
      %3714 = vmatmul.bf16.gmra.mxu0 %v3509
      %v3715 = vpop.f32.mrf.mxu0
      %v3716 = vadd.f32 %v2889, %v3715
      %v3717 = vpop.f32.mrf.mxu0
      %v3718 = vadd.f32 %v2891, %v3717
      %3719 = vmatmul.bf16.gmra.mxu0 %v3511
      %v3720 = vpop.f32.mrf.mxu0
      %v3721 = vadd.f32 %v2894, %v3720
      %v3722 = vpop.f32.mrf.mxu0
      %v3723 = vadd.f32 %v2896, %v3722
      %3724 = vmatmul.bf16.gmra.mxu0 %v3513
      %v3725 = vpop.f32.mrf.mxu0
      %v3726 = vadd.f32 %v2899, %v3725
      %v3727 = vpop.f32.mrf.mxu0
      %v3728 = vadd.f32 %v2901, %v3727
      %3729 = vmatmul.bf16.gmra.mxu0 %v3515
      %v3730 = vpop.f32.mrf.mxu0
      %v3731 = vadd.f32 %v2904, %v3730
      %v3732 = vpop.f32.mrf.mxu0
      %v3733 = vadd.f32 %v2906, %v3732
      %3734 = vmatmul.bf16.gmra.mxu0 %v3517
      %v3735 = vpop.f32.mrf.mxu0
      %v3736 = vadd.f32 %v2909, %v3735
      %v3737 = vpop.f32.mrf.mxu0
      %v3738 = vadd.f32 %v2911, %v3737
      %3739 = vmatmul.bf16.gmra.mxu0 %v3519
      %v3740 = vpop.f32.mrf.mxu0
      %v3741 = vadd.f32 %v2914, %v3740
      %v3742 = vpop.f32.mrf.mxu0
      %v3743 = vadd.f32 %v2916, %v3742
      %3744 = vmatmul.bf16.gmra.mxu0 %v3521
      %v3745 = vpop.f32.mrf.mxu0
      %v3746 = vadd.f32 %v2919, %v3745
      %v3747 = vpop.f32.mrf.mxu0
      %v3748 = vadd.f32 %v2921, %v3747
      %3749 = vmatmul.bf16.gmra.mxu0 %v3523
      %v3750 = vpop.f32.mrf.mxu0
      %v3751 = vadd.f32 %v2924, %v3750
      %v3752 = vpop.f32.mrf.mxu0
      %v3753 = vadd.f32 %v2926, %v3752
      %3754 = vmatmul.bf16.gmra.mxu0 %v3525
      %v3755 = vpop.f32.mrf.mxu0
      %v3756 = vadd.f32 %v2929, %v3755
      %v3757 = vpop.f32.mrf.mxu0
      %v3758 = vadd.f32 %v2931, %v3757
      %3759 = vdwg.mxu0
      %3760 = vmatpush.bf16.msra.mxu0 %v2561
      %3761 = vmatpush.bf16.msra.mxu0 %v2559
      %3762 = vmatpush.bf16.msra.mxu0 %v2557
      %3763 = vmatpush.bf16.msra.mxu0 %v2555
      %3764 = vmatpush.bf16.msra.mxu0 %v2553
      %3765 = vmatpush.bf16.msra.mxu0 %v2551
      %3766 = vmatpush.bf16.msra.mxu0 %v2549
      %3767 = vmatpush.bf16.msra.mxu0 %v2547
      %3768 = vmatmul.bf16.gmra.mxu0 %v3464
      %v3769 = vpop.f32.mrf.mxu0
      %v3770 = vadd.f32 %v3601, %v3769
      %v3771 = vpop.f32.mrf.mxu0
      %v3772 = vadd.f32 %v3603, %v3771
      %3773 = vmatmul.bf16.gmra.mxu0 %v3466
      %v3774 = vpop.f32.mrf.mxu0
      %v3775 = vadd.f32 %v3606, %v3774
      %v3776 = vpop.f32.mrf.mxu0
      %v3777 = vadd.f32 %v3608, %v3776
      %3778 = vmatmul.bf16.gmra.mxu0 %v3468
      %v3779 = vpop.f32.mrf.mxu0
      %v3780 = vadd.f32 %v3611, %v3779
      %v3781 = vpop.f32.mrf.mxu0
      %v3782 = vadd.f32 %v3613, %v3781
      %3783 = vmatmul.bf16.gmra.mxu0 %v3470
      %v3784 = vpop.f32.mrf.mxu0
      %v3785 = vadd.f32 %v3616, %v3784
      %v3786 = vpop.f32.mrf.mxu0
      %v3787 = vadd.f32 %v3618, %v3786
      %3788 = vmatmul.bf16.gmra.mxu0 %v3472
      %v3789 = vpop.f32.mrf.mxu0
      %v3790 = vadd.f32 %v3621, %v3789
      %v3791 = vpop.f32.mrf.mxu0
      %v3792 = vadd.f32 %v3623, %v3791
      %3793 = vmatmul.bf16.gmra.mxu0 %v3474
      %v3794 = vpop.f32.mrf.mxu0
      %v3795 = vadd.f32 %v3626, %v3794
      %v3796 = vpop.f32.mrf.mxu0
      %v3797 = vadd.f32 %v3628, %v3796
      %3798 = vmatmul.bf16.gmra.mxu0 %v3476
      %v3799 = vpop.f32.mrf.mxu0
      %v3800 = vadd.f32 %v3631, %v3799
      %v3801 = vpop.f32.mrf.mxu0
      %v3802 = vadd.f32 %v3633, %v3801
      %3803 = vmatmul.bf16.gmra.mxu0 %v3478
      %v3804 = vpop.f32.mrf.mxu0
      %v3805 = vadd.f32 %v3636, %v3804
      %v3806 = vpop.f32.mrf.mxu0
      %v3807 = vadd.f32 %v3638, %v3806
      %3808 = vmatmul.bf16.gmra.mxu0 %v3480
      %v3809 = vpop.f32.mrf.mxu0
      %v3810 = vadd.f32 %v3641, %v3809
      %v3811 = vpop.f32.mrf.mxu0
      %v3812 = vadd.f32 %v3643, %v3811
      %3813 = vmatmul.bf16.gmra.mxu0 %v3482
      %v3814 = vpop.f32.mrf.mxu0
      %v3815 = vadd.f32 %v3646, %v3814
      %v3816 = vpop.f32.mrf.mxu0
      %v3817 = vadd.f32 %v3648, %v3816
      %3818 = vmatmul.bf16.gmra.mxu0 %v3484
      %v3819 = vpop.f32.mrf.mxu0
      %v3820 = vadd.f32 %v3651, %v3819
      %v3821 = vpop.f32.mrf.mxu0
      %v3822 = vadd.f32 %v3653, %v3821
      %3823 = vmatmul.bf16.gmra.mxu0 %v3486
      %v3824 = vpop.f32.mrf.mxu0
      %v3825 = vadd.f32 %v3656, %v3824
      %v3826 = vpop.f32.mrf.mxu0
      %v3827 = vadd.f32 %v3658, %v3826
      %3828 = vmatmul.bf16.gmra.mxu0 %v3488
      %v3829 = vpop.f32.mrf.mxu0
      %v3830 = vadd.f32 %v3661, %v3829
      %v3831 = vpop.f32.mrf.mxu0
      %v3832 = vadd.f32 %v3663, %v3831
      %3833 = vmatmul.bf16.gmra.mxu0 %v3490
      %v3834 = vpop.f32.mrf.mxu0
      %v3835 = vadd.f32 %v3666, %v3834
      %v3836 = vpop.f32.mrf.mxu0
      %v3837 = vadd.f32 %v3668, %v3836
      %3838 = vmatmul.bf16.gmra.mxu0 %v3492
      %v3839 = vpop.f32.mrf.mxu0
      %v3840 = vadd.f32 %v3671, %v3839
      %v3841 = vpop.f32.mrf.mxu0
      %v3842 = vadd.f32 %v3673, %v3841
      %3843 = vmatmul.bf16.gmra.mxu0 %v3494
      %v3844 = vpop.f32.mrf.mxu0
      %v3845 = vadd.f32 %v3676, %v3844
      %v3846 = vpop.f32.mrf.mxu0
      %v3847 = vadd.f32 %v3678, %v3846
      %3848 = vmatmul.bf16.gmra.mxu0 %v3496
      %v3849 = vpop.f32.mrf.mxu0
      %v3850 = vadd.f32 %v3681, %v3849
      %v3851 = vpop.f32.mrf.mxu0
      %v3852 = vadd.f32 %v3683, %v3851
      %3853 = vmatmul.bf16.gmra.mxu0 %v3498
      %v3854 = vpop.f32.mrf.mxu0
      %v3855 = vadd.f32 %v3686, %v3854
      %v3856 = vpop.f32.mrf.mxu0
      %v3857 = vadd.f32 %v3688, %v3856
      %3858 = vmatmul.bf16.gmra.mxu0 %v3500
      %v3859 = vpop.f32.mrf.mxu0
      %v3860 = vadd.f32 %v3691, %v3859
      %v3861 = vpop.f32.mrf.mxu0
      %v3862 = vadd.f32 %v3693, %v3861
      %3863 = vmatmul.bf16.gmra.mxu0 %v3502
      %v3864 = vpop.f32.mrf.mxu0
      %v3865 = vadd.f32 %v3696, %v3864
      %v3866 = vpop.f32.mrf.mxu0
      %v3867 = vadd.f32 %v3698, %v3866
      %3868 = vmatmul.bf16.gmra.mxu0 %v3504
      %v3869 = vpop.f32.mrf.mxu0
      %v3870 = vadd.f32 %v3701, %v3869
      %v3871 = vpop.f32.mrf.mxu0
      %v3872 = vadd.f32 %v3703, %v3871
      %3873 = vmatmul.bf16.gmra.mxu0 %v3506
      %v3874 = vpop.f32.mrf.mxu0
      %v3875 = vadd.f32 %v3706, %v3874
      %v3876 = vpop.f32.mrf.mxu0
      %v3877 = vadd.f32 %v3708, %v3876
      %3878 = vmatmul.bf16.gmra.mxu0 %v3508
      %v3879 = vpop.f32.mrf.mxu0
      %v3880 = vadd.f32 %v3711, %v3879
      %v3881 = vpop.f32.mrf.mxu0
      %v3882 = vadd.f32 %v3713, %v3881
      %3883 = vmatmul.bf16.gmra.mxu0 %v3510
      %v3884 = vpop.f32.mrf.mxu0
      %v3885 = vadd.f32 %v3716, %v3884
      %v3886 = vpop.f32.mrf.mxu0
      %v3887 = vadd.f32 %v3718, %v3886
      %3888 = vmatmul.bf16.gmra.mxu0 %v3512
      %v3889 = vpop.f32.mrf.mxu0
      %v3890 = vadd.f32 %v3721, %v3889
      %v3891 = vpop.f32.mrf.mxu0
      %v3892 = vadd.f32 %v3723, %v3891
      %3893 = vmatmul.bf16.gmra.mxu0 %v3514
      %v3894 = vpop.f32.mrf.mxu0
      %v3895 = vadd.f32 %v3726, %v3894
      %v3896 = vpop.f32.mrf.mxu0
      %v3897 = vadd.f32 %v3728, %v3896
      %3898 = vmatmul.bf16.gmra.mxu0 %v3516
      %v3899 = vpop.f32.mrf.mxu0
      %v3900 = vadd.f32 %v3731, %v3899
      %v3901 = vpop.f32.mrf.mxu0
      %v3902 = vadd.f32 %v3733, %v3901
      %3903 = vmatmul.bf16.gmra.mxu0 %v3518
      %v3904 = vpop.f32.mrf.mxu0
      %v3905 = vadd.f32 %v3736, %v3904
      %v3906 = vpop.f32.mrf.mxu0
      %v3907 = vadd.f32 %v3738, %v3906
      %3908 = vmatmul.bf16.gmra.mxu0 %v3520
      %v3909 = vpop.f32.mrf.mxu0
      %v3910 = vadd.f32 %v3741, %v3909
      %v3911 = vpop.f32.mrf.mxu0
      %v3912 = vadd.f32 %v3743, %v3911
      %3913 = vmatmul.bf16.gmra.mxu0 %v3522
      %v3914 = vpop.f32.mrf.mxu0
      %v3915 = vadd.f32 %v3746, %v3914
      %v3916 = vpop.f32.mrf.mxu0
      %v3917 = vadd.f32 %v3748, %v3916
      %3918 = vmatmul.bf16.gmra.mxu0 %v3524
      %v3919 = vpop.f32.mrf.mxu0
      %v3920 = vadd.f32 %v3751, %v3919
      %v3921 = vpop.f32.mrf.mxu0
      %v3922 = vadd.f32 %v3753, %v3921
      %3923 = vmatmul.bf16.gmra.mxu0 %v3526
      %v3924 = vpop.f32.mrf.mxu0
      %v3925 = vadd.f32 %v3756, %v3924
      %v3926 = vpop.f32.mrf.mxu0
      %v3927 = vadd.f32 %v3758, %v3926
      %3928 = vdwg.mxu0
      %3929 = vmatpush.bf16.msra.mxu0 %v2546
      %3930 = vmatpush.bf16.msra.mxu0 %v2544
      %3931 = vmatpush.bf16.msra.mxu0 %v2542
      %3932 = vmatpush.bf16.msra.mxu0 %v2540
      %3933 = vmatpush.bf16.msra.mxu0 %v2538
      %3934 = vmatpush.bf16.msra.mxu0 %v2536
      %3935 = vmatpush.bf16.msra.mxu0 %v2534
      %3936 = vmatpush.bf16.msra.mxu0 %v2532
      %3937 = vmatmul.bf16.gmra.mxu0 %v3463
      %v3938 = vpop.f32.mrf.mxu0
      %v3939 = vadd.f32 %v3112, %v3938
      %v3940 = vpop.f32.mrf.mxu0
      %v3941 = vadd.f32 %v3114, %v3940
      %3942 = vmatmul.bf16.gmra.mxu0 %v3465
      %v3943 = vpop.f32.mrf.mxu0
      %v3944 = vadd.f32 %v3117, %v3943
      %v3945 = vpop.f32.mrf.mxu0
      %v3946 = vadd.f32 %v3119, %v3945
      %3947 = vmatmul.bf16.gmra.mxu0 %v3467
      %v3948 = vpop.f32.mrf.mxu0
      %v3949 = vadd.f32 %v3122, %v3948
      %v3950 = vpop.f32.mrf.mxu0
      %v3951 = vadd.f32 %v3124, %v3950
      %3952 = vmatmul.bf16.gmra.mxu0 %v3469
      %v3953 = vpop.f32.mrf.mxu0
      %v3954 = vadd.f32 %v3127, %v3953
      %v3955 = vpop.f32.mrf.mxu0
      %v3956 = vadd.f32 %v3129, %v3955
      %3957 = vmatmul.bf16.gmra.mxu0 %v3471
      %v3958 = vpop.f32.mrf.mxu0
      %v3959 = vadd.f32 %v3132, %v3958
      %v3960 = vpop.f32.mrf.mxu0
      %v3961 = vadd.f32 %v3134, %v3960
      %3962 = vmatmul.bf16.gmra.mxu0 %v3473
      %v3963 = vpop.f32.mrf.mxu0
      %v3964 = vadd.f32 %v3137, %v3963
      %v3965 = vpop.f32.mrf.mxu0
      %v3966 = vadd.f32 %v3139, %v3965
      %3967 = vmatmul.bf16.gmra.mxu0 %v3475
      %v3968 = vpop.f32.mrf.mxu0
      %v3969 = vadd.f32 %v3142, %v3968
      %v3970 = vpop.f32.mrf.mxu0
      %v3971 = vadd.f32 %v3144, %v3970
      %3972 = vmatmul.bf16.gmra.mxu0 %v3477
      %v3973 = vpop.f32.mrf.mxu0
      %v3974 = vadd.f32 %v3147, %v3973
      %v3975 = vpop.f32.mrf.mxu0
      %v3976 = vadd.f32 %v3149, %v3975
      %3977 = vmatmul.bf16.gmra.mxu0 %v3479
      %v3978 = vpop.f32.mrf.mxu0
      %v3979 = vadd.f32 %v3152, %v3978
      %v3980 = vpop.f32.mrf.mxu0
      %v3981 = vadd.f32 %v3154, %v3980
      %3982 = vmatmul.bf16.gmra.mxu0 %v3481
      %v3983 = vpop.f32.mrf.mxu0
      %v3984 = vadd.f32 %v3157, %v3983
      %v3985 = vpop.f32.mrf.mxu0
      %v3986 = vadd.f32 %v3159, %v3985
      %3987 = vmatmul.bf16.gmra.mxu0 %v3483
      %v3988 = vpop.f32.mrf.mxu0
      %v3989 = vadd.f32 %v3162, %v3988
      %v3990 = vpop.f32.mrf.mxu0
      %v3991 = vadd.f32 %v3164, %v3990
      %3992 = vmatmul.bf16.gmra.mxu0 %v3485
      %v3993 = vpop.f32.mrf.mxu0
      %v3994 = vadd.f32 %v3167, %v3993
      %v3995 = vpop.f32.mrf.mxu0
      %v3996 = vadd.f32 %v3169, %v3995
      %3997 = vmatmul.bf16.gmra.mxu0 %v3487
      %v3998 = vpop.f32.mrf.mxu0
      %v3999 = vadd.f32 %v3172, %v3998
      %v4000 = vpop.f32.mrf.mxu0
      %v4001 = vadd.f32 %v3174, %v4000
      %4002 = vmatmul.bf16.gmra.mxu0 %v3489
      %v4003 = vpop.f32.mrf.mxu0
      %v4004 = vadd.f32 %v3177, %v4003
      %v4005 = vpop.f32.mrf.mxu0
      %v4006 = vadd.f32 %v3179, %v4005
      %4007 = vmatmul.bf16.gmra.mxu0 %v3491
      %v4008 = vpop.f32.mrf.mxu0
      %v4009 = vadd.f32 %v3182, %v4008
      %v4010 = vpop.f32.mrf.mxu0
      %v4011 = vadd.f32 %v3184, %v4010
      %4012 = vmatmul.bf16.gmra.mxu0 %v3493
      %v4013 = vpop.f32.mrf.mxu0
      %v4014 = vadd.f32 %v3187, %v4013
      %v4015 = vpop.f32.mrf.mxu0
      %v4016 = vadd.f32 %v3189, %v4015
      %4017 = vmatmul.bf16.gmra.mxu0 %v3495
      %v4018 = vpop.f32.mrf.mxu0
      %v4019 = vadd.f32 %v3192, %v4018
      %v4020 = vpop.f32.mrf.mxu0
      %v4021 = vadd.f32 %v3194, %v4020
      %4022 = vmatmul.bf16.gmra.mxu0 %v3497
      %v4023 = vpop.f32.mrf.mxu0
      %v4024 = vadd.f32 %v3197, %v4023
      %v4025 = vpop.f32.mrf.mxu0
      %v4026 = vadd.f32 %v3199, %v4025
      %4027 = vmatmul.bf16.gmra.mxu0 %v3499
      %v4028 = vpop.f32.mrf.mxu0
      %v4029 = vadd.f32 %v3202, %v4028
      %v4030 = vpop.f32.mrf.mxu0
      %v4031 = vadd.f32 %v3204, %v4030
      %4032 = vmatmul.bf16.gmra.mxu0 %v3501
      %v4033 = vpop.f32.mrf.mxu0
      %v4034 = vadd.f32 %v3207, %v4033
      %v4035 = vpop.f32.mrf.mxu0
      %v4036 = vadd.f32 %v3209, %v4035
      %4037 = vmatmul.bf16.gmra.mxu0 %v3503
      %v4038 = vpop.f32.mrf.mxu0
      %v4039 = vadd.f32 %v3212, %v4038
      %v4040 = vpop.f32.mrf.mxu0
      %v4041 = vadd.f32 %v3214, %v4040
      %4042 = vmatmul.bf16.gmra.mxu0 %v3505
      %v4043 = vpop.f32.mrf.mxu0
      %v4044 = vadd.f32 %v3217, %v4043
      %v4045 = vpop.f32.mrf.mxu0
      %v4046 = vadd.f32 %v3219, %v4045
      %4047 = vmatmul.bf16.gmra.mxu0 %v3507
      %v4048 = vpop.f32.mrf.mxu0
      %v4049 = vadd.f32 %v3222, %v4048
      %v4050 = vpop.f32.mrf.mxu0
      %v4051 = vadd.f32 %v3224, %v4050
      %4052 = vmatmul.bf16.gmra.mxu0 %v3509
      %v4053 = vpop.f32.mrf.mxu0
      %v4054 = vadd.f32 %v3227, %v4053
      %v4055 = vpop.f32.mrf.mxu0
      %v4056 = vadd.f32 %v3229, %v4055
      %4057 = vmatmul.bf16.gmra.mxu0 %v3511
      %v4058 = vpop.f32.mrf.mxu0
      %v4059 = vadd.f32 %v3232, %v4058
      %v4060 = vpop.f32.mrf.mxu0
      %v4061 = vadd.f32 %v3234, %v4060
      %4062 = vmatmul.bf16.gmra.mxu0 %v3513
      %v4063 = vpop.f32.mrf.mxu0
      %v4064 = vadd.f32 %v3237, %v4063
      %v4065 = vpop.f32.mrf.mxu0
      %v4066 = vadd.f32 %v3239, %v4065
      %4067 = vmatmul.bf16.gmra.mxu0 %v3515
      %v4068 = vpop.f32.mrf.mxu0
      %v4069 = vadd.f32 %v3242, %v4068
      %v4070 = vpop.f32.mrf.mxu0
      %v4071 = vadd.f32 %v3244, %v4070
      %4072 = vmatmul.bf16.gmra.mxu0 %v3517
      %v4073 = vpop.f32.mrf.mxu0
      %v4074 = vadd.f32 %v3247, %v4073
      %v4075 = vpop.f32.mrf.mxu0
      %v4076 = vadd.f32 %v3249, %v4075
      %4077 = vmatmul.bf16.gmra.mxu0 %v3519
      %v4078 = vpop.f32.mrf.mxu0
      %v4079 = vadd.f32 %v3252, %v4078
      %v4080 = vpop.f32.mrf.mxu0
      %v4081 = vadd.f32 %v3254, %v4080
      %4082 = vmatmul.bf16.gmra.mxu0 %v3521
      %v4083 = vpop.f32.mrf.mxu0
      %v4084 = vadd.f32 %v3257, %v4083
      %v4085 = vpop.f32.mrf.mxu0
      %v4086 = vadd.f32 %v3259, %v4085
      %4087 = vmatmul.bf16.gmra.mxu0 %v3523
      %v4088 = vpop.f32.mrf.mxu0
      %v4089 = vadd.f32 %v3262, %v4088
      %v4090 = vpop.f32.mrf.mxu0
      %v4091 = vadd.f32 %v3264, %v4090
      %4092 = vmatmul.bf16.gmra.mxu0 %v3525
      %v4093 = vpop.f32.mrf.mxu0
      %v4094 = vadd.f32 %v3267, %v4093
      %v4095 = vpop.f32.mrf.mxu0
      %v4096 = vadd.f32 %v3269, %v4095
      %4097 = vdwg.mxu0
      %4098 = vmatpush.bf16.msra.mxu0 %v2562
      %4099 = vmatpush.bf16.msra.mxu0 %v2560
      %4100 = vmatpush.bf16.msra.mxu0 %v2558
      %4101 = vmatpush.bf16.msra.mxu0 %v2556
      %4102 = vmatpush.bf16.msra.mxu0 %v2554
      %4103 = vmatpush.bf16.msra.mxu0 %v2552
      %4104 = vmatpush.bf16.msra.mxu0 %v2550
      %4105 = vmatpush.bf16.msra.mxu0 %v2548
      %4106 = vmatmul.bf16.gmra.mxu0 %v3464
      %v4107 = vpop.f32.mrf.mxu0
      %v4108 = vadd.f32 %v3939, %v4107
      %v4109 = vpop.f32.mrf.mxu0
      %v4110 = vadd.f32 %v3941, %v4109
      %4111 = vmatmul.bf16.gmra.mxu0 %v3466
      %v4112 = vpop.f32.mrf.mxu0
      %v4113 = vadd.f32 %v3944, %v4112
      %v4114 = vpop.f32.mrf.mxu0
      %v4115 = vadd.f32 %v3946, %v4114
      %4116 = vmatmul.bf16.gmra.mxu0 %v3468
      %v4117 = vpop.f32.mrf.mxu0
      %v4118 = vadd.f32 %v3949, %v4117
      %v4119 = vpop.f32.mrf.mxu0
      %v4120 = vadd.f32 %v3951, %v4119
      %4121 = vmatmul.bf16.gmra.mxu0 %v3470
      %v4122 = vpop.f32.mrf.mxu0
      %v4123 = vadd.f32 %v3954, %v4122
      %v4124 = vpop.f32.mrf.mxu0
      %v4125 = vadd.f32 %v3956, %v4124
      %4126 = vmatmul.bf16.gmra.mxu0 %v3472
      %v4127 = vpop.f32.mrf.mxu0
      %v4128 = vadd.f32 %v3959, %v4127
      %v4129 = vpop.f32.mrf.mxu0
      %v4130 = vadd.f32 %v3961, %v4129
      %4131 = vmatmul.bf16.gmra.mxu0 %v3474
      %v4132 = vpop.f32.mrf.mxu0
      %v4133 = vadd.f32 %v3964, %v4132
      %v4134 = vpop.f32.mrf.mxu0
      %v4135 = vadd.f32 %v3966, %v4134
      %4136 = vmatmul.bf16.gmra.mxu0 %v3476
      %v4137 = vpop.f32.mrf.mxu0
      %v4138 = vadd.f32 %v3969, %v4137
      %v4139 = vpop.f32.mrf.mxu0
      %v4140 = vadd.f32 %v3971, %v4139
      %4141 = vmatmul.bf16.gmra.mxu0 %v3478
      %v4142 = vpop.f32.mrf.mxu0
      %v4143 = vadd.f32 %v3974, %v4142
      %v4144 = vpop.f32.mrf.mxu0
      %v4145 = vadd.f32 %v3976, %v4144
      %4146 = vmatmul.bf16.gmra.mxu0 %v3480
      %v4147 = vpop.f32.mrf.mxu0
      %v4148 = vadd.f32 %v3979, %v4147
      %v4149 = vpop.f32.mrf.mxu0
      %v4150 = vadd.f32 %v3981, %v4149
      %4151 = vmatmul.bf16.gmra.mxu0 %v3482
      %v4152 = vpop.f32.mrf.mxu0
      %v4153 = vadd.f32 %v3984, %v4152
      %v4154 = vpop.f32.mrf.mxu0
      %v4155 = vadd.f32 %v3986, %v4154
      %4156 = vmatmul.bf16.gmra.mxu0 %v3484
      %v4157 = vpop.f32.mrf.mxu0
      %v4158 = vadd.f32 %v3989, %v4157
      %v4159 = vpop.f32.mrf.mxu0
      %v4160 = vadd.f32 %v3991, %v4159
      %4161 = vmatmul.bf16.gmra.mxu0 %v3486
      %v4162 = vpop.f32.mrf.mxu0
      %v4163 = vadd.f32 %v3994, %v4162
      %v4164 = vpop.f32.mrf.mxu0
      %v4165 = vadd.f32 %v3996, %v4164
      %4166 = vmatmul.bf16.gmra.mxu0 %v3488
      %v4167 = vpop.f32.mrf.mxu0
      %v4168 = vadd.f32 %v3999, %v4167
      %v4169 = vpop.f32.mrf.mxu0
      %v4170 = vadd.f32 %v4001, %v4169
      %4171 = vmatmul.bf16.gmra.mxu0 %v3490
      %v4172 = vpop.f32.mrf.mxu0
      %v4173 = vadd.f32 %v4004, %v4172
      %v4174 = vpop.f32.mrf.mxu0
      %v4175 = vadd.f32 %v4006, %v4174
      %4176 = vmatmul.bf16.gmra.mxu0 %v3492
      %v4177 = vpop.f32.mrf.mxu0
      %v4178 = vadd.f32 %v4009, %v4177
      %v4179 = vpop.f32.mrf.mxu0
      %v4180 = vadd.f32 %v4011, %v4179
      %4181 = vmatmul.bf16.gmra.mxu0 %v3494
      %v4182 = vpop.f32.mrf.mxu0
      %v4183 = vadd.f32 %v4014, %v4182
      %v4184 = vpop.f32.mrf.mxu0
      %v4185 = vadd.f32 %v4016, %v4184
      %4186 = vmatmul.bf16.gmra.mxu0 %v3496
      %v4187 = vpop.f32.mrf.mxu0
      %v4188 = vadd.f32 %v4019, %v4187
      %v4189 = vpop.f32.mrf.mxu0
      %v4190 = vadd.f32 %v4021, %v4189
      %4191 = vmatmul.bf16.gmra.mxu0 %v3498
      %v4192 = vpop.f32.mrf.mxu0
      %v4193 = vadd.f32 %v4024, %v4192
      %v4194 = vpop.f32.mrf.mxu0
      %v4195 = vadd.f32 %v4026, %v4194
      %4196 = vmatmul.bf16.gmra.mxu0 %v3500
      %v4197 = vpop.f32.mrf.mxu0
      %v4198 = vadd.f32 %v4029, %v4197
      %v4199 = vpop.f32.mrf.mxu0
      %v4200 = vadd.f32 %v4031, %v4199
      %4201 = vmatmul.bf16.gmra.mxu0 %v3502
      %v4202 = vpop.f32.mrf.mxu0
      %v4203 = vadd.f32 %v4034, %v4202
      %v4204 = vpop.f32.mrf.mxu0
      %v4205 = vadd.f32 %v4036, %v4204
      %4206 = vmatmul.bf16.gmra.mxu0 %v3504
      %v4207 = vpop.f32.mrf.mxu0
      %v4208 = vadd.f32 %v4039, %v4207
      %v4209 = vpop.f32.mrf.mxu0
      %v4210 = vadd.f32 %v4041, %v4209
      %4211 = vmatmul.bf16.gmra.mxu0 %v3506
      %v4212 = vpop.f32.mrf.mxu0
      %v4213 = vadd.f32 %v4044, %v4212
      %v4214 = vpop.f32.mrf.mxu0
      %v4215 = vadd.f32 %v4046, %v4214
      %4216 = vmatmul.bf16.gmra.mxu0 %v3508
      %v4217 = vpop.f32.mrf.mxu0
      %v4218 = vadd.f32 %v4049, %v4217
      %v4219 = vpop.f32.mrf.mxu0
      %v4220 = vadd.f32 %v4051, %v4219
      %4221 = vmatmul.bf16.gmra.mxu0 %v3510
      %v4222 = vpop.f32.mrf.mxu0
      %v4223 = vadd.f32 %v4054, %v4222
      %v4224 = vpop.f32.mrf.mxu0
      %v4225 = vadd.f32 %v4056, %v4224
      %4226 = vmatmul.bf16.gmra.mxu0 %v3512
      %v4227 = vpop.f32.mrf.mxu0
      %v4228 = vadd.f32 %v4059, %v4227
      %v4229 = vpop.f32.mrf.mxu0
      %v4230 = vadd.f32 %v4061, %v4229
      %4231 = vmatmul.bf16.gmra.mxu0 %v3514
      %v4232 = vpop.f32.mrf.mxu0
      %v4233 = vadd.f32 %v4064, %v4232
      %v4234 = vpop.f32.mrf.mxu0
      %v4235 = vadd.f32 %v4066, %v4234
      %4236 = vmatmul.bf16.gmra.mxu0 %v3516
      %v4237 = vpop.f32.mrf.mxu0
      %v4238 = vadd.f32 %v4069, %v4237
      %v4239 = vpop.f32.mrf.mxu0
      %v4240 = vadd.f32 %v4071, %v4239
      %4241 = vmatmul.bf16.gmra.mxu0 %v3518
      %v4242 = vpop.f32.mrf.mxu0
      %v4243 = vadd.f32 %v4074, %v4242
      %v4244 = vpop.f32.mrf.mxu0
      %v4245 = vadd.f32 %v4076, %v4244
      %4246 = vmatmul.bf16.gmra.mxu0 %v3520
      %v4247 = vpop.f32.mrf.mxu0
      %v4248 = vadd.f32 %v4079, %v4247
      %v4249 = vpop.f32.mrf.mxu0
      %v4250 = vadd.f32 %v4081, %v4249
      %4251 = vmatmul.bf16.gmra.mxu0 %v3522
      %v4252 = vpop.f32.mrf.mxu0
      %v4253 = vadd.f32 %v4084, %v4252
      %v4254 = vpop.f32.mrf.mxu0
      %v4255 = vadd.f32 %v4086, %v4254
      %4256 = vmatmul.bf16.gmra.mxu0 %v3524
      %v4257 = vpop.f32.mrf.mxu0
      %v4258 = vadd.f32 %v4089, %v4257
      %v4259 = vpop.f32.mrf.mxu0
      %v4260 = vadd.f32 %v4091, %v4259
      %4261 = vmatmul.bf16.gmra.mxu0 %v3526
      %v4262 = vpop.f32.mrf.mxu0
      %v4263 = vadd.f32 %v4094, %v4262
      %v4264 = vpop.f32.mrf.mxu0
      %v4265 = vadd.f32 %v4096, %v4264
      %4266 = vdwg.mxu0
      %4267 = vmatpush.bf16.msra.mxu0 %v1969
      %4268 = vmatpush.bf16.msra.mxu0 %v1967
      %4269 = vmatpush.bf16.msra.mxu0 %v1965
      %4270 = vmatpush.bf16.msra.mxu0 %v1963
      %4271 = vmatpush.bf16.msra.mxu0 %v1961
      %4272 = vmatpush.bf16.msra.mxu0 %v1959
      %4273 = vmatpush.bf16.msra.mxu0 %v1957
      %4274 = vmatpush.bf16.msra.mxu0 %v1955
      %4275 = vmatmul.bf16.gmra.mxu0 %v3463
      %v4276 = vpop.f32.mrf.mxu0
      %v4277 = vadd.f32 0.0, %v4276
      %v4278 = vpop.f32.mrf.mxu0
      %v4279 = vadd.f32 0.0, %v4278
      %4280 = vmatmul.bf16.gmra.mxu0 %v3465
      %v4281 = vpop.f32.mrf.mxu0
      %v4282 = vadd.f32 0.0, %v4281
      %v4283 = vpop.f32.mrf.mxu0
      %v4284 = vadd.f32 0.0, %v4283
      %4285 = vmatmul.bf16.gmra.mxu0 %v3467
      %v4286 = vpop.f32.mrf.mxu0
      %v4287 = vadd.f32 0.0, %v4286
      %v4288 = vpop.f32.mrf.mxu0
      %v4289 = vadd.f32 0.0, %v4288
      %4290 = vmatmul.bf16.gmra.mxu0 %v3469
      %v4291 = vpop.f32.mrf.mxu0
      %v4292 = vadd.f32 0.0, %v4291
      %v4293 = vpop.f32.mrf.mxu0
      %v4294 = vadd.f32 0.0, %v4293
      %4295 = vmatmul.bf16.gmra.mxu0 %v3471
      %v4296 = vpop.f32.mrf.mxu0
      %v4297 = vadd.f32 0.0, %v4296
      %v4298 = vpop.f32.mrf.mxu0
      %v4299 = vadd.f32 0.0, %v4298
      %4300 = vmatmul.bf16.gmra.mxu0 %v3473
      %v4301 = vpop.f32.mrf.mxu0
      %v4302 = vadd.f32 0.0, %v4301
      %v4303 = vpop.f32.mrf.mxu0
      %v4304 = vadd.f32 0.0, %v4303
      %4305 = vmatmul.bf16.gmra.mxu0 %v3475
      %v4306 = vpop.f32.mrf.mxu0
      %v4307 = vadd.f32 0.0, %v4306
      %v4308 = vpop.f32.mrf.mxu0
      %v4309 = vadd.f32 0.0, %v4308
      %4310 = vmatmul.bf16.gmra.mxu0 %v3477
      %v4311 = vpop.f32.mrf.mxu0
      %v4312 = vadd.f32 0.0, %v4311
      %v4313 = vpop.f32.mrf.mxu0
      %v4314 = vadd.f32 0.0, %v4313
      %4315 = vmatmul.bf16.gmra.mxu0 %v3479
      %v4316 = vpop.f32.mrf.mxu0
      %v4317 = vadd.f32 0.0, %v4316
      %v4318 = vpop.f32.mrf.mxu0
      %v4319 = vadd.f32 0.0, %v4318
      %4320 = vmatmul.bf16.gmra.mxu0 %v3481
      %v4321 = vpop.f32.mrf.mxu0
      %v4322 = vadd.f32 0.0, %v4321
      %v4323 = vpop.f32.mrf.mxu0
      %v4324 = vadd.f32 0.0, %v4323
      %4325 = vmatmul.bf16.gmra.mxu0 %v3483
      %v4326 = vpop.f32.mrf.mxu0
      %v4327 = vadd.f32 0.0, %v4326
      %v4328 = vpop.f32.mrf.mxu0
      %v4329 = vadd.f32 0.0, %v4328
      %4330 = vmatmul.bf16.gmra.mxu0 %v3485
      %v4331 = vpop.f32.mrf.mxu0
      %v4332 = vadd.f32 0.0, %v4331
      %v4333 = vpop.f32.mrf.mxu0
      %v4334 = vadd.f32 0.0, %v4333
      %4335 = vmatmul.bf16.gmra.mxu0 %v3487
      %v4336 = vpop.f32.mrf.mxu0
      %v4337 = vadd.f32 0.0, %v4336
      %v4338 = vpop.f32.mrf.mxu0
      %v4339 = vadd.f32 0.0, %v4338
      %4340 = vmatmul.bf16.gmra.mxu0 %v3489
      %v4341 = vpop.f32.mrf.mxu0
      %v4342 = vadd.f32 0.0, %v4341
      %v4343 = vpop.f32.mrf.mxu0
      %v4344 = vadd.f32 0.0, %v4343
      %4345 = vmatmul.bf16.gmra.mxu0 %v3491
      %v4346 = vpop.f32.mrf.mxu0
      %v4347 = vadd.f32 0.0, %v4346
      %v4348 = vpop.f32.mrf.mxu0
      %v4349 = vadd.f32 0.0, %v4348
      %4350 = vmatmul.bf16.gmra.mxu0 %v3493
      %v4351 = vpop.f32.mrf.mxu0
      %v4352 = vadd.f32 0.0, %v4351
      %v4353 = vpop.f32.mrf.mxu0
      %v4354 = vadd.f32 0.0, %v4353
      %4355 = vmatmul.bf16.gmra.mxu0 %v3495
      %v4356 = vpop.f32.mrf.mxu0
      %v4357 = vadd.f32 0.0, %v4356
      %v4358 = vpop.f32.mrf.mxu0
      %v4359 = vadd.f32 0.0, %v4358
      %4360 = vmatmul.bf16.gmra.mxu0 %v3497
      %v4361 = vpop.f32.mrf.mxu0
      %v4362 = vadd.f32 0.0, %v4361
      %v4363 = vpop.f32.mrf.mxu0
      %v4364 = vadd.f32 0.0, %v4363
      %4365 = vmatmul.bf16.gmra.mxu0 %v3499
      %v4366 = vpop.f32.mrf.mxu0
      %v4367 = vadd.f32 0.0, %v4366
      %v4368 = vpop.f32.mrf.mxu0
      %v4369 = vadd.f32 0.0, %v4368
      %4370 = vmatmul.bf16.gmra.mxu0 %v3501
      %v4371 = vpop.f32.mrf.mxu0
      %v4372 = vadd.f32 0.0, %v4371
      %v4373 = vpop.f32.mrf.mxu0
      %v4374 = vadd.f32 0.0, %v4373
      %4375 = vmatmul.bf16.gmra.mxu0 %v3503
      %v4376 = vpop.f32.mrf.mxu0
      %v4377 = vadd.f32 0.0, %v4376
      %v4378 = vpop.f32.mrf.mxu0
      %v4379 = vadd.f32 0.0, %v4378
      %4380 = vmatmul.bf16.gmra.mxu0 %v3505
      %v4381 = vpop.f32.mrf.mxu0
      %v4382 = vadd.f32 0.0, %v4381
      %v4383 = vpop.f32.mrf.mxu0
      %v4384 = vadd.f32 0.0, %v4383
      %4385 = vmatmul.bf16.gmra.mxu0 %v3507
      %v4386 = vpop.f32.mrf.mxu0
      %v4387 = vadd.f32 0.0, %v4386
      %v4388 = vpop.f32.mrf.mxu0
      %v4389 = vadd.f32 0.0, %v4388
      %4390 = vmatmul.bf16.gmra.mxu0 %v3509
      %v4391 = vpop.f32.mrf.mxu0
      %v4392 = vadd.f32 0.0, %v4391
      %v4393 = vpop.f32.mrf.mxu0
      %v4394 = vadd.f32 0.0, %v4393
      %4395 = vmatmul.bf16.gmra.mxu0 %v3511
      %v4396 = vpop.f32.mrf.mxu0
      %v4397 = vadd.f32 0.0, %v4396
      %v4398 = vpop.f32.mrf.mxu0
      %v4399 = vadd.f32 0.0, %v4398
      %4400 = vmatmul.bf16.gmra.mxu0 %v3513
      %v4401 = vpop.f32.mrf.mxu0
      %v4402 = vadd.f32 0.0, %v4401
      %v4403 = vpop.f32.mrf.mxu0
      %v4404 = vadd.f32 0.0, %v4403
      %4405 = vmatmul.bf16.gmra.mxu0 %v3515
      %v4406 = vpop.f32.mrf.mxu0
      %v4407 = vadd.f32 0.0, %v4406
      %v4408 = vpop.f32.mrf.mxu0
      %v4409 = vadd.f32 0.0, %v4408
      %4410 = vmatmul.bf16.gmra.mxu0 %v3517
      %v4411 = vpop.f32.mrf.mxu0
      %v4412 = vadd.f32 0.0, %v4411
      %v4413 = vpop.f32.mrf.mxu0
      %v4414 = vadd.f32 0.0, %v4413
      %4415 = vmatmul.bf16.gmra.mxu0 %v3519
      %v4416 = vpop.f32.mrf.mxu0
      %v4417 = vadd.f32 0.0, %v4416
      %v4418 = vpop.f32.mrf.mxu0
      %v4419 = vadd.f32 0.0, %v4418
      %4420 = vmatmul.bf16.gmra.mxu0 %v3521
      %v4421 = vpop.f32.mrf.mxu0
      %v4422 = vadd.f32 0.0, %v4421
      %v4423 = vpop.f32.mrf.mxu0
      %v4424 = vadd.f32 0.0, %v4423
      %4425 = vmatmul.bf16.gmra.mxu0 %v3523
      %v4426 = vpop.f32.mrf.mxu0
      %v4427 = vadd.f32 0.0, %v4426
      %v4428 = vpop.f32.mrf.mxu0
      %v4429 = vadd.f32 0.0, %v4428
      %4430 = vmatmul.bf16.gmra.mxu0 %v3525
      %v4431 = vpop.f32.mrf.mxu0
      %v4432 = vadd.f32 0.0, %v4431
      %v4433 = vpop.f32.mrf.mxu0
      %v4434 = vadd.f32 0.0, %v4433
      %4435 = vdwg.mxu0
      %4436 = vmatpush.bf16.msra.mxu0 %v1985
      %4437 = vmatpush.bf16.msra.mxu0 %v1983
      %4438 = vmatpush.bf16.msra.mxu0 %v1981
      %4439 = vmatpush.bf16.msra.mxu0 %v1979
      %4440 = vmatpush.bf16.msra.mxu0 %v1977
      %4441 = vmatpush.bf16.msra.mxu0 %v1975
      %4442 = vmatpush.bf16.msra.mxu0 %v1973
      %4443 = vmatpush.bf16.msra.mxu0 %v1971
      %4444 = vmatmul.bf16.gmra.mxu0 %v3464
      %v4445 = vpop.f32.mrf.mxu0
      %v4446 = vadd.f32 %v4277, %v4445
      %v4447 = vpop.f32.mrf.mxu0
      %v4448 = vadd.f32 %v4279, %v4447
      %4449 = vmatmul.bf16.gmra.mxu0 %v3466
      %v4450 = vpop.f32.mrf.mxu0
      %v4451 = vadd.f32 %v4282, %v4450
      %v4452 = vpop.f32.mrf.mxu0
      %v4453 = vadd.f32 %v4284, %v4452
      %4454 = vmatmul.bf16.gmra.mxu0 %v3468
      %v4455 = vpop.f32.mrf.mxu0
      %v4456 = vadd.f32 %v4287, %v4455
      %v4457 = vpop.f32.mrf.mxu0
      %v4458 = vadd.f32 %v4289, %v4457
      %4459 = vmatmul.bf16.gmra.mxu0 %v3470
      %v4460 = vpop.f32.mrf.mxu0
      %v4461 = vadd.f32 %v4292, %v4460
      %v4462 = vpop.f32.mrf.mxu0
      %v4463 = vadd.f32 %v4294, %v4462
      %4464 = vmatmul.bf16.gmra.mxu0 %v3472
      %v4465 = vpop.f32.mrf.mxu0
      %v4466 = vadd.f32 %v4297, %v4465
      %v4467 = vpop.f32.mrf.mxu0
      %v4468 = vadd.f32 %v4299, %v4467
      %4469 = vmatmul.bf16.gmra.mxu0 %v3474
      %v4470 = vpop.f32.mrf.mxu0
      %v4471 = vadd.f32 %v4302, %v4470
      %v4472 = vpop.f32.mrf.mxu0
      %v4473 = vadd.f32 %v4304, %v4472
      %4474 = vmatmul.bf16.gmra.mxu0 %v3476
      %v4475 = vpop.f32.mrf.mxu0
      %v4476 = vadd.f32 %v4307, %v4475
      %v4477 = vpop.f32.mrf.mxu0
      %v4478 = vadd.f32 %v4309, %v4477
      %4479 = vmatmul.bf16.gmra.mxu0 %v3478
      %v4480 = vpop.f32.mrf.mxu0
      %v4481 = vadd.f32 %v4312, %v4480
      %v4482 = vpop.f32.mrf.mxu0
      %v4483 = vadd.f32 %v4314, %v4482
      %4484 = vmatmul.bf16.gmra.mxu0 %v3480
      %v4485 = vpop.f32.mrf.mxu0
      %v4486 = vadd.f32 %v4317, %v4485
      %v4487 = vpop.f32.mrf.mxu0
      %v4488 = vadd.f32 %v4319, %v4487
      %4489 = vmatmul.bf16.gmra.mxu0 %v3482
      %v4490 = vpop.f32.mrf.mxu0
      %v4491 = vadd.f32 %v4322, %v4490
      %v4492 = vpop.f32.mrf.mxu0
      %v4493 = vadd.f32 %v4324, %v4492
      %4494 = vmatmul.bf16.gmra.mxu0 %v3484
      %v4495 = vpop.f32.mrf.mxu0
      %v4496 = vadd.f32 %v4327, %v4495
      %v4497 = vpop.f32.mrf.mxu0
      %v4498 = vadd.f32 %v4329, %v4497
      %4499 = vmatmul.bf16.gmra.mxu0 %v3486
      %v4500 = vpop.f32.mrf.mxu0
      %v4501 = vadd.f32 %v4332, %v4500
      %v4502 = vpop.f32.mrf.mxu0
      %v4503 = vadd.f32 %v4334, %v4502
      %4504 = vmatmul.bf16.gmra.mxu0 %v3488
      %v4505 = vpop.f32.mrf.mxu0
      %v4506 = vadd.f32 %v4337, %v4505
      %v4507 = vpop.f32.mrf.mxu0
      %v4508 = vadd.f32 %v4339, %v4507
      %4509 = vmatmul.bf16.gmra.mxu0 %v3490
      %v4510 = vpop.f32.mrf.mxu0
      %v4511 = vadd.f32 %v4342, %v4510
      %v4512 = vpop.f32.mrf.mxu0
      %v4513 = vadd.f32 %v4344, %v4512
      %4514 = vmatmul.bf16.gmra.mxu0 %v3492
      %v4515 = vpop.f32.mrf.mxu0
      %v4516 = vadd.f32 %v4347, %v4515
      %v4517 = vpop.f32.mrf.mxu0
      %v4518 = vadd.f32 %v4349, %v4517
      %4519 = vmatmul.bf16.gmra.mxu0 %v3494
      %v4520 = vpop.f32.mrf.mxu0
      %v4521 = vadd.f32 %v4352, %v4520
      %v4522 = vpop.f32.mrf.mxu0
      %v4523 = vadd.f32 %v4354, %v4522
      %4524 = vmatmul.bf16.gmra.mxu0 %v3496
      %v4525 = vpop.f32.mrf.mxu0
      %v4526 = vadd.f32 %v4357, %v4525
      %v4527 = vpop.f32.mrf.mxu0
      %v4528 = vadd.f32 %v4359, %v4527
      %4529 = vmatmul.bf16.gmra.mxu0 %v3498
      %v4530 = vpop.f32.mrf.mxu0
      %v4531 = vadd.f32 %v4362, %v4530
      %v4532 = vpop.f32.mrf.mxu0
      %v4533 = vadd.f32 %v4364, %v4532
      %4534 = vmatmul.bf16.gmra.mxu0 %v3500
      %v4535 = vpop.f32.mrf.mxu0
      %v4536 = vadd.f32 %v4367, %v4535
      %v4537 = vpop.f32.mrf.mxu0
      %v4538 = vadd.f32 %v4369, %v4537
      %4539 = vmatmul.bf16.gmra.mxu0 %v3502
      %v4540 = vpop.f32.mrf.mxu0
      %v4541 = vadd.f32 %v4372, %v4540
      %v4542 = vpop.f32.mrf.mxu0
      %v4543 = vadd.f32 %v4374, %v4542
      %4544 = vmatmul.bf16.gmra.mxu0 %v3504
      %v4545 = vpop.f32.mrf.mxu0
      %v4546 = vadd.f32 %v4377, %v4545
      %v4547 = vpop.f32.mrf.mxu0
      %v4548 = vadd.f32 %v4379, %v4547
      %4549 = vmatmul.bf16.gmra.mxu0 %v3506
      %v4550 = vpop.f32.mrf.mxu0
      %v4551 = vadd.f32 %v4382, %v4550
      %v4552 = vpop.f32.mrf.mxu0
      %v4553 = vadd.f32 %v4384, %v4552
      %4554 = vmatmul.bf16.gmra.mxu0 %v3508
      %v4555 = vpop.f32.mrf.mxu0
      %v4556 = vadd.f32 %v4387, %v4555
      %v4557 = vpop.f32.mrf.mxu0
      %v4558 = vadd.f32 %v4389, %v4557
      %4559 = vmatmul.bf16.gmra.mxu0 %v3510
      %v4560 = vpop.f32.mrf.mxu0
      %v4561 = vadd.f32 %v4392, %v4560
      %v4562 = vpop.f32.mrf.mxu0
      %v4563 = vadd.f32 %v4394, %v4562
      %4564 = vmatmul.bf16.gmra.mxu0 %v3512
      %v4565 = vpop.f32.mrf.mxu0
      %v4566 = vadd.f32 %v4397, %v4565
      %v4567 = vpop.f32.mrf.mxu0
      %v4568 = vadd.f32 %v4399, %v4567
      %4569 = vmatmul.bf16.gmra.mxu0 %v3514
      %v4570 = vpop.f32.mrf.mxu0
      %v4571 = vadd.f32 %v4402, %v4570
      %v4572 = vpop.f32.mrf.mxu0
      %v4573 = vadd.f32 %v4404, %v4572
      %4574 = vmatmul.bf16.gmra.mxu0 %v3516
      %v4575 = vpop.f32.mrf.mxu0
      %v4576 = vadd.f32 %v4407, %v4575
      %v4577 = vpop.f32.mrf.mxu0
      %v4578 = vadd.f32 %v4409, %v4577
      %4579 = vmatmul.bf16.gmra.mxu0 %v3518
      %v4580 = vpop.f32.mrf.mxu0
      %v4581 = vadd.f32 %v4412, %v4580
      %v4582 = vpop.f32.mrf.mxu0
      %v4583 = vadd.f32 %v4414, %v4582
      %4584 = vmatmul.bf16.gmra.mxu0 %v3520
      %v4585 = vpop.f32.mrf.mxu0
      %v4586 = vadd.f32 %v4417, %v4585
      %v4587 = vpop.f32.mrf.mxu0
      %v4588 = vadd.f32 %v4419, %v4587
      %4589 = vmatmul.bf16.gmra.mxu0 %v3522
      %v4590 = vpop.f32.mrf.mxu0
      %v4591 = vadd.f32 %v4422, %v4590
      %v4592 = vpop.f32.mrf.mxu0
      %v4593 = vadd.f32 %v4424, %v4592
      %4594 = vmatmul.bf16.gmra.mxu0 %v3524
      %v4595 = vpop.f32.mrf.mxu0
      %v4596 = vadd.f32 %v4427, %v4595
      %v4597 = vpop.f32.mrf.mxu0
      %v4598 = vadd.f32 %v4429, %v4597
      %4599 = vmatmul.bf16.gmra.mxu0 %v3526
      %v4600 = vpop.f32.mrf.mxu0
      %v4601 = vadd.f32 %v4432, %v4600
      %v4602 = vpop.f32.mrf.mxu0
      %v4603 = vadd.f32 %v4434, %v4602
      %4604 = vdwg.mxu0
      %4605 = vmatpush.bf16.msra.mxu0 %v1970
      %4606 = vmatpush.bf16.msra.mxu0 %v1968
      %4607 = vmatpush.bf16.msra.mxu0 %v1966
      %4608 = vmatpush.bf16.msra.mxu0 %v1964
      %4609 = vmatpush.bf16.msra.mxu0 %v1962
      %4610 = vmatpush.bf16.msra.mxu0 %v1960
      %4611 = vmatpush.bf16.msra.mxu0 %v1958
      %4612 = vmatpush.bf16.msra.mxu0 %v1956
      %4613 = vmatmul.bf16.gmra.mxu0 %v3463
      %v4614 = vpop.f32.mrf.mxu0
      %v4615 = vadd.f32 0.0, %v4614
      %v4616 = vpop.f32.mrf.mxu0
      %v4617 = vadd.f32 0.0, %v4616
      %4618 = vmatmul.bf16.gmra.mxu0 %v3465
      %v4619 = vpop.f32.mrf.mxu0
      %v4620 = vadd.f32 0.0, %v4619
      %v4621 = vpop.f32.mrf.mxu0
      %v4622 = vadd.f32 0.0, %v4621
      %4623 = vmatmul.bf16.gmra.mxu0 %v3467
      %v4624 = vpop.f32.mrf.mxu0
      %v4625 = vadd.f32 0.0, %v4624
      %v4626 = vpop.f32.mrf.mxu0
      %v4627 = vadd.f32 0.0, %v4626
      %4628 = vmatmul.bf16.gmra.mxu0 %v3469
      %v4629 = vpop.f32.mrf.mxu0
      %v4630 = vadd.f32 0.0, %v4629
      %v4631 = vpop.f32.mrf.mxu0
      %v4632 = vadd.f32 0.0, %v4631
      %4633 = vmatmul.bf16.gmra.mxu0 %v3471
      %v4634 = vpop.f32.mrf.mxu0
      %v4635 = vadd.f32 0.0, %v4634
      %v4636 = vpop.f32.mrf.mxu0
      %v4637 = vadd.f32 0.0, %v4636
      %4638 = vmatmul.bf16.gmra.mxu0 %v3473
      %v4639 = vpop.f32.mrf.mxu0
      %v4640 = vadd.f32 0.0, %v4639
      %v4641 = vpop.f32.mrf.mxu0
      %v4642 = vadd.f32 0.0, %v4641
      %4643 = vmatmul.bf16.gmra.mxu0 %v3475
      %v4644 = vpop.f32.mrf.mxu0
      %v4645 = vadd.f32 0.0, %v4644
      %v4646 = vpop.f32.mrf.mxu0
      %v4647 = vadd.f32 0.0, %v4646
      %4648 = vmatmul.bf16.gmra.mxu0 %v3477
      %v4649 = vpop.f32.mrf.mxu0
      %v4650 = vadd.f32 0.0, %v4649
      %v4651 = vpop.f32.mrf.mxu0
      %v4652 = vadd.f32 0.0, %v4651
      %4653 = vmatmul.bf16.gmra.mxu0 %v3479
      %v4654 = vpop.f32.mrf.mxu0
      %v4655 = vadd.f32 0.0, %v4654
      %v4656 = vpop.f32.mrf.mxu0
      %v4657 = vadd.f32 0.0, %v4656
      %4658 = vmatmul.bf16.gmra.mxu0 %v3481
      %v4659 = vpop.f32.mrf.mxu0
      %v4660 = vadd.f32 0.0, %v4659
      %v4661 = vpop.f32.mrf.mxu0
      %v4662 = vadd.f32 0.0, %v4661
      %4663 = vmatmul.bf16.gmra.mxu0 %v3483
      %v4664 = vpop.f32.mrf.mxu0
      %v4665 = vadd.f32 0.0, %v4664
      %v4666 = vpop.f32.mrf.mxu0
      %v4667 = vadd.f32 0.0, %v4666
      %4668 = vmatmul.bf16.gmra.mxu0 %v3485
      %v4669 = vpop.f32.mrf.mxu0
      %v4670 = vadd.f32 0.0, %v4669
      %v4671 = vpop.f32.mrf.mxu0
      %v4672 = vadd.f32 0.0, %v4671
      %4673 = vmatmul.bf16.gmra.mxu0 %v3487
      %v4674 = vpop.f32.mrf.mxu0
      %v4675 = vadd.f32 0.0, %v4674
      %v4676 = vpop.f32.mrf.mxu0
      %v4677 = vadd.f32 0.0, %v4676
      %4678 = vmatmul.bf16.gmra.mxu0 %v3489
      %v4679 = vpop.f32.mrf.mxu0
      %v4680 = vadd.f32 0.0, %v4679
      %v4681 = vpop.f32.mrf.mxu0
      %v4682 = vadd.f32 0.0, %v4681
      %4683 = vmatmul.bf16.gmra.mxu0 %v3491
      %v4684 = vpop.f32.mrf.mxu0
      %v4685 = vadd.f32 0.0, %v4684
      %v4686 = vpop.f32.mrf.mxu0
      %v4687 = vadd.f32 0.0, %v4686
      %4688 = vmatmul.bf16.gmra.mxu0 %v3493
      %v4689 = vpop.f32.mrf.mxu0
      %v4690 = vadd.f32 0.0, %v4689
      %v4691 = vpop.f32.mrf.mxu0
      %v4692 = vadd.f32 0.0, %v4691
      %4693 = vmatmul.bf16.gmra.mxu0 %v3495
      %v4694 = vpop.f32.mrf.mxu0
      %v4695 = vadd.f32 0.0, %v4694
      %v4696 = vpop.f32.mrf.mxu0
      %v4697 = vadd.f32 0.0, %v4696
      %4698 = vmatmul.bf16.gmra.mxu0 %v3497
      %v4699 = vpop.f32.mrf.mxu0
      %v4700 = vadd.f32 0.0, %v4699
      %v4701 = vpop.f32.mrf.mxu0
      %v4702 = vadd.f32 0.0, %v4701
      %4703 = vmatmul.bf16.gmra.mxu0 %v3499
      %v4704 = vpop.f32.mrf.mxu0
      %v4705 = vadd.f32 0.0, %v4704
      %v4706 = vpop.f32.mrf.mxu0
      %v4707 = vadd.f32 0.0, %v4706
      %4708 = vmatmul.bf16.gmra.mxu0 %v3501
      %v4709 = vpop.f32.mrf.mxu0
      %v4710 = vadd.f32 0.0, %v4709
      %v4711 = vpop.f32.mrf.mxu0
      %v4712 = vadd.f32 0.0, %v4711
      %4713 = vmatmul.bf16.gmra.mxu0 %v3503
      %v4714 = vpop.f32.mrf.mxu0
      %v4715 = vadd.f32 0.0, %v4714
      %v4716 = vpop.f32.mrf.mxu0
      %v4717 = vadd.f32 0.0, %v4716
      %4718 = vmatmul.bf16.gmra.mxu0 %v3505
      %v4719 = vpop.f32.mrf.mxu0
      %v4720 = vadd.f32 0.0, %v4719
      %v4721 = vpop.f32.mrf.mxu0
      %v4722 = vadd.f32 0.0, %v4721
      %4723 = vmatmul.bf16.gmra.mxu0 %v3507
      %v4724 = vpop.f32.mrf.mxu0
      %v4725 = vadd.f32 0.0, %v4724
      %v4726 = vpop.f32.mrf.mxu0
      %v4727 = vadd.f32 0.0, %v4726
      %4728 = vmatmul.bf16.gmra.mxu0 %v3509
      %v4729 = vpop.f32.mrf.mxu0
      %v4730 = vadd.f32 0.0, %v4729
      %v4731 = vpop.f32.mrf.mxu0
      %v4732 = vadd.f32 0.0, %v4731
      %4733 = vmatmul.bf16.gmra.mxu0 %v3511
      %v4734 = vpop.f32.mrf.mxu0
      %v4735 = vadd.f32 0.0, %v4734
      %v4736 = vpop.f32.mrf.mxu0
      %v4737 = vadd.f32 0.0, %v4736
      %4738 = vmatmul.bf16.gmra.mxu0 %v3513
      %v4739 = vpop.f32.mrf.mxu0
      %v4740 = vadd.f32 0.0, %v4739
      %v4741 = vpop.f32.mrf.mxu0
      %v4742 = vadd.f32 0.0, %v4741
      %4743 = vmatmul.bf16.gmra.mxu0 %v3515
      %v4744 = vpop.f32.mrf.mxu0
      %v4745 = vadd.f32 0.0, %v4744
      %v4746 = vpop.f32.mrf.mxu0
      %v4747 = vadd.f32 0.0, %v4746
      %4748 = vmatmul.bf16.gmra.mxu0 %v3517
      %v4749 = vpop.f32.mrf.mxu0
      %v4750 = vadd.f32 0.0, %v4749
      %v4751 = vpop.f32.mrf.mxu0
      %v4752 = vadd.f32 0.0, %v4751
      %4753 = vmatmul.bf16.gmra.mxu0 %v3519
      %v4754 = vpop.f32.mrf.mxu0
      %v4755 = vadd.f32 0.0, %v4754
      %v4756 = vpop.f32.mrf.mxu0
      %v4757 = vadd.f32 0.0, %v4756
      %4758 = vmatmul.bf16.gmra.mxu0 %v3521
      %v4759 = vpop.f32.mrf.mxu0
      %v4760 = vadd.f32 0.0, %v4759
      %v4761 = vpop.f32.mrf.mxu0
      %v4762 = vadd.f32 0.0, %v4761
      %4763 = vmatmul.bf16.gmra.mxu0 %v3523
      %v4764 = vpop.f32.mrf.mxu0
      %v4765 = vadd.f32 0.0, %v4764
      %v4766 = vpop.f32.mrf.mxu0
      %v4767 = vadd.f32 0.0, %v4766
      %4768 = vmatmul.bf16.gmra.mxu0 %v3525
      %v4769 = vpop.f32.mrf.mxu0
      %v4770 = vadd.f32 0.0, %v4769
      %v4771 = vpop.f32.mrf.mxu0
      %v4772 = vadd.f32 0.0, %v4771
      %4773 = vdwg.mxu0
      %4774 = vmatpush.bf16.msra.mxu0 %v1986
      %4775 = vmatpush.bf16.msra.mxu0 %v1984
      %4776 = vmatpush.bf16.msra.mxu0 %v1982
      %4777 = vmatpush.bf16.msra.mxu0 %v1980
      %4778 = vmatpush.bf16.msra.mxu0 %v1978
      %4779 = vmatpush.bf16.msra.mxu0 %v1976
      %4780 = vmatpush.bf16.msra.mxu0 %v1974
      %4781 = vmatpush.bf16.msra.mxu0 %v1972
      %4782 = vmatmul.bf16.gmra.mxu0 %v3464
      %v4783 = vpop.f32.mrf.mxu0
      %v4784 = vadd.f32 %v4615, %v4783
      %v4785 = vpop.f32.mrf.mxu0
      %v4786 = vadd.f32 %v4617, %v4785
      %4787 = vmatmul.bf16.gmra.mxu0 %v3466
      %v4788 = vpop.f32.mrf.mxu0
      %v4789 = vadd.f32 %v4620, %v4788
      %v4790 = vpop.f32.mrf.mxu0
      %v4791 = vadd.f32 %v4622, %v4790
      %4792 = vmatmul.bf16.gmra.mxu0 %v3468
      %v4793 = vpop.f32.mrf.mxu0
      %v4794 = vadd.f32 %v4625, %v4793
      %v4795 = vpop.f32.mrf.mxu0
      %v4796 = vadd.f32 %v4627, %v4795
      %4797 = vmatmul.bf16.gmra.mxu0 %v3470
      %v4798 = vpop.f32.mrf.mxu0
      %v4799 = vadd.f32 %v4630, %v4798
      %v4800 = vpop.f32.mrf.mxu0
      %v4801 = vadd.f32 %v4632, %v4800
      %4802 = vmatmul.bf16.gmra.mxu0 %v3472
      %v4803 = vpop.f32.mrf.mxu0
      %v4804 = vadd.f32 %v4635, %v4803
      %v4805 = vpop.f32.mrf.mxu0
      %v4806 = vadd.f32 %v4637, %v4805
      %4807 = vmatmul.bf16.gmra.mxu0 %v3474
      %v4808 = vpop.f32.mrf.mxu0
      %v4809 = vadd.f32 %v4640, %v4808
      %v4810 = vpop.f32.mrf.mxu0
      %v4811 = vadd.f32 %v4642, %v4810
      %4812 = vmatmul.bf16.gmra.mxu0 %v3476
      %v4813 = vpop.f32.mrf.mxu0
      %v4814 = vadd.f32 %v4645, %v4813
      %v4815 = vpop.f32.mrf.mxu0
      %v4816 = vadd.f32 %v4647, %v4815
      %4817 = vmatmul.bf16.gmra.mxu0 %v3478
      %v4818 = vpop.f32.mrf.mxu0
      %v4819 = vadd.f32 %v4650, %v4818
      %v4820 = vpop.f32.mrf.mxu0
      %v4821 = vadd.f32 %v4652, %v4820
      %4822 = vmatmul.bf16.gmra.mxu0 %v3480
      %v4823 = vpop.f32.mrf.mxu0
      %v4824 = vadd.f32 %v4655, %v4823
      %v4825 = vpop.f32.mrf.mxu0
      %v4826 = vadd.f32 %v4657, %v4825
      %4827 = vmatmul.bf16.gmra.mxu0 %v3482
      %v4828 = vpop.f32.mrf.mxu0
      %v4829 = vadd.f32 %v4660, %v4828
      %v4830 = vpop.f32.mrf.mxu0
      %v4831 = vadd.f32 %v4662, %v4830
      %4832 = vmatmul.bf16.gmra.mxu0 %v3484
      %v4833 = vpop.f32.mrf.mxu0
      %v4834 = vadd.f32 %v4665, %v4833
      %v4835 = vpop.f32.mrf.mxu0
      %v4836 = vadd.f32 %v4667, %v4835
      %4837 = vmatmul.bf16.gmra.mxu0 %v3486
      %v4838 = vpop.f32.mrf.mxu0
      %v4839 = vadd.f32 %v4670, %v4838
      %v4840 = vpop.f32.mrf.mxu0
      %v4841 = vadd.f32 %v4672, %v4840
      %4842 = vmatmul.bf16.gmra.mxu0 %v3488
      %v4843 = vpop.f32.mrf.mxu0
      %v4844 = vadd.f32 %v4675, %v4843
      %v4845 = vpop.f32.mrf.mxu0
      %v4846 = vadd.f32 %v4677, %v4845
      %4847 = vmatmul.bf16.gmra.mxu0 %v3490
      %v4848 = vpop.f32.mrf.mxu0
      %v4849 = vadd.f32 %v4680, %v4848
      %v4850 = vpop.f32.mrf.mxu0
      %v4851 = vadd.f32 %v4682, %v4850
      %4852 = vmatmul.bf16.gmra.mxu0 %v3492
      %v4853 = vpop.f32.mrf.mxu0
      %v4854 = vadd.f32 %v4685, %v4853
      %v4855 = vpop.f32.mrf.mxu0
      %v4856 = vadd.f32 %v4687, %v4855
      %4857 = vmatmul.bf16.gmra.mxu0 %v3494
      %v4858 = vpop.f32.mrf.mxu0
      %v4859 = vadd.f32 %v4690, %v4858
      %v4860 = vpop.f32.mrf.mxu0
      %v4861 = vadd.f32 %v4692, %v4860
      %4862 = vmatmul.bf16.gmra.mxu0 %v3496
      %v4863 = vpop.f32.mrf.mxu0
      %v4864 = vadd.f32 %v4695, %v4863
      %v4865 = vpop.f32.mrf.mxu0
      %v4866 = vadd.f32 %v4697, %v4865
      %4867 = vmatmul.bf16.gmra.mxu0 %v3498
      %v4868 = vpop.f32.mrf.mxu0
      %v4869 = vadd.f32 %v4700, %v4868
      %v4870 = vpop.f32.mrf.mxu0
      %v4871 = vadd.f32 %v4702, %v4870
      %4872 = vmatmul.bf16.gmra.mxu0 %v3500
      %v4873 = vpop.f32.mrf.mxu0
      %v4874 = vadd.f32 %v4705, %v4873
      %v4875 = vpop.f32.mrf.mxu0
      %v4876 = vadd.f32 %v4707, %v4875
      %4877 = vmatmul.bf16.gmra.mxu0 %v3502
      %v4878 = vpop.f32.mrf.mxu0
      %v4879 = vadd.f32 %v4710, %v4878
      %v4880 = vpop.f32.mrf.mxu0
      %v4881 = vadd.f32 %v4712, %v4880
      %4882 = vmatmul.bf16.gmra.mxu0 %v3504
      %v4883 = vpop.f32.mrf.mxu0
      %v4884 = vadd.f32 %v4715, %v4883
      %v4885 = vpop.f32.mrf.mxu0
      %v4886 = vadd.f32 %v4717, %v4885
      %4887 = vmatmul.bf16.gmra.mxu0 %v3506
      %v4888 = vpop.f32.mrf.mxu0
      %v4889 = vadd.f32 %v4720, %v4888
      %v4890 = vpop.f32.mrf.mxu0
      %v4891 = vadd.f32 %v4722, %v4890
      %4892 = vmatmul.bf16.gmra.mxu0 %v3508
      %v4893 = vpop.f32.mrf.mxu0
      %v4894 = vadd.f32 %v4725, %v4893
      %v4895 = vpop.f32.mrf.mxu0
      %v4896 = vadd.f32 %v4727, %v4895
      %4897 = vmatmul.bf16.gmra.mxu0 %v3510
      %v4898 = vpop.f32.mrf.mxu0
      %v4899 = vadd.f32 %v4730, %v4898
      %v4900 = vpop.f32.mrf.mxu0
      %v4901 = vadd.f32 %v4732, %v4900
      %4902 = vmatmul.bf16.gmra.mxu0 %v3512
      %v4903 = vpop.f32.mrf.mxu0
      %v4904 = vadd.f32 %v4735, %v4903
      %v4905 = vpop.f32.mrf.mxu0
      %v4906 = vadd.f32 %v4737, %v4905
      %4907 = vmatmul.bf16.gmra.mxu0 %v3514
      %v4908 = vpop.f32.mrf.mxu0
      %v4909 = vadd.f32 %v4740, %v4908
      %v4910 = vpop.f32.mrf.mxu0
      %v4911 = vadd.f32 %v4742, %v4910
      %4912 = vmatmul.bf16.gmra.mxu0 %v3516
      %v4913 = vpop.f32.mrf.mxu0
      %v4914 = vadd.f32 %v4745, %v4913
      %v4915 = vpop.f32.mrf.mxu0
      %v4916 = vadd.f32 %v4747, %v4915
      %4917 = vmatmul.bf16.gmra.mxu0 %v3518
      %v4918 = vpop.f32.mrf.mxu0
      %v4919 = vadd.f32 %v4750, %v4918
      %v4920 = vpop.f32.mrf.mxu0
      %v4921 = vadd.f32 %v4752, %v4920
      %4922 = vmatmul.bf16.gmra.mxu0 %v3520
      %v4923 = vpop.f32.mrf.mxu0
      %v4924 = vadd.f32 %v4755, %v4923
      %v4925 = vpop.f32.mrf.mxu0
      %v4926 = vadd.f32 %v4757, %v4925
      %4927 = vmatmul.bf16.gmra.mxu0 %v3522
      %v4928 = vpop.f32.mrf.mxu0
      %v4929 = vadd.f32 %v4760, %v4928
      %v4930 = vpop.f32.mrf.mxu0
      %v4931 = vadd.f32 %v4762, %v4930
      %4932 = vmatmul.bf16.gmra.mxu0 %v3524
      %v4933 = vpop.f32.mrf.mxu0
      %v4934 = vadd.f32 %v4765, %v4933
      %v4935 = vpop.f32.mrf.mxu0
      %v4936 = vadd.f32 %v4767, %v4935
      %4937 = vmatmul.bf16.gmra.mxu0 %v3526
      %v4938 = vpop.f32.mrf.mxu0
      %v4939 = vadd.f32 %v4770, %v4938
      %v4940 = vpop.f32.mrf.mxu0
      %v4941 = vadd.f32 %v4772, %v4940
      %4942 = vdwg.mxu0
      %v4943 = vadd.f32 %v3770, %v4446
      %v4944 = vadd.f32 %v4108, %v4784
      %v4945 = vadd.f32 %v3772, %v4448
      %v4946 = vadd.f32 %v4110, %v4786
      %v4947 = vadd.f32 %v3775, %v4451
      %v4948 = vadd.f32 %v4113, %v4789
      %v4949 = vadd.f32 %v3777, %v4453
      %v4950 = vadd.f32 %v4115, %v4791
      %v4951 = vadd.f32 %v3780, %v4456
      %v4952 = vadd.f32 %v4118, %v4794
      %v4953 = vadd.f32 %v3782, %v4458
      %v4954 = vadd.f32 %v4120, %v4796
      %v4955 = vadd.f32 %v3785, %v4461
      %v4956 = vadd.f32 %v4123, %v4799
      %v4957 = vadd.f32 %v3787, %v4463
      %v4958 = vadd.f32 %v4125, %v4801
      %v4959 = vadd.f32 %v3790, %v4466
      %v4960 = vadd.f32 %v4128, %v4804
      %v4961 = vadd.f32 %v3792, %v4468
      %v4962 = vadd.f32 %v4130, %v4806
      %v4963 = vadd.f32 %v3795, %v4471
      %v4964 = vadd.f32 %v4133, %v4809
      %v4965 = vadd.f32 %v3797, %v4473
      %v4966 = vadd.f32 %v4135, %v4811
      %v4967 = vadd.f32 %v3800, %v4476
      %v4968 = vadd.f32 %v4138, %v4814
      %v4969 = vadd.f32 %v3802, %v4478
      %v4970 = vadd.f32 %v4140, %v4816
      %v4971 = vadd.f32 %v3805, %v4481
      %v4972 = vadd.f32 %v4143, %v4819
      %v4973 = vadd.f32 %v3807, %v4483
      %v4974 = vadd.f32 %v4145, %v4821
      %v4975 = vadd.f32 %v3810, %v4486
      %v4976 = vadd.f32 %v4148, %v4824
      %v4977 = vadd.f32 %v3812, %v4488
      %v4978 = vadd.f32 %v4150, %v4826
      %v4979 = vadd.f32 %v3815, %v4491
      %v4980 = vadd.f32 %v4153, %v4829
      %v4981 = vadd.f32 %v3817, %v4493
      %v4982 = vadd.f32 %v4155, %v4831
      %v4983 = vadd.f32 %v3820, %v4496
      %v4984 = vadd.f32 %v4158, %v4834
      %v4985 = vadd.f32 %v3822, %v4498
      %v4986 = vadd.f32 %v4160, %v4836
      %v4987 = vadd.f32 %v3825, %v4501
      %v4988 = vadd.f32 %v4163, %v4839
      %v4989 = vadd.f32 %v3827, %v4503
      %v4990 = vadd.f32 %v4165, %v4841
      %v4991 = vadd.f32 %v3830, %v4506
      %v4992 = vadd.f32 %v4168, %v4844
      %v4993 = vadd.f32 %v3832, %v4508
      %v4994 = vadd.f32 %v4170, %v4846
      %v4995 = vadd.f32 %v3835, %v4511
      %v4996 = vadd.f32 %v4173, %v4849
      %v4997 = vadd.f32 %v3837, %v4513
      %v4998 = vadd.f32 %v4175, %v4851
      %v4999 = vadd.f32 %v3840, %v4516
      %v5000 = vadd.f32 %v4178, %v4854
      %v5001 = vadd.f32 %v3842, %v4518
      %v5002 = vadd.f32 %v4180, %v4856
      %v5003 = vadd.f32 %v3845, %v4521
      %v5004 = vadd.f32 %v4183, %v4859
      %v5005 = vadd.f32 %v3847, %v4523
      %v5006 = vadd.f32 %v4185, %v4861
      %v5007 = vadd.f32 %v3850, %v4526
      %v5008 = vadd.f32 %v4188, %v4864
      %v5009 = vadd.f32 %v3852, %v4528
      %v5010 = vadd.f32 %v4190, %v4866
      %v5011 = vadd.f32 %v3855, %v4531
      %v5012 = vadd.f32 %v4193, %v4869
      %v5013 = vadd.f32 %v3857, %v4533
      %v5014 = vadd.f32 %v4195, %v4871
      %v5015 = vadd.f32 %v3860, %v4536
      %v5016 = vadd.f32 %v4198, %v4874
      %v5017 = vadd.f32 %v3862, %v4538
      %v5018 = vadd.f32 %v4200, %v4876
      %v5019 = vadd.f32 %v3865, %v4541
      %v5020 = vadd.f32 %v4203, %v4879
      %v5021 = vadd.f32 %v3867, %v4543
      %v5022 = vadd.f32 %v4205, %v4881
      %v5023 = vadd.f32 %v3870, %v4546
      %v5024 = vadd.f32 %v4208, %v4884
      %v5025 = vadd.f32 %v3872, %v4548
      %v5026 = vadd.f32 %v4210, %v4886
      %v5027 = vadd.f32 %v3875, %v4551
      %v5028 = vadd.f32 %v4213, %v4889
      %v5029 = vadd.f32 %v3877, %v4553
      %v5030 = vadd.f32 %v4215, %v4891
      %v5031 = vadd.f32 %v3880, %v4556
      %v5032 = vadd.f32 %v4218, %v4894
      %v5033 = vadd.f32 %v3882, %v4558
      %v5034 = vadd.f32 %v4220, %v4896
      %v5035 = vadd.f32 %v3885, %v4561
      %v5036 = vadd.f32 %v4223, %v4899
      %v5037 = vadd.f32 %v3887, %v4563
      %v5038 = vadd.f32 %v4225, %v4901
      %v5039 = vadd.f32 %v3890, %v4566
      %v5040 = vadd.f32 %v4228, %v4904
      %v5041 = vadd.f32 %v3892, %v4568
      %v5042 = vadd.f32 %v4230, %v4906
      %v5043 = vadd.f32 %v3895, %v4571
      %v5044 = vadd.f32 %v4233, %v4909
      %v5045 = vadd.f32 %v3897, %v4573
      %v5046 = vadd.f32 %v4235, %v4911
      %v5047 = vadd.f32 %v3900, %v4576
      %v5048 = vadd.f32 %v4238, %v4914
      %v5049 = vadd.f32 %v3902, %v4578
      %v5050 = vadd.f32 %v4240, %v4916
      %v5051 = vadd.f32 %v3905, %v4581
      %v5052 = vadd.f32 %v4243, %v4919
      %v5053 = vadd.f32 %v3907, %v4583
      %v5054 = vadd.f32 %v4245, %v4921
      %v5055 = vadd.f32 %v3910, %v4586
      %v5056 = vadd.f32 %v4248, %v4924
      %v5057 = vadd.f32 %v3912, %v4588
      %v5058 = vadd.f32 %v4250, %v4926
      %v5059 = vadd.f32 %v3915, %v4591
      %v5060 = vadd.f32 %v4253, %v4929
      %v5061 = vadd.f32 %v3917, %v4593
      %v5062 = vadd.f32 %v4255, %v4931
      %v5063 = vadd.f32 %v3920, %v4596
      %v5064 = vadd.f32 %v4258, %v4934
      %v5065 = vadd.f32 %v3922, %v4598
      %v5066 = vadd.f32 %v4260, %v4936
      %v5067 = vadd.f32 %v3925, %v4601
      %v5068 = vadd.f32 %v4263, %v4939
      %v5069 = vadd.f32 %v3927, %v4603
      %v5070 = vadd.f32 %v4265, %v4941
      %5071 = vst [vmem:[%s256] sm:$0xff] %v4943
      %5072 = vst.msk [vmem:[%s256 + $0x8] sm:$0xff] %vm322, %v4944
      %5073 = vst [vmem:[%s256 + $0x10] sm:$0xff] %v4945
      %5074 = vst.msk [vmem:[%s256 + $0x18] sm:$0xff] %vm322, %v4946
      %5075 = vst [vmem:[%s256 + $0x20] sm:$0xff] %v4947
      %5076 = vst.msk [vmem:[%s256 + $0x28] sm:$0xff] %vm322, %v4948
      %5077 = vst [vmem:[%s256 + $0x30] sm:$0xff] %v4949
      %5078 = vst.msk [vmem:[%s256 + $0x38] sm:$0xff] %vm322, %v4950
      %5079 = vst [vmem:[%s256 + $0x40] sm:$0xff] %v4951
      %5080 = vst.msk [vmem:[%s256 + $0x48] sm:$0xff] %vm322, %v4952
      %5081 = vst [vmem:[%s256 + $0x50] sm:$0xff] %v4953
      %5082 = vst.msk [vmem:[%s256 + $0x58] sm:$0xff] %vm322, %v4954
      %5083 = vst [vmem:[%s256 + $0x60] sm:$0xff] %v4955
      %5084 = vst.msk [vmem:[%s256 + $0x68] sm:$0xff] %vm322, %v4956
      %5085 = vst [vmem:[%s256 + $0x70] sm:$0xff] %v4957
      %5086 = vst.msk [vmem:[%s256 + $0x78] sm:$0xff] %vm322, %v4958
      %5087 = vst [vmem:[%s256 + $0x80] sm:$0xff] %v4959
      %5088 = vst.msk [vmem:[%s256 + $0x88] sm:$0xff] %vm322, %v4960
      %5089 = vst [vmem:[%s256 + $0x90] sm:$0xff] %v4961
      %5090 = vst.msk [vmem:[%s256 + $0x98] sm:$0xff] %vm322, %v4962
      %5091 = vst [vmem:[%s256 + $0xa0] sm:$0xff] %v4963
      %5092 = vst.msk [vmem:[%s256 + $0xa8] sm:$0xff] %vm322, %v4964
      %5093 = vst [vmem:[%s256 + $0xb0] sm:$0xff] %v4965
      %5094 = vst.msk [vmem:[%s256 + $0xb8] sm:$0xff] %vm322, %v4966
      %5095 = vst [vmem:[%s256 + $0xc0] sm:$0xff] %v4967
      %5096 = vst.msk [vmem:[%s256 + $0xc8] sm:$0xff] %vm322, %v4968
      %5097 = vst [vmem:[%s256 + $0xd0] sm:$0xff] %v4969
      %5098 = vst.msk [vmem:[%s256 + $0xd8] sm:$0xff] %vm322, %v4970
      %5099 = vst [vmem:[%s256 + $0xe0] sm:$0xff] %v4971
      %5100 = vst.msk [vmem:[%s256 + $0xe8] sm:$0xff] %vm322, %v4972
      %5101 = vst [vmem:[%s256 + $0xf0] sm:$0xff] %v4973
      %5102 = vst.msk [vmem:[%s256 + $0xf8] sm:$0xff] %vm322, %v4974
      %5103 = vst [vmem:[%s256 + $0x100] sm:$0xff] %v4975
      %5104 = vst.msk [vmem:[%s256 + $0x108] sm:$0xff] %vm322, %v4976
      %5105 = vst [vmem:[%s256 + $0x110] sm:$0xff] %v4977
      %5106 = vst.msk [vmem:[%s256 + $0x118] sm:$0xff] %vm322, %v4978
      %5107 = vst [vmem:[%s256 + $0x120] sm:$0xff] %v4979
      %5108 = vst.msk [vmem:[%s256 + $0x128] sm:$0xff] %vm322, %v4980
      %5109 = vst [vmem:[%s256 + $0x130] sm:$0xff] %v4981
      %5110 = vst.msk [vmem:[%s256 + $0x138] sm:$0xff] %vm322, %v4982
      %5111 = vst [vmem:[%s256 + $0x140] sm:$0xff] %v4983
      %5112 = vst.msk [vmem:[%s256 + $0x148] sm:$0xff] %vm322, %v4984
      %5113 = vst [vmem:[%s256 + $0x150] sm:$0xff] %v4985
      %5114 = vst.msk [vmem:[%s256 + $0x158] sm:$0xff] %vm322, %v4986
      %5115 = vst [vmem:[%s256 + $0x160] sm:$0xff] %v4987
      %5116 = vst.msk [vmem:[%s256 + $0x168] sm:$0xff] %vm322, %v4988
      %5117 = vst [vmem:[%s256 + $0x170] sm:$0xff] %v4989
      %5118 = vst.msk [vmem:[%s256 + $0x178] sm:$0xff] %vm322, %v4990
      %5119 = vst [vmem:[%s256 + $0x180] sm:$0xff] %v4991
      %5120 = vst.msk [vmem:[%s256 + $0x188] sm:$0xff] %vm322, %v4992
      %5121 = vst [vmem:[%s256 + $0x190] sm:$0xff] %v4993
      %5122 = vst.msk [vmem:[%s256 + $0x198] sm:$0xff] %vm322, %v4994
      %5123 = vst [vmem:[%s256 + $0x1a0] sm:$0xff] %v4995
      %5124 = vst.msk [vmem:[%s256 + $0x1a8] sm:$0xff] %vm322, %v4996
      %5125 = vst [vmem:[%s256 + $0x1b0] sm:$0xff] %v4997
      %5126 = vst.msk [vmem:[%s256 + $0x1b8] sm:$0xff] %vm322, %v4998
      %5127 = vst [vmem:[%s256 + $0x1c0] sm:$0xff] %v4999
      %5128 = vst.msk [vmem:[%s256 + $0x1c8] sm:$0xff] %vm322, %v5000
      %5129 = vst [vmem:[%s256 + $0x1d0] sm:$0xff] %v5001
      %5130 = vst.msk [vmem:[%s256 + $0x1d8] sm:$0xff] %vm322, %v5002
      %5131 = vst [vmem:[%s256 + $0x1e0] sm:$0xff] %v5003
      %5132 = vst.msk [vmem:[%s256 + $0x1e8] sm:$0xff] %vm322, %v5004
      %5133 = vst [vmem:[%s256 + $0x1f0] sm:$0xff] %v5005
      %5134 = vst.msk [vmem:[%s256 + $0x1f8] sm:$0xff] %vm322, %v5006
      %5135 = vst [vmem:[%s256 + $0x200] sm:$0xff] %v5007
      %5136 = vst.msk [vmem:[%s256 + $0x208] sm:$0xff] %vm322, %v5008
      %5137 = vst [vmem:[%s256 + $0x210] sm:$0xff] %v5009
      %5138 = vst.msk [vmem:[%s256 + $0x218] sm:$0xff] %vm322, %v5010
      %5139 = vst [vmem:[%s256 + $0x220] sm:$0xff] %v5011
      %5140 = vst.msk [vmem:[%s256 + $0x228] sm:$0xff] %vm322, %v5012
      %5141 = vst [vmem:[%s256 + $0x230] sm:$0xff] %v5013
      %5142 = vst.msk [vmem:[%s256 + $0x238] sm:$0xff] %vm322, %v5014
      %5143 = vst [vmem:[%s256 + $0x240] sm:$0xff] %v5015
      %5144 = vst.msk [vmem:[%s256 + $0x248] sm:$0xff] %vm322, %v5016
      %5145 = vst [vmem:[%s256 + $0x250] sm:$0xff] %v5017
      %5146 = vst.msk [vmem:[%s256 + $0x258] sm:$0xff] %vm322, %v5018
      %5147 = vst [vmem:[%s256 + $0x260] sm:$0xff] %v5019
      %5148 = vst.msk [vmem:[%s256 + $0x268] sm:$0xff] %vm322, %v5020
      %5149 = vst [vmem:[%s256 + $0x270] sm:$0xff] %v5021
      %5150 = vst.msk [vmem:[%s256 + $0x278] sm:$0xff] %vm322, %v5022
      %5151 = vst [vmem:[%s256 + $0x280] sm:$0xff] %v5023
      %5152 = vst.msk [vmem:[%s256 + $0x288] sm:$0xff] %vm322, %v5024
      %5153 = vst [vmem:[%s256 + $0x290] sm:$0xff] %v5025
      %5154 = vst.msk [vmem:[%s256 + $0x298] sm:$0xff] %vm322, %v5026
      %5155 = vst [vmem:[%s256 + $0x2a0] sm:$0xff] %v5027
      %5156 = vst.msk [vmem:[%s256 + $0x2a8] sm:$0xff] %vm322, %v5028
      %5157 = vst [vmem:[%s256 + $0x2b0] sm:$0xff] %v5029
      %5158 = vst.msk [vmem:[%s256 + $0x2b8] sm:$0xff] %vm322, %v5030
      %5159 = vst [vmem:[%s256 + $0x2c0] sm:$0xff] %v5031
      %5160 = vst.msk [vmem:[%s256 + $0x2c8] sm:$0xff] %vm322, %v5032
      %5161 = vst [vmem:[%s256 + $0x2d0] sm:$0xff] %v5033
      %5162 = vst.msk [vmem:[%s256 + $0x2d8] sm:$0xff] %vm322, %v5034
      %5163 = vst [vmem:[%s256 + $0x2e0] sm:$0xff] %v5035
      %5164 = vst.msk [vmem:[%s256 + $0x2e8] sm:$0xff] %vm322, %v5036
      %5165 = vst [vmem:[%s256 + $0x2f0] sm:$0xff] %v5037
      %5166 = vst.msk [vmem:[%s256 + $0x2f8] sm:$0xff] %vm322, %v5038
      %5167 = vst [vmem:[%s256 + $0x300] sm:$0xff] %v5039
      %5168 = vst.msk [vmem:[%s256 + $0x308] sm:$0xff] %vm322, %v5040
      %5169 = vst [vmem:[%s256 + $0x310] sm:$0xff] %v5041
      %5170 = vst.msk [vmem:[%s256 + $0x318] sm:$0xff] %vm322, %v5042
      %5171 = vst [vmem:[%s256 + $0x320] sm:$0xff] %v5043
      %5172 = vst.msk [vmem:[%s256 + $0x328] sm:$0xff] %vm322, %v5044
      %5173 = vst [vmem:[%s256 + $0x330] sm:$0xff] %v5045
      %5174 = vst.msk [vmem:[%s256 + $0x338] sm:$0xff] %vm322, %v5046
      %5175 = vst [vmem:[%s256 + $0x340] sm:$0xff] %v5047
      %5176 = vst.msk [vmem:[%s256 + $0x348] sm:$0xff] %vm322, %v5048
      %5177 = vst [vmem:[%s256 + $0x350] sm:$0xff] %v5049
      %5178 = vst.msk [vmem:[%s256 + $0x358] sm:$0xff] %vm322, %v5050
      %5179 = vst [vmem:[%s256 + $0x360] sm:$0xff] %v5051
      %5180 = vst.msk [vmem:[%s256 + $0x368] sm:$0xff] %vm322, %v5052
      %5181 = vst [vmem:[%s256 + $0x370] sm:$0xff] %v5053
      %5182 = vst.msk [vmem:[%s256 + $0x378] sm:$0xff] %vm322, %v5054
      %5183 = vst [vmem:[%s256 + $0x380] sm:$0xff] %v5055
      %5184 = vst.msk [vmem:[%s256 + $0x388] sm:$0xff] %vm322, %v5056
      %5185 = vst [vmem:[%s256 + $0x390] sm:$0xff] %v5057
      %5186 = vst.msk [vmem:[%s256 + $0x398] sm:$0xff] %vm322, %v5058
      %5187 = vst [vmem:[%s256 + $0x3a0] sm:$0xff] %v5059
      %5188 = vst.msk [vmem:[%s256 + $0x3a8] sm:$0xff] %vm322, %v5060
      %5189 = vst [vmem:[%s256 + $0x3b0] sm:$0xff] %v5061
      %5190 = vst.msk [vmem:[%s256 + $0x3b8] sm:$0xff] %vm322, %v5062
      %5191 = vst [vmem:[%s256 + $0x3c0] sm:$0xff] %v5063
      %5192 = vst.msk [vmem:[%s256 + $0x3c8] sm:$0xff] %vm322, %v5064
      %5193 = vst [vmem:[%s256 + $0x3d0] sm:$0xff] %v5065
      %5194 = vst.msk [vmem:[%s256 + $0x3d8] sm:$0xff] %vm322, %v5066
      %5195 = vst [vmem:[%s256 + $0x3e0] sm:$0xff] %v5067
      %5196 = vst.msk [vmem:[%s256 + $0x3e8] sm:$0xff] %vm322, %v5068
      %5197 = vst [vmem:[%s256 + $0x3f0] sm:$0xff] %v5069
      %5198 = vst.msk [vmem:[%s256 + $0x3f8] sm:$0xff] %vm322, %v5070
      %s5199 = smul.u32 64, %s16
      %p5200 = scmp.lt.s32.totalorder %s5199, 127
      %s5201 = scalar_select %p5200, %s5199, 127
      %s5202 = smul.addr %s5201, 2
      %s5203 = smul.addr %s5202, 8
      %s5204 = scalar_lea.vmem %s5, %s5203
      // Predicated region
      $region41: #{bn_relu_conv1x1.1} parent=39 // pred_check
        %p5205 = pneg %p149
      $region42: #{bn_relu_conv1x1.1} parent=39 // pred_check_branch
        %5207 = sbr.rel (%p5205) target = $region44
      $region43: #{bn_relu_conv1x1.1} parent=39 // pred_region
        %s5208 = smul.u32 64, %s16
      $region44: #{bn_relu_conv1x1.1} parent=39 // pred_fallthru
        _
    $region40: #{bn_relu_conv1x1.1} parent=5 // pred_fallthru
      _
    %p5209 = scmp.le.s32.totalorder 2, %s11
    // Predicated region
    $region45: #{bn_relu_conv1x1.1} parent=5 // pred_check
      %p5210 = pneg %p5209
    $region46: #{bn_relu_conv1x1.1} parent=5 // pred_check_branch
      %5212 = sbr.rel (%p5210) target = $region48
    $region47: #{bn_relu_conv1x1.1} parent=5 // pred_region
      %s5213 = ssub.s32 %s11, 2
      // Predicated region
      $region49: #{bn_relu_conv1x1.1} parent=47 // pred_check
        %p5214 = pneg %p155
      $region50: #{bn_relu_conv1x1.1} parent=47 // pred_check_branch
        %5216 = sbr.rel (%p5214) target = $region52
      $region51: #{bn_relu_conv1x1.1} parent=47 // pred_region
        %s5217 = smul.u32 64, %s17
        %p5218 = scmp.lt.s32.totalorder %s5217, 127
        %s5219 = scalar_select %p5218, %s5217, 127
        %s5220 = smul.addr %s5219, 2
        %s5221 = smul.addr %s5220, 8
        %s5222 = scalar_lea.vmem %s5, %s5221
      $region52: #{bn_relu_conv1x1.1} parent=47 // pred_fallthru
        _
    $region48: #{bn_relu_conv1x1.1} parent=5 // pred_fallthru
      _
  $region6: #{bn_relu_conv1x1.1} parent=0 // loop_footer
    %s15 = sadd.s32 1, %s11
  $region7: #{bn_relu_conv1x1.1} parent=0 // loop_footer_branch
    %10 = sbr.rel target = $region3
  $region8: #{bn_relu_conv1x1.1} parent=0 // loop_exit
    _

</llo_original>
